<compile_context>
chip_gen: v5e
topology: v5e:2x2
jax: 0.10.0
libtpu: 0.0.40
codegen_flags: <defaults>
</compile_context>

<pallas_src>
import math

import jax
import jax.numpy as jnp
from jax.experimental import pallas as pl
from jax.experimental.pallas import tpu as pltpu

# Module-consistent small shapes (module defaults: emb_dim=128, hidden=128, layers=2).
B, T, E, H, O = 8, 8, 128, 128, 256
NUM_NEIGH = 3

# log(1e-44) evaluated off-device in f64.  1e-44 is subnormal in float32 and
# TPUs flush denormals to zero, so computing log(mask + 1e-44) on-device gives
# -inf instead of PyTorch's ~-101.3.
_LOG_EPS = math.log(1e-44)   # ~ -101.3138


def nl_lstm_kernel(x_ref, lm1_ref,
                   wih0_ref, b0_ref, whh0_ref,
                   w1_ref, b1_ref,
                   wd1_ref, bd1_ref, wd2_ref, bd2_ref, wd3_ref, bd3m_ref,
                   out_ref):
    """Whole forward in one invocation; working set (~1.5 MiB) fits VMEM.

    x_ref   : (T*B, E)  time-major, flattened so the layer-0 input projection
                        is a single batched MXU matmul.
    lm1_ref : (B, 1)    lengths - 1 (int32).
    w1_ref  : (2H, 4H)  fused [wih1; whh1] -> layer 1 is one K=2H matmul/step.
    bd3m_ref: (B, O)    final decoder bias with the log-mask already folded in.
    """
    batch = out_ref.shape[0]
    hd = whh0_ref.shape[0]
    num_steps = x_ref.shape[0] // batch

    # Hoisted loop-invariant loads (JAX does not CSE these inside a loop).
    whh0 = whh0_ref[...]
    w1 = w1_ref[...]
    b1 = b1_ref[...]
    lm1 = lm1_ref[...]                              # (B, 1) int32

    # Layer-0 input projection for ALL timesteps at once: (T*B, E) @ (E, 4H).
    pre0 = jnp.dot(x_ref[...], wih0_ref[...],
                   preferred_element_type=jnp.float32) + b0_ref[...]

    def gates_to_hc(gates, c_prev):
        # PyTorch gate order: i, f, g, o
        i = jax.nn.sigmoid(gates[:, 0 * hd:1 * hd])
        f = jax.nn.sigmoid(gates[:, 1 * hd:2 * hd])
        g = jnp.tanh(gates[:, 2 * hd:3 * hd])
        o = jax.nn.sigmoid(gates[:, 3 * hd:4 * hd])
        c_new = f * c_prev + i * g
        return o * jnp.tanh(c_new), c_new

    zeros = jnp.zeros((batch, hd), jnp.float32)
    h0, c0, h1, c1, last = zeros, zeros, zeros, zeros, zeros

    # Static unroll (T is a compile-time constant): state stays in vregs and
    # the LLO scheduler can interleave MXU / EUP / VPU work across steps.
    for t in range(num_steps):
        g0 = pre0[t * batch:(t + 1) * batch, :] + jnp.dot(
            h0, whh0, preferred_element_type=jnp.float32)
        h0, c0 = gates_to_hc(g0, c0)
        # Inter-layer Dropout(0.5) is identity in the deterministic forward.
        # TODO(synk): stochastic train-mode dropout between LSTM layers not implemented.
        g1 = jnp.dot(jnp.concatenate([h0, h1], axis=1), w1,
                     preferred_element_type=jnp.float32) + b1
        h1, c1 = gates_to_hc(g1, c1)
        last = jnp.where(lm1 == t, h1, last)        # output at lengths[b] - 1

    # Decoder MLP; log-mask already folded into bd3m.
    z = jnp.maximum(
        jnp.dot(last, wd1_ref[...], preferred_element_type=jnp.float32)
        + bd1_ref[...], 0.0)
    z = jnp.maximum(
        jnp.dot(z, wd2_ref[...], preferred_element_type=jnp.float32)
        + bd2_ref[...], 0.0)
    out_ref[...] = (jnp.dot(z, wd3_ref[...], preferred_element_type=jnp.float32)
                    + bd3m_ref[...])


def _logmask_from_neigh(neigh_masks, out_dim):
    """masked_out: mask = ones; mask[b, neigh_masks[b]] = 0; add log(mask + 1e-44).
    Uses a precomputed normal-range constant so the result matches PyTorch's
    CPU/GPU value (~-101.3) instead of -inf under TPU denormal flush."""
    onehot = jax.nn.one_hot(neigh_masks, out_dim, dtype=jnp.float32).sum(axis=1)
    return jnp.where(onehot > 0, jnp.float32(_LOG_EPS), jnp.float32(0.0))


def nl_lstm_forward(x, lengths, neigh_masks, params):
    """x: (B, T, E) float32 (batch-first, like PyTorch). Returns (B, O) logits."""
    b, t, e = x.shape
    out_dim = params["wd3"].shape[1]

    x2d = jnp.transpose(x, (1, 0, 2)).reshape(t * b, e)      # time-major (T*B, E)
    lm1 = (lengths.astype(jnp.int32) - 1).reshape(b, 1)
    logmask = _logmask_from_neigh(neigh_masks, out_dim)      # (B, O)
    bd3m = params["bd3"] + logmask                           # fold mask into bias
    w1 = jnp.concatenate([params["wih1"], params["whh1"]], axis=0)   # (2H, 4H)

    vmem = pl.BlockSpec(memory_space=pltpu.MemorySpace.VMEM)
    n_inputs = 13
    return pl.pallas_call(
        nl_lstm_kernel,
        out_shape=jax.ShapeDtypeStruct((b, out_dim), jnp.float32),
        in_specs=[vmem] * n_inputs,
        out_specs=vmem,
    )(x2d, lm1,
      params["wih0"], params["b0"], params["whh0"],
      w1, params["b1"],
      params["wd1"], params["bd1"], params["wd2"], params["bd2"],
      params["wd3"], bd3m)


def reference_forward(x, lengths, neigh_masks, params):
    """Pure-JAX reference mirroring the PyTorch module."""
    b, t, _ = x.shape
    hidden = params["whh0"].shape[0]

    def cell(x_t, h, c, wih, whh, bias):
        gates = x_t @ wih + h @ whh + bias
        i, f, g, o = jnp.split(gates, 4, axis=-1)
        c_new = jax.nn.sigmoid(f) * c + jax.nn.sigmoid(i) * jnp.tanh(g)
        h_new = jax.nn.sigmoid(o) * jnp.tanh(c_new)
        return h_new, c_new

    h0 = c0 = h1 = c1 = jnp.zeros((b, hidden), jnp.float32)
    last = jnp.zeros((b, hidden), jnp.float32)
    for step in range(t):
        h0, c0 = cell(x[:, step], h0, c0, params["wih0"], params["whh0"], params["b0"])
        h1, c1 = cell(h0, h1, c1, params["wih1"], params["whh1"], params["b1"])
        last = jnp.where((lengths - 1 == step)[:, None], h1, last)

    z = jax.nn.relu(last @ params["wd1"] + params["bd1"])
    z = jax.nn.relu(z @ params["wd2"] + params["bd2"])
    y = z @ params["wd3"] + params["bd3"]
    return y + _logmask_from_neigh(neigh_masks, params["wd3"].shape[1])


def init_params(key):
    """Deterministic init; shapes follow nn.LSTM(E,H,2) + the decoder MLP.
    All matmul weights stored pre-transposed: (in_features, out_features)."""
    ks = jax.random.split(key, 16)
    s = 1.0 / jnp.sqrt(H)

    def u(k, shape):
        return jax.random.uniform(k, shape, jnp.float32, -s, s)

    params = {
        # LSTM layer 0: W_ih (4H,E), W_hh (4H,H) in torch -> transposed here
        "wih0": u(ks[0], (E, 4 * H)),
        "whh0": u(ks[1], (H, 4 * H)),
        "b0": (u(ks[2], (1, 4 * H)) + u(ks[3], (1, 4 * H))),   # b_ih + b_hh
        # LSTM layer 1
        "wih1": u(ks[4], (H, 4 * H)),
        "whh1": u(ks[5], (H, 4 * H)),
        "b1": (u(ks[6], (1, 4 * H)) + u(ks[7], (1, 4 * H))),
        # decoder: Linear(H,2H), Linear(2H,H), Linear(H,O)
        "wd1": u(ks[8], (H, 2 * H)),
        "bd1": u(ks[9], (1, 2 * H)),
        "wd2": u(ks[10], (2 * H, H)),
        "bd2": u(ks[11], (1, H)),
        "wd3": u(ks[12], (H, O)),
        "bd3": u(ks[13], (1, O)),
    }
    return params


if __name__ == "__main__":
    key = jax.random.PRNGKey(0)
    k_par, k_x, k_len, k_neigh = jax.random.split(key, 4)

    params = init_params(k_par)
    x = jax.random.normal(k_x, (B, T, E), jnp.float32)
    lengths = jax.random.randint(k_len, (B,), 1, T + 1, jnp.int32)
    neigh_masks = jax.random.randint(k_neigh, (B, NUM_NEIGH), 0, O, jnp.int32)

    out = jax.block_until_ready(nl_lstm_forward(x, lengths, neigh_masks, params))
    ref = jax.block_until_ready(reference_forward(x, lengths, neigh_masks, params))

    assert out.shape == (B, O) and out.dtype == jnp.float32
    assert jnp.allclose(out, ref, rtol=1e-4, atol=1e-4), float(jnp.max(jnp.abs(out - ref)))
    print("KERNEL_OK")
</pallas_src>

<mosaic_0001>
module attributes {stable_mosaic.version = 11 : i64} {
  func.func @nl_lstm_kernel(%arg0: memref<64x128xf32, #tpu.memory_space<vmem>>, %arg1: memref<8x1xi32, #tpu.memory_space<vmem>>, %arg2: memref<128x512xf32, #tpu.memory_space<vmem>>, %arg3: memref<1x512xf32, #tpu.memory_space<vmem>>, %arg4: memref<128x512xf32, #tpu.memory_space<vmem>>, %arg5: memref<256x512xf32, #tpu.memory_space<vmem>>, %arg6: memref<1x512xf32, #tpu.memory_space<vmem>>, %arg7: memref<128x256xf32, #tpu.memory_space<vmem>>, %arg8: memref<1x256xf32, #tpu.memory_space<vmem>>, %arg9: memref<256x128xf32, #tpu.memory_space<vmem>>, %arg10: memref<1x128xf32, #tpu.memory_space<vmem>>, %arg11: memref<128x256xf32, #tpu.memory_space<vmem>>, %arg12: memref<8x256xf32, #tpu.memory_space<vmem>>, %arg13: memref<8x256xf32, #tpu.memory_space<vmem>>) attributes {dimension_semantics = [], scalar_prefetch = 0 : i64, scratch_operands = 0 : i64, tpu.core_type = #tpu.core_type<tc>} {
    %c0 = arith.constant 0 : index
    %c0_0 = arith.constant 0 : index
    %0 = vector.load %arg4[%c0, %c0_0] : memref<128x512xf32, #tpu.memory_space<vmem>>, vector<128x512xf32>
    %c0_1 = arith.constant 0 : index
    %c0_2 = arith.constant 0 : index
    %1 = vector.load %arg5[%c0_1, %c0_2] : memref<256x512xf32, #tpu.memory_space<vmem>>, vector<256x512xf32>
    %c0_3 = arith.constant 0 : index
    %c0_4 = arith.constant 0 : index
    %2 = vector.load %arg6[%c0_3, %c0_4] : memref<1x512xf32, #tpu.memory_space<vmem>>, vector<1x512xf32>
    %c0_5 = arith.constant 0 : index
    %c0_6 = arith.constant 0 : index
    %3 = vector.load %arg1[%c0_5, %c0_6] : memref<8x1xi32, #tpu.memory_space<vmem>>, vector<8x1xi32>
    %c0_7 = arith.constant 0 : index
    %c0_8 = arith.constant 0 : index
    %4 = vector.load %arg0[%c0_7, %c0_8] : memref<64x128xf32, #tpu.memory_space<vmem>>, vector<64x128xf32>
    %c0_9 = arith.constant 0 : index
    %c0_10 = arith.constant 0 : index
    %5 = vector.load %arg2[%c0_9, %c0_10] : memref<128x512xf32, #tpu.memory_space<vmem>>, vector<128x512xf32>
    %cst = arith.constant dense<0.000000e+00> : vector<64x512xf32>
    %6 = tpu.matmul %4, %5, %cst {dimension_numbers = #tpu.dot_dimension_numbers<[1], [0], [0], [1], [0, 0, 1, 1], [], []>} : vector<64x128xf32>, vector<128x512xf32>, vector<64x512xf32> -> vector<64x512xf32>
    %c0_11 = arith.constant 0 : index
    %c0_12 = arith.constant 0 : index
    %7 = vector.load %arg3[%c0_11, %c0_12] : memref<1x512xf32, #tpu.memory_space<vmem>>, vector<1x512xf32>
    %8 = vector.broadcast %7 : vector<1x512xf32> to vector<64x512xf32>
    %9 = arith.addf %6, %8 : vector<64x512xf32>
    %cst_13 = arith.constant 0.000000e+00 : f32
    %10 = vector.broadcast %cst_13 : f32 to vector<8x128xf32>
    %11 = vector.extract_strided_slice %9 {offsets = [0, 0], sizes = [8, 512], strides = [1, 1]} : vector<64x512xf32> to vector<8x512xf32>
    %cst_14 = arith.constant dense<0.000000e+00> : vector<8x512xf32>
    %12 = tpu.matmul %10, %0, %cst_14 {dimension_numbers = #tpu.dot_dimension_numbers<[1], [0], [0], [1], [0, 0, 1, 1], [], []>} : vector<8x128xf32>, vector<128x512xf32>, vector<8x512xf32> -> vector<8x512xf32>
    %13 = arith.addf %11, %12 : vector<8x512xf32>
    %14 = vector.extract_strided_slice %13 {offsets = [0, 0], sizes = [8, 128], strides = [1, 1]} : vector<8x512xf32> to vector<8x128xf32>
    %15 = arith.negf %14 : vector<8x128xf32>
    %16 = math.exp %15 : vector<8x128xf32>
    %cst_15 = arith.constant 1.000000e+00 : f32
    %17 = vector.broadcast %cst_15 : f32 to vector<8x128xf32>
    %18 = arith.addf %17, %16 : vector<8x128xf32>
    %19 = arith.divf %17, %18 : vector<8x128xf32>
    %20 = vector.extract_strided_slice %13 {offsets = [0, 128], sizes = [8, 128], strides = [1, 1]} : vector<8x512xf32> to vector<8x128xf32>
    %21 = arith.negf %20 : vector<8x128xf32>
    %22 = math.exp %21 : vector<8x128xf32>
    %cst_16 = arith.constant 1.000000e+00 : f32
    %23 = vector.broadcast %cst_16 : f32 to vector<8x128xf32>
    %24 = arith.addf %23, %22 : vector<8x128xf32>
    %25 = arith.divf %23, %24 : vector<8x128xf32>
    %26 = vector.extract_strided_slice %13 {offsets = [0, 256], sizes = [8, 128], strides = [1, 1]} : vector<8x512xf32> to vector<8x128xf32>
    %27 = math.tanh %26 : vector<8x128xf32>
    %28 = vector.extract_strided_slice %13 {offsets = [0, 384], sizes = [8, 128], strides = [1, 1]} : vector<8x512xf32> to vector<8x128xf32>
    %29 = arith.negf %28 : vector<8x128xf32>
    %30 = math.exp %29 : vector<8x128xf32>
    %cst_17 = arith.constant 1.000000e+00 : f32
    %31 = vector.broadcast %cst_17 : f32 to vector<8x128xf32>
    %32 = arith.addf %31, %30 : vector<8x128xf32>
    %33 = arith.divf %31, %32 : vector<8x128xf32>
    %34 = arith.mulf %25, %10 : vector<8x128xf32>
    %35 = arith.mulf %19, %27 : vector<8x128xf32>
    %36 = arith.addf %34, %35 : vector<8x128xf32>
    %37 = math.tanh %36 : vector<8x128xf32>
    %38 = arith.mulf %33, %37 : vector<8x128xf32>
    %39 = tpu.concatenate %38, %10 in 1 : vector<8x128xf32>, vector<8x128xf32> -> vector<8x256xf32>
    %cst_18 = arith.constant dense<0.000000e+00> : vector<8x512xf32>
    %40 = tpu.matmul %39, %1, %cst_18 {dimension_numbers = #tpu.dot_dimension_numbers<[1], [0], [0], [1], [0, 0, 1, 1], [], []>} : vector<8x256xf32>, vector<256x512xf32>, vector<8x512xf32> -> vector<8x512xf32>
    %41 = vector.broadcast %2 : vector<1x512xf32> to vector<8x512xf32>
    %42 = arith.addf %40, %41 : vector<8x512xf32>
    %43 = vector.extract_strided_slice %42 {offsets = [0, 0], sizes = [8, 128], strides = [1, 1]} : vector<8x512xf32> to vector<8x128xf32>
    %44 = arith.negf %43 : vector<8x128xf32>
    %45 = math.exp %44 : vector<8x128xf32>
    %cst_19 = arith.constant 1.000000e+00 : f32
    %46 = vector.broadcast %cst_19 : f32 to vector<8x128xf32>
    %47 = arith.addf %46, %45 : vector<8x128xf32>
    %48 = arith.divf %46, %47 : vector<8x128xf32>
    %49 = vector.extract_strided_slice %42 {offsets = [0, 128], sizes = [8, 128], strides = [1, 1]} : vector<8x512xf32> to vector<8x128xf32>
    %50 = arith.negf %49 : vector<8x128xf32>
    %51 = math.exp %50 : vector<8x128xf32>
    %cst_20 = arith.constant 1.000000e+00 : f32
    %52 = vector.broadcast %cst_20 : f32 to vector<8x128xf32>
    %53 = arith.addf %52, %51 : vector<8x128xf32>
    %54 = arith.divf %52, %53 : vector<8x128xf32>
    %55 = vector.extract_strided_slice %42 {offsets = [0, 256], sizes = [8, 128], strides = [1, 1]} : vector<8x512xf32> to vector<8x128xf32>
    %56 = math.tanh %55 : vector<8x128xf32>
    %57 = vector.extract_strided_slice %42 {offsets = [0, 384], sizes = [8, 128], strides = [1, 1]} : vector<8x512xf32> to vector<8x128xf32>
    %58 = arith.negf %57 : vector<8x128xf32>
    %59 = math.exp %58 : vector<8x128xf32>
    %cst_21 = arith.constant 1.000000e+00 : f32
    %60 = vector.broadcast %cst_21 : f32 to vector<8x128xf32>
    %61 = arith.addf %60, %59 : vector<8x128xf32>
    %62 = arith.divf %60, %61 : vector<8x128xf32>
    %63 = arith.mulf %54, %10 : vector<8x128xf32>
    %64 = arith.mulf %48, %56 : vector<8x128xf32>
    %65 = arith.addf %63, %64 : vector<8x128xf32>
    %66 = math.tanh %65 : vector<8x128xf32>
    %67 = arith.mulf %62, %66 : vector<8x128xf32>
    %c0_i32 = arith.constant 0 : i32
    %68 = vector.broadcast %c0_i32 : i32 to vector<8x1xi32>
    %69 = arith.cmpi eq, %3, %68 : vector<8x1xi32>
    %70 = vector.shape_cast %69 : vector<8x1xi1> to vector<8x1xi1>
    %71 = vector.broadcast %70 : vector<8x1xi1> to vector<8x128xi1>
    %72 = arith.select %71, %67, %10 : vector<8x128xi1>, vector<8x128xf32>
    %73 = vector.extract_strided_slice %9 {offsets = [8, 0], sizes = [8, 512], strides = [1, 1]} : vector<64x512xf32> to vector<8x512xf32>
    %cst_22 = arith.constant dense<0.000000e+00> : vector<8x512xf32>
    %74 = tpu.matmul %38, %0, %cst_22 {dimension_numbers = #tpu.dot_dimension_numbers<[1], [0], [0], [1], [0, 0, 1, 1], [], []>} : vector<8x128xf32>, vector<128x512xf32>, vector<8x512xf32> -> vector<8x512xf32>
    %75 = arith.addf %73, %74 : vector<8x512xf32>
    %76 = vector.extract_strided_slice %75 {offsets = [0, 0], sizes = [8, 128], strides = [1, 1]} : vector<8x512xf32> to vector<8x128xf32>
    %77 = arith.negf %76 : vector<8x128xf32>
    %78 = math.exp %77 : vector<8x128xf32>
    %cst_23 = arith.constant 1.000000e+00 : f32
    %79 = vector.broadcast %cst_23 : f32 to vector<8x128xf32>
    %80 = arith.addf %79, %78 : vector<8x128xf32>
    %81 = arith.divf %79, %80 : vector<8x128xf32>
    %82 = vector.extract_strided_slice %75 {offsets = [0, 128], sizes = [8, 128], strides = [1, 1]} : vector<8x512xf32> to vector<8x128xf32>
    %83 = arith.negf %82 : vector<8x128xf32>
    %84 = math.exp %83 : vector<8x128xf32>
    %cst_24 = arith.constant 1.000000e+00 : f32
    %85 = vector.broadcast %cst_24 : f32 to vector<8x128xf32>
    %86 = arith.addf %85, %84 : vector<8x128xf32>
    %87 = arith.divf %85, %86 : vector<8x128xf32>
    %88 = vector.extract_strided_slice %75 {offsets = [0, 256], sizes = [8, 128], strides = [1, 1]} : vector<8x512xf32> to vector<8x128xf32>
    %89 = math.tanh %88 : vector<8x128xf32>
    %90 = vector.extract_strided_slice %75 {offsets = [0, 384], sizes = [8, 128], strides = [1, 1]} : vector<8x512xf32> to vector<8x128xf32>
    %91 = arith.negf %90 : vector<8x128xf32>
    %92 = math.exp %91 : vector<8x128xf32>
    %cst_25 = arith.constant 1.000000e+00 : f32
    %93 = vector.broadcast %cst_25 : f32 to vector<8x128xf32>
    %94 = arith.addf %93, %92 : vector<8x128xf32>
    %95 = arith.divf %93, %94 : vector<8x128xf32>
    %96 = arith.mulf %87, %36 : vector<8x128xf32>
    %97 = arith.mulf %81, %89 : vector<8x128xf32>
    %98 = arith.addf %96, %97 : vector<8x128xf32>
    %99 = math.tanh %98 : vector<8x128xf32>
    %100 = arith.mulf %95, %99 : vector<8x128xf32>
    %101 = tpu.concatenate %100, %67 in 1 : vector<8x128xf32>, vector<8x128xf32> -> vector<8x256xf32>
    %cst_26 = arith.constant dense<0.000000e+00> : vector<8x512xf32>
    %102 = tpu.matmul %101, %1, %cst_26 {dimension_numbers = #tpu.dot_dimension_numbers<[1], [0], [0], [1], [0, 0, 1, 1], [], []>} : vector<8x256xf32>, vector<256x512xf32>, vector<8x512xf32> -> vector<8x512xf32>
    %103 = vector.broadcast %2 : vector<1x512xf32> to vector<8x512xf32>
    %104 = arith.addf %102, %103 : vector<8x512xf32>
    %105 = vector.extract_strided_slice %104 {offsets = [0, 0], sizes = [8, 128], strides = [1, 1]} : vector<8x512xf32> to vector<8x128xf32>
    %106 = arith.negf %105 : vector<8x128xf32>
    %107 = math.exp %106 : vector<8x128xf32>
    %cst_27 = arith.constant 1.000000e+00 : f32
    %108 = vector.broadcast %cst_27 : f32 to vector<8x128xf32>
    %109 = arith.addf %108, %107 : vector<8x128xf32>
    %110 = arith.divf %108, %109 : vector<8x128xf32>
    %111 = vector.extract_strided_slice %104 {offsets = [0, 128], sizes = [8, 128], strides = [1, 1]} : vector<8x512xf32> to vector<8x128xf32>
    %112 = arith.negf %111 : vector<8x128xf32>
    %113 = math.exp %112 : vector<8x128xf32>
    %cst_28 = arith.constant 1.000000e+00 : f32
    %114 = vector.broadcast %cst_28 : f32 to vector<8x128xf32>
    %115 = arith.addf %114, %113 : vector<8x128xf32>
    %116 = arith.divf %114, %115 : vector<8x128xf32>
    %117 = vector.extract_strided_slice %104 {offsets = [0, 256], sizes = [8, 128], strides = [1, 1]} : vector<8x512xf32> to vector<8x128xf32>
    %118 = math.tanh %117 : vector<8x128xf32>
    %119 = vector.extract_strided_slice %104 {offsets = [0, 384], sizes = [8, 128], strides = [1, 1]} : vector<8x512xf32> to vector<8x128xf32>
    %120 = arith.negf %119 : vector<8x128xf32>
    %121 = math.exp %120 : vector<8x128xf32>
    %cst_29 = arith.constant 1.000000e+00 : f32
    %122 = vector.broadcast %cst_29 : f32 to vector<8x128xf32>
    %123 = arith.addf %122, %121 : vector<8x128xf32>
    %124 = arith.divf %122, %123 : vector<8x128xf32>
    %125 = arith.mulf %116, %65 : vector<8x128xf32>
    %126 = arith.mulf %110, %118 : vector<8x128xf32>
    %127 = arith.addf %125, %126 : vector<8x128xf32>
    %128 = math.tanh %127 : vector<8x128xf32>
    %129 = arith.mulf %124, %128 : vector<8x128xf32>
    %c1_i32 = arith.constant 1 : i32
    %130 = vector.broadcast %c1_i32 : i32 to vector<8x1xi32>
    %131 = arith.cmpi eq, %3, %130 : vector<8x1xi32>
    %132 = vector.shape_cast %131 : vector<8x1xi1> to vector<8x1xi1>
    %133 = vector.broadcast %132 : vector<8x1xi1> to vector<8x128xi1>
    %134 = arith.select %133, %129, %72 : vector<8x128xi1>, vector<8x128xf32>
    %135 = vector.extract_strided_slice %9 {offsets = [16, 0], sizes = [8, 512], strides = [1, 1]} : vector<64x512xf32> to vector<8x512xf32>
    %cst_30 = arith.constant dense<0.000000e+00> : vector<8x512xf32>
    %136 = tpu.matmul %100, %0, %cst_30 {dimension_numbers = #tpu.dot_dimension_numbers<[1], [0], [0], [1], [0, 0, 1, 1], [], []>} : vector<8x128xf32>, vector<128x512xf32>, vector<8x512xf32> -> vector<8x512xf32>
    %137 = arith.addf %135, %136 : vector<8x512xf32>
    %138 = vector.extract_strided_slice %137 {offsets = [0, 0], sizes = [8, 128], strides = [1, 1]} : vector<8x512xf32> to vector<8x128xf32>
    %139 = arith.negf %138 : vector<8x128xf32>
    %140 = math.exp %139 : vector<8x128xf32>
    %cst_31 = arith.constant 1.000000e+00 : f32
    %141 = vector.broadcast %cst_31 : f32 to vector<8x128xf32>
    %142 = arith.addf %141, %140 : vector<8x128xf32>
    %143 = arith.divf %141, %142 : vector<8x128xf32>
    %144 = vector.extract_strided_slice %137 {offsets = [0, 128], sizes = [8, 128], strides = [1, 1]} : vector<8x512xf32> to vector<8x128xf32>
    %145 = arith.negf %144 : vector<8x128xf32>
    %146 = math.exp %145 : vector<8x128xf32>
    %cst_32 = arith.constant 1.000000e+00 : f32
    %147 = vector.broadcast %cst_32 : f32 to vector<8x128xf32>
    %148 = arith.addf %147, %146 : vector<8x128xf32>
    %149 = arith.divf %147, %148 : vector<8x128xf32>
    %150 = vector.extract_strided_slice %137 {offsets = [0, 256], sizes = [8, 128], strides = [1, 1]} : vector<8x512xf32> to vector<8x128xf32>
    %151 = math.tanh %150 : vector<8x128xf32>
    %152 = vector.extract_strided_slice %137 {offsets = [0, 384], sizes = [8, 128], strides = [1, 1]} : vector<8x512xf32> to vector<8x128xf32>
    %153 = arith.negf %152 : vector<8x128xf32>
    %154 = math.exp %153 : vector<8x128xf32>
    %cst_33 = arith.constant 1.000000e+00 : f32
    %155 = vector.broadcast %cst_33 : f32 to vector<8x128xf32>
    %156 = arith.addf %155, %154 : vector<8x128xf32>
    %157 = arith.divf %155, %156 : vector<8x128xf32>
    %158 = arith.mulf %149, %98 : vector<8x128xf32>
    %159 = arith.mulf %143, %151 : vector<8x128xf32>
    %160 = arith.addf %158, %159 : vector<8x128xf32>
    %161 = math.tanh %160 : vector<8x128xf32>
    %162 = arith.mulf %157, %161 : vector<8x128xf32>
    %163 = tpu.concatenate %162, %129 in 1 : vector<8x128xf32>, vector<8x128xf32> -> vector<8x256xf32>
    %cst_34 = arith.constant dense<0.000000e+00> : vector<8x512xf32>
    %164 = tpu.matmul %163, %1, %cst_34 {dimension_numbers = #tpu.dot_dimension_numbers<[1], [0], [0], [1], [0, 0, 1, 1], [], []>} : vector<8x256xf32>, vector<256x512xf32>, vector<8x512xf32> -> vector<8x512xf32>
    %165 = vector.broadcast %2 : vector<1x512xf32> to vector<8x512xf32>
    %166 = arith.addf %164, %165 : vector<8x512xf32>
    %167 = vector.extract_strided_slice %166 {offsets = [0, 0], sizes = [8, 128], strides = [1, 1]} : vector<8x512xf32> to vector<8x128xf32>
    %168 = arith.negf %167 : vector<8x128xf32>
    %169 = math.exp %168 : vector<8x128xf32>
    %cst_35 = arith.constant 1.000000e+00 : f32
    %170 = vector.broadcast %cst_35 : f32 to vector<8x128xf32>
    %171 = arith.addf %170, %169 : vector<8x128xf32>
    %172 = arith.divf %170, %171 : vector<8x128xf32>
    %173 = vector.extract_strided_slice %166 {offsets = [0, 128], sizes = [8, 128], strides = [1, 1]} : vector<8x512xf32> to vector<8x128xf32>
    %174 = arith.negf %173 : vector<8x128xf32>
    %175 = math.exp %174 : vector<8x128xf32>
    %cst_36 = arith.constant 1.000000e+00 : f32
    %176 = vector.broadcast %cst_36 : f32 to vector<8x128xf32>
    %177 = arith.addf %176, %175 : vector<8x128xf32>
    %178 = arith.divf %176, %177 : vector<8x128xf32>
    %179 = vector.extract_strided_slice %166 {offsets = [0, 256], sizes = [8, 128], strides = [1, 1]} : vector<8x512xf32> to vector<8x128xf32>
    %180 = math.tanh %179 : vector<8x128xf32>
    %181 = vector.extract_strided_slice %166 {offsets = [0, 384], sizes = [8, 128], strides = [1, 1]} : vector<8x512xf32> to vector<8x128xf32>
    %182 = arith.negf %181 : vector<8x128xf32>
    %183 = math.exp %182 : vector<8x128xf32>
    %cst_37 = arith.constant 1.000000e+00 : f32
    %184 = vector.broadcast %cst_37 : f32 to vector<8x128xf32>
    %185 = arith.addf %184, %183 : vector<8x128xf32>
    %186 = arith.divf %184, %185 : vector<8x128xf32>
    %187 = arith.mulf %178, %127 : vector<8x128xf32>
    %188 = arith.mulf %172, %180 : vector<8x128xf32>
    %189 = arith.addf %187, %188 : vector<8x128xf32>
    %190 = math.tanh %189 : vector<8x128xf32>
    %191 = arith.mulf %186, %190 : vector<8x128xf32>
    %c2_i32 = arith.constant 2 : i32
    %192 = vector.broadcast %c2_i32 : i32 to vector<8x1xi32>
    %193 = arith.cmpi eq, %3, %192 : vector<8x1xi32>
    %194 = vector.shape_cast %193 : vector<8x1xi1> to vector<8x1xi1>
    %195 = vector.broadcast %194 : vector<8x1xi1> to vector<8x128xi1>
    %196 = arith.select %195, %191, %134 : vector<8x128xi1>, vector<8x128xf32>
    %197 = vector.extract_strided_slice %9 {offsets = [24, 0], sizes = [8, 512], strides = [1, 1]} : vector<64x512xf32> to vector<8x512xf32>
    %cst_38 = arith.constant dense<0.000000e+00> : vector<8x512xf32>
    %198 = tpu.matmul %162, %0, %cst_38 {dimension_numbers = #tpu.dot_dimension_numbers<[1], [0], [0], [1], [0, 0, 1, 1], [], []>} : vector<8x128xf32>, vector<128x512xf32>, vector<8x512xf32> -> vector<8x512xf32>
    %199 = arith.addf %197, %198 : vector<8x512xf32>
    %200 = vector.extract_strided_slice %199 {offsets = [0, 0], sizes = [8, 128], strides = [1, 1]} : vector<8x512xf32> to vector<8x128xf32>
    %201 = arith.negf %200 : vector<8x128xf32>
    %202 = math.exp %201 : vector<8x128xf32>
    %cst_39 = arith.constant 1.000000e+00 : f32
    %203 = vector.broadcast %cst_39 : f32 to vector<8x128xf32>
    %204 = arith.addf %203, %202 : vector<8x128xf32>
    %205 = arith.divf %203, %204 : vector<8x128xf32>
    %206 = vector.extract_strided_slice %199 {offsets = [0, 128], sizes = [8, 128], strides = [1, 1]} : vector<8x512xf32> to vector<8x128xf32>
    %207 = arith.negf %206 : vector<8x128xf32>
    %208 = math.exp %207 : vector<8x128xf32>
    %cst_40 = arith.constant 1.000000e+00 : f32
    %209 = vector.broadcast %cst_40 : f32 to vector<8x128xf32>
    %210 = arith.addf %209, %208 : vector<8x128xf32>
    %211 = arith.divf %209, %210 : vector<8x128xf32>
    %212 = vector.extract_strided_slice %199 {offsets = [0, 256], sizes = [8, 128], strides = [1, 1]} : vector<8x512xf32> to vector<8x128xf32>
    %213 = math.tanh %212 : vector<8x128xf32>
    %214 = vector.extract_strided_slice %199 {offsets = [0, 384], sizes = [8, 128], strides = [1, 1]} : vector<8x512xf32> to vector<8x128xf32>
    %215 = arith.negf %214 : vector<8x128xf32>
    %216 = math.exp %215 : vector<8x128xf32>
    %cst_41 = arith.constant 1.000000e+00 : f32
    %217 = vector.broadcast %cst_41 : f32 to vector<8x128xf32>
    %218 = arith.addf %217, %216 : vector<8x128xf32>
    %219 = arith.divf %217, %218 : vector<8x128xf32>
    %220 = arith.mulf %211, %160 : vector<8x128xf32>
    %221 = arith.mulf %205, %213 : vector<8x128xf32>
    %222 = arith.addf %220, %221 : vector<8x128xf32>
    %223 = math.tanh %222 : vector<8x128xf32>
    %224 = arith.mulf %219, %223 : vector<8x128xf32>
    %225 = tpu.concatenate %224, %191 in 1 : vector<8x128xf32>, vector<8x128xf32> -> vector<8x256xf32>
    %cst_42 = arith.constant dense<0.000000e+00> : vector<8x512xf32>
    %226 = tpu.matmul %225, %1, %cst_42 {dimension_numbers = #tpu.dot_dimension_numbers<[1], [0], [0], [1], [0, 0, 1, 1], [], []>} : vector<8x256xf32>, vector<256x512xf32>, vector<8x512xf32> -> vector<8x512xf32>
    %227 = vector.broadcast %2 : vector<1x512xf32> to vector<8x512xf32>
    %228 = arith.addf %226, %227 : vector<8x512xf32>
    %229 = vector.extract_strided_slice %228 {offsets = [0, 0], sizes = [8, 128], strides = [1, 1]} : vector<8x512xf32> to vector<8x128xf32>
    %230 = arith.negf %229 : vector<8x128xf32>
    %231 = math.exp %230 : vector<8x128xf32>
    %cst_43 = arith.constant 1.000000e+00 : f32
    %232 = vector.broadcast %cst_43 : f32 to vector<8x128xf32>
    %233 = arith.addf %232, %231 : vector<8x128xf32>
    %234 = arith.divf %232, %233 : vector<8x128xf32>
    %235 = vector.extract_strided_slice %228 {offsets = [0, 128], sizes = [8, 128], strides = [1, 1]} : vector<8x512xf32> to vector<8x128xf32>
    %236 = arith.negf %235 : vector<8x128xf32>
    %237 = math.exp %236 : vector<8x128xf32>
    %cst_44 = arith.constant 1.000000e+00 : f32
    %238 = vector.broadcast %cst_44 : f32 to vector<8x128xf32>
    %239 = arith.addf %238, %237 : vector<8x128xf32>
    %240 = arith.divf %238, %239 : vector<8x128xf32>
    %241 = vector.extract_strided_slice %228 {offsets = [0, 256], sizes = [8, 128], strides = [1, 1]} : vector<8x512xf32> to vector<8x128xf32>
    %242 = math.tanh %241 : vector<8x128xf32>
    %243 = vector.extract_strided_slice %228 {offsets = [0, 384], sizes = [8, 128], strides = [1, 1]} : vector<8x512xf32> to vector<8x128xf32>
    %244 = arith.negf %243 : vector<8x128xf32>
    %245 = math.exp %244 : vector<8x128xf32>
    %cst_45 = arith.constant 1.000000e+00 : f32
    %246 = vector.broadcast %cst_45 : f32 to vector<8x128xf32>
    %247 = arith.addf %246, %245 : vector<8x128xf32>
    %248 = arith.divf %246, %247 : vector<8x128xf32>
    %249 = arith.mulf %240, %189 : vector<8x128xf32>
    %250 = arith.mulf %234, %242 : vector<8x128xf32>
    %251 = arith.addf %249, %250 : vector<8x128xf32>
    %252 = math.tanh %251 : vector<8x128xf32>
    %253 = arith.mulf %248, %252 : vector<8x128xf32>
    %c3_i32 = arith.constant 3 : i32
    %254 = vector.broadcast %c3_i32 : i32 to vector<8x1xi32>
    %255 = arith.cmpi eq, %3, %254 : vector<8x1xi32>
    %256 = vector.shape_cast %255 : vector<8x1xi1> to vector<8x1xi1>
    %257 = vector.broadcast %256 : vector<8x1xi1> to vector<8x128xi1>
    %258 = arith.select %257, %253, %196 : vector<8x128xi1>, vector<8x128xf32>
    %259 = vector.extract_strided_slice %9 {offsets = [32, 0], sizes = [8, 512], strides = [1, 1]} : vector<64x512xf32> to vector<8x512xf32>
    %cst_46 = arith.constant dense<0.000000e+00> : vector<8x512xf32>
    %260 = tpu.matmul %224, %0, %cst_46 {dimension_numbers = #tpu.dot_dimension_numbers<[1], [0], [0], [1], [0, 0, 1, 1], [], []>} : vector<8x128xf32>, vector<128x512xf32>, vector<8x512xf32> -> vector<8x512xf32>
    %261 = arith.addf %259, %260 : vector<8x512xf32>
    %262 = vector.extract_strided_slice %261 {offsets = [0, 0], sizes = [8, 128], strides = [1, 1]} : vector<8x512xf32> to vector<8x128xf32>
    %263 = arith.negf %262 : vector<8x128xf32>
    %264 = math.exp %263 : vector<8x128xf32>
    %cst_47 = arith.constant 1.000000e+00 : f32
    %265 = vector.broadcast %cst_47 : f32 to vector<8x128xf32>
    %266 = arith.addf %265, %264 : vector<8x128xf32>
    %267 = arith.divf %265, %266 : vector<8x128xf32>
    %268 = vector.extract_strided_slice %261 {offsets = [0, 128], sizes = [8, 128], strides = [1, 1]} : vector<8x512xf32> to vector<8x128xf32>
    %269 = arith.negf %268 : vector<8x128xf32>
    %270 = math.exp %269 : vector<8x128xf32>
    %cst_48 = arith.constant 1.000000e+00 : f32
    %271 = vector.broadcast %cst_48 : f32 to vector<8x128xf32>
    %272 = arith.addf %271, %270 : vector<8x128xf32>
    %273 = arith.divf %271, %272 : vector<8x128xf32>
    %274 = vector.extract_strided_slice %261 {offsets = [0, 256], sizes = [8, 128], strides = [1, 1]} : vector<8x512xf32> to vector<8x128xf32>
    %275 = math.tanh %274 : vector<8x128xf32>
    %276 = vector.extract_strided_slice %261 {offsets = [0, 384], sizes = [8, 128], strides = [1, 1]} : vector<8x512xf32> to vector<8x128xf32>
    %277 = arith.negf %276 : vector<8x128xf32>
    %278 = math.exp %277 : vector<8x128xf32>
    %cst_49 = arith.constant 1.000000e+00 : f32
    %279 = vector.broadcast %cst_49 : f32 to vector<8x128xf32>
    %280 = arith.addf %279, %278 : vector<8x128xf32>
    %281 = arith.divf %279, %280 : vector<8x128xf32>
    %282 = arith.mulf %273, %222 : vector<8x128xf32>
    %283 = arith.mulf %267, %275 : vector<8x128xf32>
    %284 = arith.addf %282, %283 : vector<8x128xf32>
    %285 = math.tanh %284 : vector<8x128xf32>
    %286 = arith.mulf %281, %285 : vector<8x128xf32>
    %287 = tpu.concatenate %286, %253 in 1 : vector<8x128xf32>, vector<8x128xf32> -> vector<8x256xf32>
    %cst_50 = arith.constant dense<0.000000e+00> : vector<8x512xf32>
    %288 = tpu.matmul %287, %1, %cst_50 {dimension_numbers = #tpu.dot_dimension_numbers<[1], [0], [0], [1], [0, 0, 1, 1], [], []>} : vector<8x256xf32>, vector<256x512xf32>, vector<8x512xf32> -> vector<8x512xf32>
    %289 = vector.broadcast %2 : vector<1x512xf32> to vector<8x512xf32>
    %290 = arith.addf %288, %289 : vector<8x512xf32>
    %291 = vector.extract_strided_slice %290 {offsets = [0, 0], sizes = [8, 128], strides = [1, 1]} : vector<8x512xf32> to vector<8x128xf32>
    %292 = arith.negf %291 : vector<8x128xf32>
    %293 = math.exp %292 : vector<8x128xf32>
    %cst_51 = arith.constant 1.000000e+00 : f32
    %294 = vector.broadcast %cst_51 : f32 to vector<8x128xf32>
    %295 = arith.addf %294, %293 : vector<8x128xf32>
    %296 = arith.divf %294, %295 : vector<8x128xf32>
    %297 = vector.extract_strided_slice %290 {offsets = [0, 128], sizes = [8, 128], strides = [1, 1]} : vector<8x512xf32> to vector<8x128xf32>
    %298 = arith.negf %297 : vector<8x128xf32>
    %299 = math.exp %298 : vector<8x128xf32>
    %cst_52 = arith.constant 1.000000e+00 : f32
    %300 = vector.broadcast %cst_52 : f32 to vector<8x128xf32>
    %301 = arith.addf %300, %299 : vector<8x128xf32>
    %302 = arith.divf %300, %301 : vector<8x128xf32>
    %303 = vector.extract_strided_slice %290 {offsets = [0, 256], sizes = [8, 128], strides = [1, 1]} : vector<8x512xf32> to vector<8x128xf32>
    %304 = math.tanh %303 : vector<8x128xf32>
    %305 = vector.extract_strided_slice %290 {offsets = [0, 384], sizes = [8, 128], strides = [1, 1]} : vector<8x512xf32> to vector<8x128xf32>
    %306 = arith.negf %305 : vector<8x128xf32>
    %307 = math.exp %306 : vector<8x128xf32>
    %cst_53 = arith.constant 1.000000e+00 : f32
    %308 = vector.broadcast %cst_53 : f32 to vector<8x128xf32>
    %309 = arith.addf %308, %307 : vector<8x128xf32>
    %310 = arith.divf %308, %309 : vector<8x128xf32>
    %311 = arith.mulf %302, %251 : vector<8x128xf32>
    %312 = arith.mulf %296, %304 : vector<8x128xf32>
    %313 = arith.addf %311, %312 : vector<8x128xf32>
    %314 = math.tanh %313 : vector<8x128xf32>
    %315 = arith.mulf %310, %314 : vector<8x128xf32>
    %c4_i32 = arith.constant 4 : i32
    %316 = vector.broadcast %c4_i32 : i32 to vector<8x1xi32>
    %317 = arith.cmpi eq, %3, %316 : vector<8x1xi32>
    %318 = vector.shape_cast %317 : vector<8x1xi1> to vector<8x1xi1>
    %319 = vector.broadcast %318 : vector<8x1xi1> to vector<8x128xi1>
    %320 = arith.select %319, %315, %258 : vector<8x128xi1>, vector<8x128xf32>
    %321 = vector.extract_strided_slice %9 {offsets = [40, 0], sizes = [8, 512], strides = [1, 1]} : vector<64x512xf32> to vector<8x512xf32>
    %cst_54 = arith.constant dense<0.000000e+00> : vector<8x512xf32>
    %322 = tpu.matmul %286, %0, %cst_54 {dimension_numbers = #tpu.dot_dimension_numbers<[1], [0], [0], [1], [0, 0, 1, 1], [], []>} : vector<8x128xf32>, vector<128x512xf32>, vector<8x512xf32> -> vector<8x512xf32>
    %323 = arith.addf %321, %322 : vector<8x512xf32>
    %324 = vector.extract_strided_slice %323 {offsets = [0, 0], sizes = [8, 128], strides = [1, 1]} : vector<8x512xf32> to vector<8x128xf32>
    %325 = arith.negf %324 : vector<8x128xf32>
    %326 = math.exp %325 : vector<8x128xf32>
    %cst_55 = arith.constant 1.000000e+00 : f32
    %327 = vector.broadcast %cst_55 : f32 to vector<8x128xf32>
    %328 = arith.addf %327, %326 : vector<8x128xf32>
    %329 = arith.divf %327, %328 : vector<8x128xf32>
    %330 = vector.extract_strided_slice %323 {offsets = [0, 128], sizes = [8, 128], strides = [1, 1]} : vector<8x512xf32> to vector<8x128xf32>
    %331 = arith.negf %330 : vector<8x128xf32>
    %332 = math.exp %331 : vector<8x128xf32>
    %cst_56 = arith.constant 1.000000e+00 : f32
    %333 = vector.broadcast %cst_56 : f32 to vector<8x128xf32>
    %334 = arith.addf %333, %332 : vector<8x128xf32>
    %335 = arith.divf %333, %334 : vector<8x128xf32>
    %336 = vector.extract_strided_slice %323 {offsets = [0, 256], sizes = [8, 128], strides = [1, 1]} : vector<8x512xf32> to vector<8x128xf32>
    %337 = math.tanh %336 : vector<8x128xf32>
    %338 = vector.extract_strided_slice %323 {offsets = [0, 384], sizes = [8, 128], strides = [1, 1]} : vector<8x512xf32> to vector<8x128xf32>
    %339 = arith.negf %338 : vector<8x128xf32>
    %340 = math.exp %339 : vector<8x128xf32>
    %cst_57 = arith.constant 1.000000e+00 : f32
    %341 = vector.broadcast %cst_57 : f32 to vector<8x128xf32>
    %342 = arith.addf %341, %340 : vector<8x128xf32>
    %343 = arith.divf %341, %342 : vector<8x128xf32>
    %344 = arith.mulf %335, %284 : vector<8x128xf32>
    %345 = arith.mulf %329, %337 : vector<8x128xf32>
    %346 = arith.addf %344, %345 : vector<8x128xf32>
    %347 = math.tanh %346 : vector<8x128xf32>
    %348 = arith.mulf %343, %347 : vector<8x128xf32>
    %349 = tpu.concatenate %348, %315 in 1 : vector<8x128xf32>, vector<8x128xf32> -> vector<8x256xf32>
    %cst_58 = arith.constant dense<0.000000e+00> : vector<8x512xf32>
    %350 = tpu.matmul %349, %1, %cst_58 {dimension_numbers = #tpu.dot_dimension_numbers<[1], [0], [0], [1], [0, 0, 1, 1], [], []>} : vector<8x256xf32>, vector<256x512xf32>, vector<8x512xf32> -> vector<8x512xf32>
    %351 = vector.broadcast %2 : vector<1x512xf32> to vector<8x512xf32>
    %352 = arith.addf %350, %351 : vector<8x512xf32>
    %353 = vector.extract_strided_slice %352 {offsets = [0, 0], sizes = [8, 128], strides = [1, 1]} : vector<8x512xf32> to vector<8x128xf32>
    %354 = arith.negf %353 : vector<8x128xf32>
    %355 = math.exp %354 : vector<8x128xf32>
    %cst_59 = arith.constant 1.000000e+00 : f32
    %356 = vector.broadcast %cst_59 : f32 to vector<8x128xf32>
    %357 = arith.addf %356, %355 : vector<8x128xf32>
    %358 = arith.divf %356, %357 : vector<8x128xf32>
    %359 = vector.extract_strided_slice %352 {offsets = [0, 128], sizes = [8, 128], strides = [1, 1]} : vector<8x512xf32> to vector<8x128xf32>
    %360 = arith.negf %359 : vector<8x128xf32>
    %361 = math.exp %360 : vector<8x128xf32>
    %cst_60 = arith.constant 1.000000e+00 : f32
    %362 = vector.broadcast %cst_60 : f32 to vector<8x128xf32>
    %363 = arith.addf %362, %361 : vector<8x128xf32>
    %364 = arith.divf %362, %363 : vector<8x128xf32>
    %365 = vector.extract_strided_slice %352 {offsets = [0, 256], sizes = [8, 128], strides = [1, 1]} : vector<8x512xf32> to vector<8x128xf32>
    %366 = math.tanh %365 : vector<8x128xf32>
    %367 = vector.extract_strided_slice %352 {offsets = [0, 384], sizes = [8, 128], strides = [1, 1]} : vector<8x512xf32> to vector<8x128xf32>
    %368 = arith.negf %367 : vector<8x128xf32>
    %369 = math.exp %368 : vector<8x128xf32>
    %cst_61 = arith.constant 1.000000e+00 : f32
    %370 = vector.broadcast %cst_61 : f32 to vector<8x128xf32>
    %371 = arith.addf %370, %369 : vector<8x128xf32>
    %372 = arith.divf %370, %371 : vector<8x128xf32>
    %373 = arith.mulf %364, %313 : vector<8x128xf32>
    %374 = arith.mulf %358, %366 : vector<8x128xf32>
    %375 = arith.addf %373, %374 : vector<8x128xf32>
    %376 = math.tanh %375 : vector<8x128xf32>
    %377 = arith.mulf %372, %376 : vector<8x128xf32>
    %c5_i32 = arith.constant 5 : i32
    %378 = vector.broadcast %c5_i32 : i32 to vector<8x1xi32>
    %379 = arith.cmpi eq, %3, %378 : vector<8x1xi32>
    %380 = vector.shape_cast %379 : vector<8x1xi1> to vector<8x1xi1>
    %381 = vector.broadcast %380 : vector<8x1xi1> to vector<8x128xi1>
    %382 = arith.select %381, %377, %320 : vector<8x128xi1>, vector<8x128xf32>
    %383 = vector.extract_strided_slice %9 {offsets = [48, 0], sizes = [8, 512], strides = [1, 1]} : vector<64x512xf32> to vector<8x512xf32>
    %cst_62 = arith.constant dense<0.000000e+00> : vector<8x512xf32>
    %384 = tpu.matmul %348, %0, %cst_62 {dimension_numbers = #tpu.dot_dimension_numbers<[1], [0], [0], [1], [0, 0, 1, 1], [], []>} : vector<8x128xf32>, vector<128x512xf32>, vector<8x512xf32> -> vector<8x512xf32>
    %385 = arith.addf %383, %384 : vector<8x512xf32>
    %386 = vector.extract_strided_slice %385 {offsets = [0, 0], sizes = [8, 128], strides = [1, 1]} : vector<8x512xf32> to vector<8x128xf32>
    %387 = arith.negf %386 : vector<8x128xf32>
    %388 = math.exp %387 : vector<8x128xf32>
    %cst_63 = arith.constant 1.000000e+00 : f32
    %389 = vector.broadcast %cst_63 : f32 to vector<8x128xf32>
    %390 = arith.addf %389, %388 : vector<8x128xf32>
    %391 = arith.divf %389, %390 : vector<8x128xf32>
    %392 = vector.extract_strided_slice %385 {offsets = [0, 128], sizes = [8, 128], strides = [1, 1]} : vector<8x512xf32> to vector<8x128xf32>
    %393 = arith.negf %392 : vector<8x128xf32>
    %394 = math.exp %393 : vector<8x128xf32>
    %cst_64 = arith.constant 1.000000e+00 : f32
    %395 = vector.broadcast %cst_64 : f32 to vector<8x128xf32>
    %396 = arith.addf %395, %394 : vector<8x128xf32>
    %397 = arith.divf %395, %396 : vector<8x128xf32>
    %398 = vector.extract_strided_slice %385 {offsets = [0, 256], sizes = [8, 128], strides = [1, 1]} : vector<8x512xf32> to vector<8x128xf32>
    %399 = math.tanh %398 : vector<8x128xf32>
    %400 = vector.extract_strided_slice %385 {offsets = [0, 384], sizes = [8, 128], strides = [1, 1]} : vector<8x512xf32> to vector<8x128xf32>
    %401 = arith.negf %400 : vector<8x128xf32>
    %402 = math.exp %401 : vector<8x128xf32>
    %cst_65 = arith.constant 1.000000e+00 : f32
    %403 = vector.broadcast %cst_65 : f32 to vector<8x128xf32>
    %404 = arith.addf %403, %402 : vector<8x128xf32>
    %405 = arith.divf %403, %404 : vector<8x128xf32>
    %406 = arith.mulf %397, %346 : vector<8x128xf32>
    %407 = arith.mulf %391, %399 : vector<8x128xf32>
    %408 = arith.addf %406, %407 : vector<8x128xf32>
    %409 = math.tanh %408 : vector<8x128xf32>
    %410 = arith.mulf %405, %409 : vector<8x128xf32>
    %411 = tpu.concatenate %410, %377 in 1 : vector<8x128xf32>, vector<8x128xf32> -> vector<8x256xf32>
    %cst_66 = arith.constant dense<0.000000e+00> : vector<8x512xf32>
    %412 = tpu.matmul %411, %1, %cst_66 {dimension_numbers = #tpu.dot_dimension_numbers<[1], [0], [0], [1], [0, 0, 1, 1], [], []>} : vector<8x256xf32>, vector<256x512xf32>, vector<8x512xf32> -> vector<8x512xf32>
    %413 = vector.broadcast %2 : vector<1x512xf32> to vector<8x512xf32>
    %414 = arith.addf %412, %413 : vector<8x512xf32>
    %415 = vector.extract_strided_slice %414 {offsets = [0, 0], sizes = [8, 128], strides = [1, 1]} : vector<8x512xf32> to vector<8x128xf32>
    %416 = arith.negf %415 : vector<8x128xf32>
    %417 = math.exp %416 : vector<8x128xf32>
    %cst_67 = arith.constant 1.000000e+00 : f32
    %418 = vector.broadcast %cst_67 : f32 to vector<8x128xf32>
    %419 = arith.addf %418, %417 : vector<8x128xf32>
    %420 = arith.divf %418, %419 : vector<8x128xf32>
    %421 = vector.extract_strided_slice %414 {offsets = [0, 128], sizes = [8, 128], strides = [1, 1]} : vector<8x512xf32> to vector<8x128xf32>
    %422 = arith.negf %421 : vector<8x128xf32>
    %423 = math.exp %422 : vector<8x128xf32>
    %cst_68 = arith.constant 1.000000e+00 : f32
    %424 = vector.broadcast %cst_68 : f32 to vector<8x128xf32>
    %425 = arith.addf %424, %423 : vector<8x128xf32>
    %426 = arith.divf %424, %425 : vector<8x128xf32>
    %427 = vector.extract_strided_slice %414 {offsets = [0, 256], sizes = [8, 128], strides = [1, 1]} : vector<8x512xf32> to vector<8x128xf32>
    %428 = math.tanh %427 : vector<8x128xf32>
    %429 = vector.extract_strided_slice %414 {offsets = [0, 384], sizes = [8, 128], strides = [1, 1]} : vector<8x512xf32> to vector<8x128xf32>
    %430 = arith.negf %429 : vector<8x128xf32>
    %431 = math.exp %430 : vector<8x128xf32>
    %cst_69 = arith.constant 1.000000e+00 : f32
    %432 = vector.broadcast %cst_69 : f32 to vector<8x128xf32>
    %433 = arith.addf %432, %431 : vector<8x128xf32>
    %434 = arith.divf %432, %433 : vector<8x128xf32>
    %435 = arith.mulf %426, %375 : vector<8x128xf32>
    %436 = arith.mulf %420, %428 : vector<8x128xf32>
    %437 = arith.addf %435, %436 : vector<8x128xf32>
    %438 = math.tanh %437 : vector<8x128xf32>
    %439 = arith.mulf %434, %438 : vector<8x128xf32>
    %c6_i32 = arith.constant 6 : i32
    %440 = vector.broadcast %c6_i32 : i32 to vector<8x1xi32>
    %441 = arith.cmpi eq, %3, %440 : vector<8x1xi32>
    %442 = vector.shape_cast %441 : vector<8x1xi1> to vector<8x1xi1>
    %443 = vector.broadcast %442 : vector<8x1xi1> to vector<8x128xi1>
    %444 = arith.select %443, %439, %382 : vector<8x128xi1>, vector<8x128xf32>
    %445 = vector.extract_strided_slice %9 {offsets = [56, 0], sizes = [8, 512], strides = [1, 1]} : vector<64x512xf32> to vector<8x512xf32>
    %cst_70 = arith.constant dense<0.000000e+00> : vector<8x512xf32>
    %446 = tpu.matmul %410, %0, %cst_70 {dimension_numbers = #tpu.dot_dimension_numbers<[1], [0], [0], [1], [0, 0, 1, 1], [], []>} : vector<8x128xf32>, vector<128x512xf32>, vector<8x512xf32> -> vector<8x512xf32>
    %447 = arith.addf %445, %446 : vector<8x512xf32>
    %448 = vector.extract_strided_slice %447 {offsets = [0, 0], sizes = [8, 128], strides = [1, 1]} : vector<8x512xf32> to vector<8x128xf32>
    %449 = arith.negf %448 : vector<8x128xf32>
    %450 = math.exp %449 : vector<8x128xf32>
    %cst_71 = arith.constant 1.000000e+00 : f32
    %451 = vector.broadcast %cst_71 : f32 to vector<8x128xf32>
    %452 = arith.addf %451, %450 : vector<8x128xf32>
    %453 = arith.divf %451, %452 : vector<8x128xf32>
    %454 = vector.extract_strided_slice %447 {offsets = [0, 128], sizes = [8, 128], strides = [1, 1]} : vector<8x512xf32> to vector<8x128xf32>
    %455 = arith.negf %454 : vector<8x128xf32>
    %456 = math.exp %455 : vector<8x128xf32>
    %cst_72 = arith.constant 1.000000e+00 : f32
    %457 = vector.broadcast %cst_72 : f32 to vector<8x128xf32>
    %458 = arith.addf %457, %456 : vector<8x128xf32>
    %459 = arith.divf %457, %458 : vector<8x128xf32>
    %460 = vector.extract_strided_slice %447 {offsets = [0, 256], sizes = [8, 128], strides = [1, 1]} : vector<8x512xf32> to vector<8x128xf32>
    %461 = math.tanh %460 : vector<8x128xf32>
    %462 = vector.extract_strided_slice %447 {offsets = [0, 384], sizes = [8, 128], strides = [1, 1]} : vector<8x512xf32> to vector<8x128xf32>
    %463 = arith.negf %462 : vector<8x128xf32>
    %464 = math.exp %463 : vector<8x128xf32>
    %cst_73 = arith.constant 1.000000e+00 : f32
    %465 = vector.broadcast %cst_73 : f32 to vector<8x128xf32>
    %466 = arith.addf %465, %464 : vector<8x128xf32>
    %467 = arith.divf %465, %466 : vector<8x128xf32>
    %468 = arith.mulf %459, %408 : vector<8x128xf32>
    %469 = arith.mulf %453, %461 : vector<8x128xf32>
    %470 = arith.addf %468, %469 : vector<8x128xf32>
    %471 = math.tanh %470 : vector<8x128xf32>
    %472 = arith.mulf %467, %471 : vector<8x128xf32>
    %473 = tpu.concatenate %472, %439 in 1 : vector<8x128xf32>, vector<8x128xf32> -> vector<8x256xf32>
    %cst_74 = arith.constant dense<0.000000e+00> : vector<8x512xf32>
    %474 = tpu.matmul %473, %1, %cst_74 {dimension_numbers = #tpu.dot_dimension_numbers<[1], [0], [0], [1], [0, 0, 1, 1], [], []>} : vector<8x256xf32>, vector<256x512xf32>, vector<8x512xf32> -> vector<8x512xf32>
    %475 = vector.broadcast %2 : vector<1x512xf32> to vector<8x512xf32>
    %476 = arith.addf %474, %475 : vector<8x512xf32>
    %477 = vector.extract_strided_slice %476 {offsets = [0, 0], sizes = [8, 128], strides = [1, 1]} : vector<8x512xf32> to vector<8x128xf32>
    %478 = arith.negf %477 : vector<8x128xf32>
    %479 = math.exp %478 : vector<8x128xf32>
    %cst_75 = arith.constant 1.000000e+00 : f32
    %480 = vector.broadcast %cst_75 : f32 to vector<8x128xf32>
    %481 = arith.addf %480, %479 : vector<8x128xf32>
    %482 = arith.divf %480, %481 : vector<8x128xf32>
    %483 = vector.extract_strided_slice %476 {offsets = [0, 128], sizes = [8, 128], strides = [1, 1]} : vector<8x512xf32> to vector<8x128xf32>
    %484 = arith.negf %483 : vector<8x128xf32>
    %485 = math.exp %484 : vector<8x128xf32>
    %cst_76 = arith.constant 1.000000e+00 : f32
    %486 = vector.broadcast %cst_76 : f32 to vector<8x128xf32>
    %487 = arith.addf %486, %485 : vector<8x128xf32>
    %488 = arith.divf %486, %487 : vector<8x128xf32>
    %489 = vector.extract_strided_slice %476 {offsets = [0, 256], sizes = [8, 128], strides = [1, 1]} : vector<8x512xf32> to vector<8x128xf32>
    %490 = math.tanh %489 : vector<8x128xf32>
    %491 = vector.extract_strided_slice %476 {offsets = [0, 384], sizes = [8, 128], strides = [1, 1]} : vector<8x512xf32> to vector<8x128xf32>
    %492 = arith.negf %491 : vector<8x128xf32>
    %493 = math.exp %492 : vector<8x128xf32>
    %cst_77 = arith.constant 1.000000e+00 : f32
    %494 = vector.broadcast %cst_77 : f32 to vector<8x128xf32>
    %495 = arith.addf %494, %493 : vector<8x128xf32>
    %496 = arith.divf %494, %495 : vector<8x128xf32>
    %497 = arith.mulf %488, %437 : vector<8x128xf32>
    %498 = arith.mulf %482, %490 : vector<8x128xf32>
    %499 = arith.addf %497, %498 : vector<8x128xf32>
    %500 = math.tanh %499 : vector<8x128xf32>
    %501 = arith.mulf %496, %500 : vector<8x128xf32>
    %c7_i32 = arith.constant 7 : i32
    %502 = vector.broadcast %c7_i32 : i32 to vector<8x1xi32>
    %503 = arith.cmpi eq, %3, %502 : vector<8x1xi32>
    %504 = vector.shape_cast %503 : vector<8x1xi1> to vector<8x1xi1>
    %505 = vector.broadcast %504 : vector<8x1xi1> to vector<8x128xi1>
    %506 = arith.select %505, %501, %444 : vector<8x128xi1>, vector<8x128xf32>
    %c0_78 = arith.constant 0 : index
    %c0_79 = arith.constant 0 : index
    %507 = vector.load %arg7[%c0_78, %c0_79] : memref<128x256xf32, #tpu.memory_space<vmem>>, vector<128x256xf32>
    %cst_80 = arith.constant dense<0.000000e+00> : vector<8x256xf32>
    %508 = tpu.matmul %506, %507, %cst_80 {dimension_numbers = #tpu.dot_dimension_numbers<[1], [0], [0], [1], [0, 0, 1, 1], [], []>} : vector<8x128xf32>, vector<128x256xf32>, vector<8x256xf32> -> vector<8x256xf32>
    %c0_81 = arith.constant 0 : index
    %c0_82 = arith.constant 0 : index
    %509 = vector.load %arg8[%c0_81, %c0_82] : memref<1x256xf32, #tpu.memory_space<vmem>>, vector<1x256xf32>
    %510 = vector.broadcast %509 : vector<1x256xf32> to vector<8x256xf32>
    %511 = arith.addf %508, %510 : vector<8x256xf32>
    %cst_83 = arith.constant 0.000000e+00 : f32
    %512 = vector.broadcast %cst_83 : f32 to vector<8x256xf32>
    %513 = arith.maximumf %511, %512 : vector<8x256xf32>
    %c0_84 = arith.constant 0 : index
    %c0_85 = arith.constant 0 : index
    %514 = vector.load %arg9[%c0_84, %c0_85] : memref<256x128xf32, #tpu.memory_space<vmem>>, vector<256x128xf32>
    %cst_86 = arith.constant dense<0.000000e+00> : vector<8x128xf32>
    %515 = tpu.matmul %513, %514, %cst_86 {dimension_numbers = #tpu.dot_dimension_numbers<[1], [0], [0], [1], [0, 0, 1, 1], [], []>} : vector<8x256xf32>, vector<256x128xf32>, vector<8x128xf32> -> vector<8x128xf32>
    %c0_87 = arith.constant 0 : index
    %c0_88 = arith.constant 0 : index
    %516 = vector.load %arg10[%c0_87, %c0_88] : memref<1x128xf32, #tpu.memory_space<vmem>>, vector<1x128xf32>
    %517 = vector.broadcast %516 : vector<1x128xf32> to vector<8x128xf32>
    %518 = arith.addf %515, %517 : vector<8x128xf32>
    %cst_89 = arith.constant 0.000000e+00 : f32
    %519 = vector.broadcast %cst_89 : f32 to vector<8x128xf32>
    %520 = arith.maximumf %518, %519 : vector<8x128xf32>
    %c0_90 = arith.constant 0 : index
    %c0_91 = arith.constant 0 : index
    %521 = vector.load %arg11[%c0_90, %c0_91] : memref<128x256xf32, #tpu.memory_space<vmem>>, vector<128x256xf32>
    %cst_92 = arith.constant dense<0.000000e+00> : vector<8x256xf32>
    %522 = tpu.matmul %520, %521, %cst_92 {dimension_numbers = #tpu.dot_dimension_numbers<[1], [0], [0], [1], [0, 0, 1, 1], [], []>} : vector<8x128xf32>, vector<128x256xf32>, vector<8x256xf32> -> vector<8x256xf32>
    %c0_93 = arith.constant 0 : index
    %c0_94 = arith.constant 0 : index
    %523 = vector.load %arg12[%c0_93, %c0_94] : memref<8x256xf32, #tpu.memory_space<vmem>>, vector<8x256xf32>
    %524 = arith.addf %522, %523 : vector<8x256xf32>
    %c0_95 = arith.constant 0 : index
    %c0_96 = arith.constant 0 : index
    %525 = vector.load %arg13[%c0_95, %c0_96] : memref<8x256xf32, #tpu.memory_space<vmem>>, vector<8x256xf32>
    tpu.vector_store %arg13[%c0_95, %c0_96], %524 {strides = array<i32>} : memref<8x256xf32, #tpu.memory_space<vmem>>, vector<8x256xf32>,
    return
  }
}

</mosaic_0001>

<llo_original>
// kernel: tpu_custom_call.1
$region0: #{tpu_custom_call.1}
  #allocation0 [shape = 'u32[]', space=smem, size = 0x4, offset = 0x4, fixed_abs, tag = 'smem constant byte address 0x4 - core index']
  #allocation1 [shape = 'u32[72,128]{1,0:T(1,128)}', space=vmem, size = 0x9000, scoped, tag = 'internal scratch']
  %s0 = inlined_call_operand.hbm [shape: f32[64,128], index: 0, kind: input, shape index: {}]
  %s1 = inlined_call_operand.vmem [shape: s32[8,1], index: 1, kind: input, shape index: {}]
  %s2 = inlined_call_operand.hbm [shape: f32[128,512], index: 2, kind: input, shape index: {}]
  %s3 = inlined_call_operand.vmem [shape: f32[1,512], index: 3, kind: input, shape index: {}]
  %s4 = inlined_call_operand.hbm [shape: f32[128,512], index: 4, kind: input, shape index: {}]
  %s5 = inlined_call_operand.hbm [shape: f32[256,512], index: 5, kind: input, shape index: {}]
  %s6 = inlined_call_operand.hbm [shape: f32[1,512], index: 6, kind: input, shape index: {}]
  %s7 = inlined_call_operand.hbm [shape: f32[128,256], index: 7, kind: input, shape index: {}]
  %s8 = inlined_call_operand.hbm [shape: f32[1,256], index: 8, kind: input, shape index: {}]
  %s9 = inlined_call_operand.hbm [shape: f32[256,128], index: 9, kind: input, shape index: {}]
  %s10 = inlined_call_operand.hbm [shape: f32[1,128], index: 10, kind: input, shape index: {}]
  %s11 = inlined_call_operand.hbm [shape: f32[128,256], index: 11, kind: input, shape index: {}]
  %s12 = inlined_call_operand.vmem [shape: f32[8,256], index: 12, kind: input, shape index: {}]
  %s13 = inlined_call_operand.hbm [shape: f32[8,256], index: 13, kind: output, shape index: {}]
  %s14 = sld [smem:[#allocation0]]
  $region102: #{tpu_custom_call.1} parent=0
    _
  %s16 = ssub.s32 1, %s14
  %s17 = scalar_select 0, %s16, %s14
  $region1: #{tpu_custom_call.1} parent=0
    #allocation2 [shape = 'u8[32768]{0}', space=vmem, size = 0x8000, scoped, tag = 'input window, operand 0, single buffered']
    #allocation3 [shape = 's32[1]{0}', space=sflag, size = 0x4, scoped, tag = 'scoped memory for tpu_custom_call.1']
    #allocation4 [shape = 's32[1]{0}', space=sflag, size = 0x4, scoped, tag = 'scoped memory for tpu_custom_call.1']
    #allocation5 [shape = 'u8[262144]{0}', space=vmem, size = 0x40000, scoped, tag = 'input window, operand 2, single buffered']
    #allocation6 [shape = 's32[1]{0}', space=sflag, size = 0x4, scoped, tag = 'scoped memory for tpu_custom_call.1']
    #allocation7 [shape = 'u8[262144]{0}', space=vmem, size = 0x40000, scoped, tag = 'input window, operand 4, single buffered']
    #allocation8 [shape = 'u8[524288]{0}', space=vmem, size = 0x80000, scoped, tag = 'input window, operand 5, single buffered']
    #allocation9 [shape = 's32[1]{0}', space=sflag, size = 0x4, scoped, tag = 'scoped memory for tpu_custom_call.1']
    #allocation10 [shape = 'u8[2048]{0}', space=vmem, size = 0x800, scoped, tag = 'input window, operand 6, single buffered']
    #allocation11 [shape = 'u8[131072]{0}', space=vmem, size = 0x20000, scoped, tag = 'input window, operand 7, single buffered']
    #allocation12 [shape = 's32[1]{0}', space=sflag, size = 0x4, scoped, tag = 'scoped memory for tpu_custom_call.1']
    #allocation13 [shape = 'u8[1024]{0}', space=vmem, size = 0x400, scoped, tag = 'input window, operand 8, single buffered']
    #allocation14 [shape = 'u8[131072]{0}', space=vmem, size = 0x20000, scoped, tag = 'input window, operand 9, single buffered']
    #allocation15 [shape = 's32[1]{0}', space=sflag, size = 0x4, scoped, tag = 'scoped memory for tpu_custom_call.1']
    #allocation16 [shape = 'u8[512]{0}', space=vmem, size = 0x400, scoped, tag = 'input window, operand 10, single buffered']
    #allocation17 [shape = 'u8[131072]{0}', space=vmem, size = 0x20000, scoped, tag = 'input window, operand 11, single buffered']
    #allocation18 [shape = 's32[1]{0}', space=sflag, size = 0x4, scoped, tag = 'scoped memory for tpu_custom_call.1']
    #allocation19 [shape = 'u8[8192]{0}', space=vmem, size = 0x2000, scoped, tag = 'output window, operand 0, single buffered']
    %18 = vsyncpa [#allocation3], 0
    %19 = vsyncpa [#allocation6], 0
    %20 = vsyncpa [#allocation9], 0
    %21 = vsyncpa [#allocation12], 0
    %22 = vsyncpa [#allocation15], 0
    %23 = vsyncpa [#allocation18], 0
    %24 = vsyncpa [#allocation4], 0
    // Predicated region
    $region2: #{tpu_custom_call.1} parent=1 // pred_check
      _
    $region3: #{tpu_custom_call.1} parent=1 // pred_check_branch
      %26 = sbr.rel (0) target = $region5
    $region4: #{tpu_custom_call.1} parent=1 // pred_region
      %28 = vsyncadd [#allocation3], 0
      %s29 = sshll.u32 %s0, 4
      %s30 = int_to_ptr.hbm [resolvable:$true] %s29
      %s31 = sshll.u32 [#allocation2], 4
      %s32 = int_to_ptr.vmem [resolvable:$true] %s31
      %37 = dma.hbm_to_vmem [thread:$0]  %s30, 1024, %s32, [#allocation3], 128, 128, 8
    $region5: #{tpu_custom_call.1} parent=1 // pred_fallthru
      _
    // Predicated region
    $region6: #{tpu_custom_call.1} parent=1 // pred_check
      _
    $region7: #{tpu_custom_call.1} parent=1 // pred_check_branch
      %39 = sbr.rel (0) target = $region9
    $region8: #{tpu_custom_call.1} parent=1 // pred_region
      _
    $region9: #{tpu_custom_call.1} parent=1 // pred_fallthru
      _
    // Predicated region
    $region10: #{tpu_custom_call.1} parent=1 // pred_check
      _
    $region11: #{tpu_custom_call.1} parent=1 // pred_check_branch
      %41 = sbr.rel (0) target = $region13
    $region12: #{tpu_custom_call.1} parent=1 // pred_region
      %43 = vsyncadd [#allocation6], 0
      %s44 = sshll.u32 %s2, 4
      %s45 = int_to_ptr.hbm [resolvable:$true] %s44
      %s46 = sshll.u32 [#allocation5], 4
      %s47 = int_to_ptr.vmem [resolvable:$true] %s46
      %52 = dma.hbm_to_vmem [thread:$0]  %s45, 8192, %s47, [#allocation6], 512, 512, 32
    $region13: #{tpu_custom_call.1} parent=1 // pred_fallthru
      _
    // Predicated region
    $region14: #{tpu_custom_call.1} parent=1 // pred_check
      _
    $region15: #{tpu_custom_call.1} parent=1 // pred_check_branch
      %54 = sbr.rel (0) target = $region17
    $region16: #{tpu_custom_call.1} parent=1 // pred_region
      _
    $region17: #{tpu_custom_call.1} parent=1 // pred_fallthru
      _
    // Predicated region
    $region18: #{tpu_custom_call.1} parent=1 // pred_check
      _
    $region19: #{tpu_custom_call.1} parent=1 // pred_check_branch
      %56 = sbr.rel (0) target = $region21
    $region20: #{tpu_custom_call.1} parent=1 // pred_region
      %58 = vsyncadd [#allocation6], 0
      %s59 = sshll.u32 %s4, 4
      %s60 = int_to_ptr.hbm [resolvable:$true] %s59
      %s61 = sshll.u32 [#allocation7], 4
      %s62 = int_to_ptr.vmem [resolvable:$true] %s61
      %67 = dma.hbm_to_vmem [thread:$0]  %s60, 8192, %s62, [#allocation6], 512, 512, 32
    $region21: #{tpu_custom_call.1} parent=1 // pred_fallthru
      _
    // Predicated region
    $region22: #{tpu_custom_call.1} parent=1 // pred_check
      _
    $region23: #{tpu_custom_call.1} parent=1 // pred_check_branch
      %69 = sbr.rel (0) target = $region25
    $region24: #{tpu_custom_call.1} parent=1 // pred_region
      %71 = vsyncadd [#allocation9], 0
      %s72 = sshll.u32 %s5, 4
      %s73 = int_to_ptr.hbm [resolvable:$true] %s72
      %s74 = sshll.u32 [#allocation8], 4
      %s75 = int_to_ptr.vmem [resolvable:$true] %s74
      %80 = dma.hbm_to_vmem [thread:$0]  %s73, 16384, %s75, [#allocation9], 512, 512, 32
    $region25: #{tpu_custom_call.1} parent=1 // pred_fallthru
      _
    // Predicated region
    $region26: #{tpu_custom_call.1} parent=1 // pred_check
      _
    $region27: #{tpu_custom_call.1} parent=1 // pred_check_branch
      %82 = sbr.rel (0) target = $region29
    $region28: #{tpu_custom_call.1} parent=1 // pred_region
      %84 = vsyncadd [#allocation9], 0
      %s86 = sshll.u32 %s6, 4
      %s87 = int_to_ptr.hbm [resolvable:$true] %s86
      %s88 = sshll.u32 [#allocation10], 4
      %s89 = int_to_ptr.vmem [resolvable:$true] %s88
      %91 = dma.hbm_to_vmem [thread:$0]  %s87, 64, %s89, [#allocation9]
    $region29: #{tpu_custom_call.1} parent=1 // pred_fallthru
      _
    // Predicated region
    $region30: #{tpu_custom_call.1} parent=1 // pred_check
      _
    $region31: #{tpu_custom_call.1} parent=1 // pred_check_branch
      %93 = sbr.rel (0) target = $region33
    $region32: #{tpu_custom_call.1} parent=1 // pred_region
      %95 = vsyncadd [#allocation12], 0
      %s96 = sshll.u32 %s7, 4
      %s97 = int_to_ptr.hbm [resolvable:$true] %s96
      %s98 = sshll.u32 [#allocation11], 4
      %s99 = int_to_ptr.vmem [resolvable:$true] %s98
      %104 = dma.hbm_to_vmem [thread:$0]  %s97, 4096, %s99, [#allocation12], 256, 256, 16
    $region33: #{tpu_custom_call.1} parent=1 // pred_fallthru
      _
    // Predicated region
    $region34: #{tpu_custom_call.1} parent=1 // pred_check
      _
    $region35: #{tpu_custom_call.1} parent=1 // pred_check_branch
      %106 = sbr.rel (0) target = $region37
    $region36: #{tpu_custom_call.1} parent=1 // pred_region
      %108 = vsyncadd [#allocation12], 0
      %s110 = sshll.u32 %s8, 4
      %s111 = int_to_ptr.hbm [resolvable:$true] %s110
      %s112 = sshll.u32 [#allocation13], 4
      %s113 = int_to_ptr.vmem [resolvable:$true] %s112
      %115 = dma.hbm_to_vmem [thread:$0]  %s111, 32, %s113, [#allocation12]
    $region37: #{tpu_custom_call.1} parent=1 // pred_fallthru
      _
    // Predicated region
    $region38: #{tpu_custom_call.1} parent=1 // pred_check
      _
    $region39: #{tpu_custom_call.1} parent=1 // pred_check_branch
      %117 = sbr.rel (0) target = $region41
    $region40: #{tpu_custom_call.1} parent=1 // pred_region
      %119 = vsyncadd [#allocation15], 0
      %s120 = sshll.u32 %s9, 4
      %s121 = int_to_ptr.hbm [resolvable:$true] %s120
      %s122 = sshll.u32 [#allocation14], 4
      %s123 = int_to_ptr.vmem [resolvable:$true] %s122
      %128 = dma.hbm_to_vmem [thread:$0]  %s121, 4096, %s123, [#allocation15], 128, 128, 8
    $region41: #{tpu_custom_call.1} parent=1 // pred_fallthru
      _
    // Predicated region
    $region42: #{tpu_custom_call.1} parent=1 // pred_check
      _
    $region43: #{tpu_custom_call.1} parent=1 // pred_check_branch
      %130 = sbr.rel (0) target = $region45
    $region44: #{tpu_custom_call.1} parent=1 // pred_region
      %132 = vsyncadd [#allocation15], 0
      %s134 = sshll.u32 %s10, 4
      %s135 = int_to_ptr.hbm [resolvable:$true] %s134
      %s136 = sshll.u32 [#allocation16], 4
      %s137 = int_to_ptr.vmem [resolvable:$true] %s136
      %139 = dma.hbm_to_vmem [thread:$0]  %s135, 16, %s137, [#allocation15]
    $region45: #{tpu_custom_call.1} parent=1 // pred_fallthru
      _
    // Predicated region
    $region46: #{tpu_custom_call.1} parent=1 // pred_check
      _
    $region47: #{tpu_custom_call.1} parent=1 // pred_check_branch
      %141 = sbr.rel (0) target = $region49
    $region48: #{tpu_custom_call.1} parent=1 // pred_region
      %143 = vsyncadd [#allocation18], 0
      %s144 = sshll.u32 %s11, 4
      %s145 = int_to_ptr.hbm [resolvable:$true] %s144
      %s146 = sshll.u32 [#allocation17], 4
      %s147 = int_to_ptr.vmem [resolvable:$true] %s146
      %152 = dma.hbm_to_vmem [thread:$0]  %s145, 4096, %s147, [#allocation18], 256, 256, 16
    $region49: #{tpu_custom_call.1} parent=1 // pred_fallthru
      _
    // Predicated region
    $region50: #{tpu_custom_call.1} parent=1 // pred_check
      _
    $region51: #{tpu_custom_call.1} parent=1 // pred_check_branch
      %154 = sbr.rel (0) target = $region53
    $region52: #{tpu_custom_call.1} parent=1 // pred_region
      _
    $region53: #{tpu_custom_call.1} parent=1 // pred_fallthru
      _
    // Predicated region
    $region54: #{tpu_custom_call.1} parent=1 // pred_check
      _
    $region55: #{tpu_custom_call.1} parent=1 // pred_check_branch
      %156 = sbr.rel (0) target = $region57
    $region56: #{tpu_custom_call.1} parent=1 // pred_region
      %158 = dma.done [#allocation3], 1024
    $region57: #{tpu_custom_call.1} parent=1 // pred_fallthru
      _
    // Predicated region
    $region58: #{tpu_custom_call.1} parent=1 // pred_check
      _
    $region59: #{tpu_custom_call.1} parent=1 // pred_check_branch
      %160 = sbr.rel (0) target = $region61
    $region60: #{tpu_custom_call.1} parent=1 // pred_region
      %162 = dma.done [#allocation6], 8192
    $region61: #{tpu_custom_call.1} parent=1 // pred_fallthru
      _
    // Predicated region
    $region62: #{tpu_custom_call.1} parent=1 // pred_check
      _
    $region63: #{tpu_custom_call.1} parent=1 // pred_check_branch
      %164 = sbr.rel (0) target = $region65
    $region64: #{tpu_custom_call.1} parent=1 // pred_region
      %166 = dma.done [#allocation6], 8192
    $region65: #{tpu_custom_call.1} parent=1 // pred_fallthru
      _
    // Predicated region
    $region66: #{tpu_custom_call.1} parent=1 // pred_check
      _
    $region67: #{tpu_custom_call.1} parent=1 // pred_check_branch
      %168 = sbr.rel (0) target = $region69
    $region68: #{tpu_custom_call.1} parent=1 // pred_region
      %170 = dma.done [#allocation9], 16384
    $region69: #{tpu_custom_call.1} parent=1 // pred_fallthru
      _
    // Predicated region
    $region70: #{tpu_custom_call.1} parent=1 // pred_check
      _
    $region71: #{tpu_custom_call.1} parent=1 // pred_check_branch
      %172 = sbr.rel (0) target = $region73
    $region72: #{tpu_custom_call.1} parent=1 // pred_region
      %174 = dma.done [#allocation9], 64
    $region73: #{tpu_custom_call.1} parent=1 // pred_fallthru
      _
    // Predicated region
    $region74: #{tpu_custom_call.1} parent=1 // pred_check
      _
    $region75: #{tpu_custom_call.1} parent=1 // pred_check_branch
      %176 = sbr.rel (0) target = $region77
    $region76: #{tpu_custom_call.1} parent=1 // pred_region
      %178 = dma.done [#allocation12], 4096
    $region77: #{tpu_custom_call.1} parent=1 // pred_fallthru
      _
    // Predicated region
    $region78: #{tpu_custom_call.1} parent=1 // pred_check
      _
    $region79: #{tpu_custom_call.1} parent=1 // pred_check_branch
      %180 = sbr.rel (0) target = $region81
    $region80: #{tpu_custom_call.1} parent=1 // pred_region
      %182 = dma.done [#allocation12], 32
    $region81: #{tpu_custom_call.1} parent=1 // pred_fallthru
      _
    // Predicated region
    $region82: #{tpu_custom_call.1} parent=1 // pred_check
      _
    $region83: #{tpu_custom_call.1} parent=1 // pred_check_branch
      %184 = sbr.rel (0) target = $region85
    $region84: #{tpu_custom_call.1} parent=1 // pred_region
      %186 = dma.done [#allocation15], 4096
    $region85: #{tpu_custom_call.1} parent=1 // pred_fallthru
      _
    // Predicated region
    $region86: #{tpu_custom_call.1} parent=1 // pred_check
      _
    $region87: #{tpu_custom_call.1} parent=1 // pred_check_branch
      %188 = sbr.rel (0) target = $region89
    $region88: #{tpu_custom_call.1} parent=1 // pred_region
      %190 = dma.done [#allocation15], 16
    $region89: #{tpu_custom_call.1} parent=1 // pred_fallthru
      _
    // Predicated region
    $region90: #{tpu_custom_call.1} parent=1 // pred_check
      _
    $region91: #{tpu_custom_call.1} parent=1 // pred_check_branch
      %192 = sbr.rel (0) target = $region93
    $region92: #{tpu_custom_call.1} parent=1 // pred_region
      %194 = dma.done [#allocation18], 4096
    $region93: #{tpu_custom_call.1} parent=1 // pred_fallthru
      _
    %v195 = vld [vmem:[#allocation7] sm:$0xff]
    %v196 = vld [vmem:[#allocation7 + $0x8] sm:$0xff]
    %v197 = vld [vmem:[#allocation7 + $0x10] sm:$0xff]
    %v198 = vld [vmem:[#allocation7 + $0x18] sm:$0xff]
    %v199 = vld [vmem:[#allocation7 + $0x20] sm:$0xff]
    %v200 = vld [vmem:[#allocation7 + $0x28] sm:$0xff]
    %v201 = vld [vmem:[#allocation7 + $0x30] sm:$0xff]
    %v202 = vld [vmem:[#allocation7 + $0x38] sm:$0xff]
    %v203 = vld [vmem:[#allocation7 + $0x40] sm:$0xff]
    %v204 = vld [vmem:[#allocation7 + $0x48] sm:$0xff]
    %v205 = vld [vmem:[#allocation7 + $0x50] sm:$0xff]
    %v206 = vld [vmem:[#allocation7 + $0x58] sm:$0xff]
    %v207 = vld [vmem:[#allocation7 + $0x60] sm:$0xff]
    %v208 = vld [vmem:[#allocation7 + $0x68] sm:$0xff]
    %v209 = vld [vmem:[#allocation7 + $0x70] sm:$0xff]
    %v210 = vld [vmem:[#allocation7 + $0x78] sm:$0xff]
    %v211 = vld [vmem:[#allocation7 + $0x80] sm:$0xff]
    %v212 = vld [vmem:[#allocation7 + $0x88] sm:$0xff]
    %v213 = vld [vmem:[#allocation7 + $0x90] sm:$0xff]
    %v214 = vld [vmem:[#allocation7 + $0x98] sm:$0xff]
    %v215 = vld [vmem:[#allocation7 + $0xa0] sm:$0xff]
    %v216 = vld [vmem:[#allocation7 + $0xa8] sm:$0xff]
    %v217 = vld [vmem:[#allocation7 + $0xb0] sm:$0xff]
    %v218 = vld [vmem:[#allocation7 + $0xb8] sm:$0xff]
    %v219 = vld [vmem:[#allocation7 + $0xc0] sm:$0xff]
    %v220 = vld [vmem:[#allocation7 + $0xc8] sm:$0xff]
    %v221 = vld [vmem:[#allocation7 + $0xd0] sm:$0xff]
    %v222 = vld [vmem:[#allocation7 + $0xd8] sm:$0xff]
    %v223 = vld [vmem:[#allocation7 + $0xe0] sm:$0xff]
    %v224 = vld [vmem:[#allocation7 + $0xe8] sm:$0xff]
    %v225 = vld [vmem:[#allocation7 + $0xf0] sm:$0xff]
    %v226 = vld [vmem:[#allocation7 + $0xf8] sm:$0xff]
    %v227 = vld [vmem:[#allocation7 + $0x100] sm:$0xff]
    %v228 = vld [vmem:[#allocation7 + $0x108] sm:$0xff]
    %v229 = vld [vmem:[#allocation7 + $0x110] sm:$0xff]
    %v230 = vld [vmem:[#allocation7 + $0x118] sm:$0xff]
    %v231 = vld [vmem:[#allocation7 + $0x120] sm:$0xff]
    %v232 = vld [vmem:[#allocation7 + $0x128] sm:$0xff]
    %v233 = vld [vmem:[#allocation7 + $0x130] sm:$0xff]
    %v234 = vld [vmem:[#allocation7 + $0x138] sm:$0xff]
    %v235 = vld [vmem:[#allocation7 + $0x140] sm:$0xff]
    %v236 = vld [vmem:[#allocation7 + $0x148] sm:$0xff]
    %v237 = vld [vmem:[#allocation7 + $0x150] sm:$0xff]
    %v238 = vld [vmem:[#allocation7 + $0x158] sm:$0xff]
    %v239 = vld [vmem:[#allocation7 + $0x160] sm:$0xff]
    %v240 = vld [vmem:[#allocation7 + $0x168] sm:$0xff]
    %v241 = vld [vmem:[#allocation7 + $0x170] sm:$0xff]
    %v242 = vld [vmem:[#allocation7 + $0x178] sm:$0xff]
    %v243 = vld [vmem:[#allocation7 + $0x180] sm:$0xff]
    %v244 = vld [vmem:[#allocation7 + $0x188] sm:$0xff]
    %v245 = vld [vmem:[#allocation7 + $0x190] sm:$0xff]
    %v246 = vld [vmem:[#allocation7 + $0x198] sm:$0xff]
    %v247 = vld [vmem:[#allocation7 + $0x1a0] sm:$0xff]
    %v248 = vld [vmem:[#allocation7 + $0x1a8] sm:$0xff]
    %v249 = vld [vmem:[#allocation7 + $0x1b0] sm:$0xff]
    %v250 = vld [vmem:[#allocation7 + $0x1b8] sm:$0xff]
    %v251 = vld [vmem:[#allocation7 + $0x1c0] sm:$0xff]
    %v252 = vld [vmem:[#allocation7 + $0x1c8] sm:$0xff]
    %v253 = vld [vmem:[#allocation7 + $0x1d0] sm:$0xff]
    %v254 = vld [vmem:[#allocation7 + $0x1d8] sm:$0xff]
    %v255 = vld [vmem:[#allocation7 + $0x1e0] sm:$0xff]
    %v256 = vld [vmem:[#allocation7 + $0x1e8] sm:$0xff]
    %v257 = vld [vmem:[#allocation7 + $0x1f0] sm:$0xff]
    %v258 = vld [vmem:[#allocation7 + $0x1f8] sm:$0xff]
    %v259 = vld [vmem:[#allocation8] sm:$0xff]
    %v260 = vld [vmem:[#allocation8 + $0x8] sm:$0xff]
    %v261 = vld [vmem:[#allocation8 + $0x10] sm:$0xff]
    %v262 = vld [vmem:[#allocation8 + $0x18] sm:$0xff]
    %v263 = vld [vmem:[#allocation8 + $0x20] sm:$0xff]
    %v264 = vld [vmem:[#allocation8 + $0x28] sm:$0xff]
    %v265 = vld [vmem:[#allocation8 + $0x30] sm:$0xff]
    %v266 = vld [vmem:[#allocation8 + $0x38] sm:$0xff]
    %v267 = vld [vmem:[#allocation8 + $0x40] sm:$0xff]
    %v268 = vld [vmem:[#allocation8 + $0x48] sm:$0xff]
    %v269 = vld [vmem:[#allocation8 + $0x50] sm:$0xff]
    %v270 = vld [vmem:[#allocation8 + $0x58] sm:$0xff]
    %v271 = vld [vmem:[#allocation8 + $0x60] sm:$0xff]
    %v272 = vld [vmem:[#allocation8 + $0x68] sm:$0xff]
    %v273 = vld [vmem:[#allocation8 + $0x70] sm:$0xff]
    %v274 = vld [vmem:[#allocation8 + $0x78] sm:$0xff]
    %v275 = vld [vmem:[#allocation8 + $0x80] sm:$0xff]
    %v276 = vld [vmem:[#allocation8 + $0x88] sm:$0xff]
    %v277 = vld [vmem:[#allocation8 + $0x90] sm:$0xff]
    %v278 = vld [vmem:[#allocation8 + $0x98] sm:$0xff]
    %v279 = vld [vmem:[#allocation8 + $0xa0] sm:$0xff]
    %v280 = vld [vmem:[#allocation8 + $0xa8] sm:$0xff]
    %v281 = vld [vmem:[#allocation8 + $0xb0] sm:$0xff]
    %v282 = vld [vmem:[#allocation8 + $0xb8] sm:$0xff]
    %v283 = vld [vmem:[#allocation8 + $0xc0] sm:$0xff]
    %v284 = vld [vmem:[#allocation8 + $0xc8] sm:$0xff]
    %v285 = vld [vmem:[#allocation8 + $0xd0] sm:$0xff]
    %v286 = vld [vmem:[#allocation8 + $0xd8] sm:$0xff]
    %v287 = vld [vmem:[#allocation8 + $0xe0] sm:$0xff]
    %v288 = vld [vmem:[#allocation8 + $0xe8] sm:$0xff]
    %v289 = vld [vmem:[#allocation8 + $0xf0] sm:$0xff]
    %v290 = vld [vmem:[#allocation8 + $0xf8] sm:$0xff]
    %v291 = vld [vmem:[#allocation8 + $0x100] sm:$0xff]
    %v292 = vld [vmem:[#allocation8 + $0x108] sm:$0xff]
    %v293 = vld [vmem:[#allocation8 + $0x110] sm:$0xff]
    %v294 = vld [vmem:[#allocation8 + $0x118] sm:$0xff]
    %v295 = vld [vmem:[#allocation8 + $0x120] sm:$0xff]
    %v296 = vld [vmem:[#allocation8 + $0x128] sm:$0xff]
    %v297 = vld [vmem:[#allocation8 + $0x130] sm:$0xff]
    %v298 = vld [vmem:[#allocation8 + $0x138] sm:$0xff]
    %v299 = vld [vmem:[#allocation8 + $0x140] sm:$0xff]
    %v300 = vld [vmem:[#allocation8 + $0x148] sm:$0xff]
    %v301 = vld [vmem:[#allocation8 + $0x150] sm:$0xff]
    %v302 = vld [vmem:[#allocation8 + $0x158] sm:$0xff]
    %v303 = vld [vmem:[#allocation8 + $0x160] sm:$0xff]
    %v304 = vld [vmem:[#allocation8 + $0x168] sm:$0xff]
    %v305 = vld [vmem:[#allocation8 + $0x170] sm:$0xff]
    %v306 = vld [vmem:[#allocation8 + $0x178] sm:$0xff]
    %v307 = vld [vmem:[#allocation8 + $0x180] sm:$0xff]
    %v308 = vld [vmem:[#allocation8 + $0x188] sm:$0xff]
    %v309 = vld [vmem:[#allocation8 + $0x190] sm:$0xff]
    %v310 = vld [vmem:[#allocation8 + $0x198] sm:$0xff]
    %v311 = vld [vmem:[#allocation8 + $0x1a0] sm:$0xff]
    %v312 = vld [vmem:[#allocation8 + $0x1a8] sm:$0xff]
    %v313 = vld [vmem:[#allocation8 + $0x1b0] sm:$0xff]
    %v314 = vld [vmem:[#allocation8 + $0x1b8] sm:$0xff]
    %v315 = vld [vmem:[#allocation8 + $0x1c0] sm:$0xff]
    %v316 = vld [vmem:[#allocation8 + $0x1c8] sm:$0xff]
    %v317 = vld [vmem:[#allocation8 + $0x1d0] sm:$0xff]
    %v318 = vld [vmem:[#allocation8 + $0x1d8] sm:$0xff]
    %v319 = vld [vmem:[#allocation8 + $0x1e0] sm:$0xff]
    %v320 = vld [vmem:[#allocation8 + $0x1e8] sm:$0xff]
    %v321 = vld [vmem:[#allocation8 + $0x1f0] sm:$0xff]
    %v322 = vld [vmem:[#allocation8 + $0x1f8] sm:$0xff]
    %v323 = vld [vmem:[#allocation8 + $0x200] sm:$0xff]
    %v324 = vld [vmem:[#allocation8 + $0x208] sm:$0xff]
    %v325 = vld [vmem:[#allocation8 + $0x210] sm:$0xff]
    %v326 = vld [vmem:[#allocation8 + $0x218] sm:$0xff]
    %v327 = vld [vmem:[#allocation8 + $0x220] sm:$0xff]
    %v328 = vld [vmem:[#allocation8 + $0x228] sm:$0xff]
    %v329 = vld [vmem:[#allocation8 + $0x230] sm:$0xff]
    %v330 = vld [vmem:[#allocation8 + $0x238] sm:$0xff]
    %v331 = vld [vmem:[#allocation8 + $0x240] sm:$0xff]
    %v332 = vld [vmem:[#allocation8 + $0x248] sm:$0xff]
    %v333 = vld [vmem:[#allocation8 + $0x250] sm:$0xff]
    %v334 = vld [vmem:[#allocation8 + $0x258] sm:$0xff]
    %v335 = vld [vmem:[#allocation8 + $0x260] sm:$0xff]
    %v336 = vld [vmem:[#allocation8 + $0x268] sm:$0xff]
    %v337 = vld [vmem:[#allocation8 + $0x270] sm:$0xff]
    %v338 = vld [vmem:[#allocation8 + $0x278] sm:$0xff]
    %v339 = vld [vmem:[#allocation8 + $0x280] sm:$0xff]
    %v340 = vld [vmem:[#allocation8 + $0x288] sm:$0xff]
    %v341 = vld [vmem:[#allocation8 + $0x290] sm:$0xff]
    %v342 = vld [vmem:[#allocation8 + $0x298] sm:$0xff]
    %v343 = vld [vmem:[#allocation8 + $0x2a0] sm:$0xff]
    %v344 = vld [vmem:[#allocation8 + $0x2a8] sm:$0xff]
    %v345 = vld [vmem:[#allocation8 + $0x2b0] sm:$0xff]
    %v346 = vld [vmem:[#allocation8 + $0x2b8] sm:$0xff]
    %v347 = vld [vmem:[#allocation8 + $0x2c0] sm:$0xff]
    %v348 = vld [vmem:[#allocation8 + $0x2c8] sm:$0xff]
    %v349 = vld [vmem:[#allocation8 + $0x2d0] sm:$0xff]
    %v350 = vld [vmem:[#allocation8 + $0x2d8] sm:$0xff]
    %v351 = vld [vmem:[#allocation8 + $0x2e0] sm:$0xff]
    %v352 = vld [vmem:[#allocation8 + $0x2e8] sm:$0xff]
    %v353 = vld [vmem:[#allocation8 + $0x2f0] sm:$0xff]
    %v354 = vld [vmem:[#allocation8 + $0x2f8] sm:$0xff]
    %v355 = vld [vmem:[#allocation8 + $0x300] sm:$0xff]
    %v356 = vld [vmem:[#allocation8 + $0x308] sm:$0xff]
    %v357 = vld [vmem:[#allocation8 + $0x310] sm:$0xff]
    %v358 = vld [vmem:[#allocation8 + $0x318] sm:$0xff]
    %v359 = vld [vmem:[#allocation8 + $0x320] sm:$0xff]
    %v360 = vld [vmem:[#allocation8 + $0x328] sm:$0xff]
    %v361 = vld [vmem:[#allocation8 + $0x330] sm:$0xff]
    %v362 = vld [vmem:[#allocation8 + $0x338] sm:$0xff]
    %v363 = vld [vmem:[#allocation8 + $0x340] sm:$0xff]
    %v364 = vld [vmem:[#allocation8 + $0x348] sm:$0xff]
    %v365 = vld [vmem:[#allocation8 + $0x350] sm:$0xff]
    %v366 = vld [vmem:[#allocation8 + $0x358] sm:$0xff]
    %v367 = vld [vmem:[#allocation8 + $0x360] sm:$0xff]
    %v368 = vld [vmem:[#allocation8 + $0x368] sm:$0xff]
    %v369 = vld [vmem:[#allocation8 + $0x370] sm:$0xff]
    %v370 = vld [vmem:[#allocation8 + $0x378] sm:$0xff]
    %v371 = vld [vmem:[#allocation8 + $0x380] sm:$0xff]
    %v372 = vld [vmem:[#allocation8 + $0x388] sm:$0xff]
    %v373 = vld [vmem:[#allocation8 + $0x390] sm:$0xff]
    %v374 = vld [vmem:[#allocation8 + $0x398] sm:$0xff]
    %v375 = vld [vmem:[#allocation8 + $0x3a0] sm:$0xff]
    %v376 = vld [vmem:[#allocation8 + $0x3a8] sm:$0xff]
    %v377 = vld [vmem:[#allocation8 + $0x3b0] sm:$0xff]
    %v378 = vld [vmem:[#allocation8 + $0x3b8] sm:$0xff]
    %v379 = vld [vmem:[#allocation8 + $0x3c0] sm:$0xff]
    %v380 = vld [vmem:[#allocation8 + $0x3c8] sm:$0xff]
    %v381 = vld [vmem:[#allocation8 + $0x3d0] sm:$0xff]
    %v382 = vld [vmem:[#allocation8 + $0x3d8] sm:$0xff]
    %v383 = vld [vmem:[#allocation8 + $0x3e0] sm:$0xff]
    %v384 = vld [vmem:[#allocation8 + $0x3e8] sm:$0xff]
    %v385 = vld [vmem:[#allocation8 + $0x3f0] sm:$0xff]
    %v386 = vld [vmem:[#allocation8 + $0x3f8] sm:$0xff]
    %v387 = vld [vmem:[#allocation10] sm:$0xf]
    %v388 = vld [vmem:[%s1] sm:$0xff]
    %v389 = vld [vmem:[#allocation2] sm:$0xff]
    %v390 = vld [vmem:[#allocation2 + $0x8] sm:$0xff]
    %v391 = vld [vmem:[#allocation2 + $0x10] sm:$0xff]
    %v392 = vld [vmem:[#allocation2 + $0x18] sm:$0xff]
    %v393 = vld [vmem:[#allocation2 + $0x20] sm:$0xff]
    %v394 = vld [vmem:[#allocation2 + $0x28] sm:$0xff]
    %v395 = vld [vmem:[#allocation2 + $0x30] sm:$0xff]
    %v396 = vld [vmem:[#allocation2 + $0x38] sm:$0xff]
    %v397 = vld [vmem:[#allocation5] sm:$0xff]
    %v398 = vld [vmem:[#allocation5 + $0x8] sm:$0xff]
    %v399 = vld [vmem:[#allocation5 + $0x10] sm:$0xff]
    %v400 = vld [vmem:[#allocation5 + $0x18] sm:$0xff]
    %v401 = vld [vmem:[#allocation5 + $0x20] sm:$0xff]
    %v402 = vld [vmem:[#allocation5 + $0x28] sm:$0xff]
    %v403 = vld [vmem:[#allocation5 + $0x30] sm:$0xff]
    %v404 = vld [vmem:[#allocation5 + $0x38] sm:$0xff]
    %v405 = vld [vmem:[#allocation5 + $0x40] sm:$0xff]
    %v406 = vld [vmem:[#allocation5 + $0x48] sm:$0xff]
    %v407 = vld [vmem:[#allocation5 + $0x50] sm:$0xff]
    %v408 = vld [vmem:[#allocation5 + $0x58] sm:$0xff]
    %v409 = vld [vmem:[#allocation5 + $0x60] sm:$0xff]
    %v410 = vld [vmem:[#allocation5 + $0x68] sm:$0xff]
    %v411 = vld [vmem:[#allocation5 + $0x70] sm:$0xff]
    %v412 = vld [vmem:[#allocation5 + $0x78] sm:$0xff]
    %v413 = vld [vmem:[#allocation5 + $0x80] sm:$0xff]
    %v414 = vld [vmem:[#allocation5 + $0x88] sm:$0xff]
    %v415 = vld [vmem:[#allocation5 + $0x90] sm:$0xff]
    %v416 = vld [vmem:[#allocation5 + $0x98] sm:$0xff]
    %v417 = vld [vmem:[#allocation5 + $0xa0] sm:$0xff]
    %v418 = vld [vmem:[#allocation5 + $0xa8] sm:$0xff]
    %v419 = vld [vmem:[#allocation5 + $0xb0] sm:$0xff]
    %v420 = vld [vmem:[#allocation5 + $0xb8] sm:$0xff]
    %v421 = vld [vmem:[#allocation5 + $0xc0] sm:$0xff]
    %v422 = vld [vmem:[#allocation5 + $0xc8] sm:$0xff]
    %v423 = vld [vmem:[#allocation5 + $0xd0] sm:$0xff]
    %v424 = vld [vmem:[#allocation5 + $0xd8] sm:$0xff]
    %v425 = vld [vmem:[#allocation5 + $0xe0] sm:$0xff]
    %v426 = vld [vmem:[#allocation5 + $0xe8] sm:$0xff]
    %v427 = vld [vmem:[#allocation5 + $0xf0] sm:$0xff]
    %v428 = vld [vmem:[#allocation5 + $0xf8] sm:$0xff]
    %v429 = vld [vmem:[#allocation5 + $0x100] sm:$0xff]
    %v430 = vld [vmem:[#allocation5 + $0x108] sm:$0xff]
    %v431 = vld [vmem:[#allocation5 + $0x110] sm:$0xff]
    %v432 = vld [vmem:[#allocation5 + $0x118] sm:$0xff]
    %v433 = vld [vmem:[#allocation5 + $0x120] sm:$0xff]
    %v434 = vld [vmem:[#allocation5 + $0x128] sm:$0xff]
    %v435 = vld [vmem:[#allocation5 + $0x130] sm:$0xff]
    %v436 = vld [vmem:[#allocation5 + $0x138] sm:$0xff]
    %v437 = vld [vmem:[#allocation5 + $0x140] sm:$0xff]
    %v438 = vld [vmem:[#allocation5 + $0x148] sm:$0xff]
    %v439 = vld [vmem:[#allocation5 + $0x150] sm:$0xff]
    %v440 = vld [vmem:[#allocation5 + $0x158] sm:$0xff]
    %v441 = vld [vmem:[#allocation5 + $0x160] sm:$0xff]
    %v442 = vld [vmem:[#allocation5 + $0x168] sm:$0xff]
    %v443 = vld [vmem:[#allocation5 + $0x170] sm:$0xff]
    %v444 = vld [vmem:[#allocation5 + $0x178] sm:$0xff]
    %v445 = vld [vmem:[#allocation5 + $0x180] sm:$0xff]
    %v446 = vld [vmem:[#allocation5 + $0x188] sm:$0xff]
    %v447 = vld [vmem:[#allocation5 + $0x190] sm:$0xff]
    %v448 = vld [vmem:[#allocation5 + $0x198] sm:$0xff]
    %v449 = vld [vmem:[#allocation5 + $0x1a0] sm:$0xff]
    %v450 = vld [vmem:[#allocation5 + $0x1a8] sm:$0xff]
    %v451 = vld [vmem:[#allocation5 + $0x1b0] sm:$0xff]
    %v452 = vld [vmem:[#allocation5 + $0x1b8] sm:$0xff]
    %v453 = vld [vmem:[#allocation5 + $0x1c0] sm:$0xff]
    %v454 = vld [vmem:[#allocation5 + $0x1c8] sm:$0xff]
    %v455 = vld [vmem:[#allocation5 + $0x1d0] sm:$0xff]
    %v456 = vld [vmem:[#allocation5 + $0x1d8] sm:$0xff]
    %v457 = vld [vmem:[#allocation5 + $0x1e0] sm:$0xff]
    %v458 = vld [vmem:[#allocation5 + $0x1e8] sm:$0xff]
    %v459 = vld [vmem:[#allocation5 + $0x1f0] sm:$0xff]
    %v460 = vld [vmem:[#allocation5 + $0x1f8] sm:$0xff]
    %v461 = vld [vmem:[%s3] sm:$0xf]
    %v463 = vperm.slane %v461, 0
    %v464 = vperm.slane %v461, 1
    %v465 = vperm.slane %v461, 2
    %v466 = vperm.slane %v461, 3
    %471 = vmatpush.msra.mxu0 %v457
    %472 = vmatpush.msra.mxu0 %v453
    %473 = vmatpush.msra.mxu0 %v449
    %474 = vmatpush.msra.mxu0 %v445
    %475 = vmatpush.msra.mxu0 %v441
    %476 = vmatpush.msra.mxu0 %v437
    %477 = vmatpush.msra.mxu0 %v433
    %478 = vmatpush.msra.mxu0 %v429
    %479 = vmatpush.msra.mxu0 %v425
    %480 = vmatpush.msra.mxu0 %v421
    %481 = vmatpush.msra.mxu0 %v417
    %482 = vmatpush.msra.mxu0 %v413
    %483 = vmatpush.msra.mxu0 %v409
    %484 = vmatpush.msra.mxu0 %v405
    %485 = vmatpush.msra.mxu0 %v401
    %486 = vmatpush.msra.mxu0 %v397
    %487 = vmatmul.f32.gmra.mxu0 %v389
    %v488 = vpop.f32.mrf.mxu0
    %v489 = vadd.f32 %v463, %v488
    %490 = vmatmul.f32.gmra.mxu0 %v390
    %v491 = vpop.f32.mrf.mxu0
    %v492 = vadd.f32 %v463, %v491
    %493 = vmatmul.f32.gmra.mxu0 %v391
    %v494 = vpop.f32.mrf.mxu0
    %v495 = vadd.f32 %v463, %v494
    %496 = vmatmul.f32.gmra.mxu0 %v392
    %v497 = vpop.f32.mrf.mxu0
    %v498 = vadd.f32 %v463, %v497
    %499 = vmatmul.f32.gmra.mxu0 %v393
    %v500 = vpop.f32.mrf.mxu0
    %v501 = vadd.f32 %v463, %v500
    %502 = vmatmul.f32.gmra.mxu0 %v394
    %v503 = vpop.f32.mrf.mxu0
    %v504 = vadd.f32 %v463, %v503
    %505 = vmatmul.f32.gmra.mxu0 %v395
    %v506 = vpop.f32.mrf.mxu0
    %v507 = vadd.f32 %v463, %v506
    %508 = vmatmul.f32.gmra.mxu0 %v396
    %v509 = vpop.f32.mrf.mxu0
    %v510 = vadd.f32 %v463, %v509
    %511 = vdwg.mxu0
    %512 = vmatpush.msra.mxu0 %v458
    %513 = vmatpush.msra.mxu0 %v454
    %514 = vmatpush.msra.mxu0 %v450
    %515 = vmatpush.msra.mxu0 %v446
    %516 = vmatpush.msra.mxu0 %v442
    %517 = vmatpush.msra.mxu0 %v438
    %518 = vmatpush.msra.mxu0 %v434
    %519 = vmatpush.msra.mxu0 %v430
    %520 = vmatpush.msra.mxu0 %v426
    %521 = vmatpush.msra.mxu0 %v422
    %522 = vmatpush.msra.mxu0 %v418
    %523 = vmatpush.msra.mxu0 %v414
    %524 = vmatpush.msra.mxu0 %v410
    %525 = vmatpush.msra.mxu0 %v406
    %526 = vmatpush.msra.mxu0 %v402
    %527 = vmatpush.msra.mxu0 %v398
    %528 = vmatmul.f32.gmra.mxu0 %v389
    %v529 = vpop.f32.mrf.mxu0
    %v530 = vadd.f32 %v464, %v529
    %531 = vmatmul.f32.gmra.mxu0 %v390
    %v532 = vpop.f32.mrf.mxu0
    %v533 = vadd.f32 %v464, %v532
    %534 = vmatmul.f32.gmra.mxu0 %v391
    %v535 = vpop.f32.mrf.mxu0
    %v536 = vadd.f32 %v464, %v535
    %537 = vmatmul.f32.gmra.mxu0 %v392
    %v538 = vpop.f32.mrf.mxu0
    %v539 = vadd.f32 %v464, %v538
    %540 = vmatmul.f32.gmra.mxu0 %v393
    %v541 = vpop.f32.mrf.mxu0
    %v542 = vadd.f32 %v464, %v541
    %543 = vmatmul.f32.gmra.mxu0 %v394
    %v544 = vpop.f32.mrf.mxu0
    %v545 = vadd.f32 %v464, %v544
    %546 = vmatmul.f32.gmra.mxu0 %v395
    %v547 = vpop.f32.mrf.mxu0
    %v548 = vadd.f32 %v464, %v547
    %549 = vmatmul.f32.gmra.mxu0 %v396
    %v550 = vpop.f32.mrf.mxu0
    %v551 = vadd.f32 %v464, %v550
    %552 = vdwg.mxu0
    %553 = vmatpush.msra.mxu0 %v459
    %554 = vmatpush.msra.mxu0 %v455
    %555 = vmatpush.msra.mxu0 %v451
    %556 = vmatpush.msra.mxu0 %v447
    %557 = vmatpush.msra.mxu0 %v443
    %558 = vmatpush.msra.mxu0 %v439
    %559 = vmatpush.msra.mxu0 %v435
    %560 = vmatpush.msra.mxu0 %v431
    %561 = vmatpush.msra.mxu0 %v427
    %562 = vmatpush.msra.mxu0 %v423
    %563 = vmatpush.msra.mxu0 %v419
    %564 = vmatpush.msra.mxu0 %v415
    %565 = vmatpush.msra.mxu0 %v411
    %566 = vmatpush.msra.mxu0 %v407
    %567 = vmatpush.msra.mxu0 %v403
    %568 = vmatpush.msra.mxu0 %v399
    %569 = vmatmul.f32.gmra.mxu0 %v389
    %v570 = vpop.f32.mrf.mxu0
    %v571 = vadd.f32 %v465, %v570
    %572 = vmatmul.f32.gmra.mxu0 %v390
    %v573 = vpop.f32.mrf.mxu0
    %v574 = vadd.f32 %v465, %v573
    %575 = vmatmul.f32.gmra.mxu0 %v391
    %v576 = vpop.f32.mrf.mxu0
    %v577 = vadd.f32 %v465, %v576
    %578 = vmatmul.f32.gmra.mxu0 %v392
    %v579 = vpop.f32.mrf.mxu0
    %v580 = vadd.f32 %v465, %v579
    %581 = vmatmul.f32.gmra.mxu0 %v393
    %v582 = vpop.f32.mrf.mxu0
    %v583 = vadd.f32 %v465, %v582
    %584 = vmatmul.f32.gmra.mxu0 %v394
    %v585 = vpop.f32.mrf.mxu0
    %v586 = vadd.f32 %v465, %v585
    %587 = vmatmul.f32.gmra.mxu0 %v395
    %v588 = vpop.f32.mrf.mxu0
    %v589 = vadd.f32 %v465, %v588
    %590 = vmatmul.f32.gmra.mxu0 %v396
    %v591 = vpop.f32.mrf.mxu0
    %v592 = vadd.f32 %v465, %v591
    %593 = vdwg.mxu0
    %594 = vmatpush.msra.mxu0 %v460
    %595 = vmatpush.msra.mxu0 %v456
    %596 = vmatpush.msra.mxu0 %v452
    %597 = vmatpush.msra.mxu0 %v448
    %598 = vmatpush.msra.mxu0 %v444
    %599 = vmatpush.msra.mxu0 %v440
    %600 = vmatpush.msra.mxu0 %v436
    %601 = vmatpush.msra.mxu0 %v432
    %602 = vmatpush.msra.mxu0 %v428
    %603 = vmatpush.msra.mxu0 %v424
    %604 = vmatpush.msra.mxu0 %v420
    %605 = vmatpush.msra.mxu0 %v416
    %606 = vmatpush.msra.mxu0 %v412
    %607 = vmatpush.msra.mxu0 %v408
    %608 = vmatpush.msra.mxu0 %v404
    %609 = vmatpush.msra.mxu0 %v400
    %610 = vmatmul.f32.gmra.mxu0 %v389
    %v611 = vpop.f32.mrf.mxu0
    %v612 = vadd.f32 %v466, %v611
    %613 = vmatmul.f32.gmra.mxu0 %v390
    %v614 = vpop.f32.mrf.mxu0
    %v615 = vadd.f32 %v466, %v614
    %616 = vmatmul.f32.gmra.mxu0 %v391
    %v617 = vpop.f32.mrf.mxu0
    %v618 = vadd.f32 %v466, %v617
    %619 = vmatmul.f32.gmra.mxu0 %v392
    %v620 = vpop.f32.mrf.mxu0
    %v621 = vadd.f32 %v466, %v620
    %622 = vmatmul.f32.gmra.mxu0 %v393
    %v623 = vpop.f32.mrf.mxu0
    %v624 = vadd.f32 %v466, %v623
    %625 = vmatmul.f32.gmra.mxu0 %v394
    %v626 = vpop.f32.mrf.mxu0
    %v627 = vadd.f32 %v466, %v626
    %628 = vmatmul.f32.gmra.mxu0 %v395
    %v629 = vpop.f32.mrf.mxu0
    %v630 = vadd.f32 %v466, %v629
    %631 = vmatmul.f32.gmra.mxu0 %v396
    %v632 = vpop.f32.mrf.mxu0
    %v633 = vadd.f32 %v466, %v632
    %634 = vdwg.mxu0
    %635 = vmatpush.msra.mxu0 %v255
    %636 = vmatpush.msra.mxu0 %v251
    %637 = vmatpush.msra.mxu0 %v247
    %638 = vmatpush.msra.mxu0 %v243
    %639 = vmatpush.msra.mxu0 %v239
    %640 = vmatpush.msra.mxu0 %v235
    %641 = vmatpush.msra.mxu0 %v231
    %642 = vmatpush.msra.mxu0 %v227
    %643 = vmatpush.msra.mxu0 %v223
    %644 = vmatpush.msra.mxu0 %v219
    %645 = vmatpush.msra.mxu0 %v215
    %646 = vmatpush.msra.mxu0 %v211
    %647 = vmatpush.msra.mxu0 %v207
    %648 = vmatpush.msra.mxu0 %v203
    %649 = vmatpush.msra.mxu0 %v199
    %650 = vmatpush.msra.mxu0 %v195
    %651 = vmatmul.f32.gmra.mxu0 0.0
    %v652 = vpop.f32.mrf.mxu0
    %v653 = vadd.f32 0.0, %v652
    %654 = vdwg.mxu0
    %655 = vmatpush.msra.mxu0 %v256
    %656 = vmatpush.msra.mxu0 %v252
    %657 = vmatpush.msra.mxu0 %v248
    %658 = vmatpush.msra.mxu0 %v244
    %659 = vmatpush.msra.mxu0 %v240
    %660 = vmatpush.msra.mxu0 %v236
    %661 = vmatpush.msra.mxu0 %v232
    %662 = vmatpush.msra.mxu0 %v228
    %663 = vmatpush.msra.mxu0 %v224
    %664 = vmatpush.msra.mxu0 %v220
    %665 = vmatpush.msra.mxu0 %v216
    %666 = vmatpush.msra.mxu0 %v212
    %667 = vmatpush.msra.mxu0 %v208
    %668 = vmatpush.msra.mxu0 %v204
    %669 = vmatpush.msra.mxu0 %v200
    %670 = vmatpush.msra.mxu0 %v196
    %671 = vmatmul.f32.gmra.mxu0 0.0
    %v672 = vpop.f32.mrf.mxu0
    %v673 = vadd.f32 0.0, %v672
    %674 = vdwg.mxu0
    %675 = vmatpush.msra.mxu0 %v257
    %676 = vmatpush.msra.mxu0 %v253
    %677 = vmatpush.msra.mxu0 %v249
    %678 = vmatpush.msra.mxu0 %v245
    %679 = vmatpush.msra.mxu0 %v241
    %680 = vmatpush.msra.mxu0 %v237
    %681 = vmatpush.msra.mxu0 %v233
    %682 = vmatpush.msra.mxu0 %v229
    %683 = vmatpush.msra.mxu0 %v225
    %684 = vmatpush.msra.mxu0 %v221
    %685 = vmatpush.msra.mxu0 %v217
    %686 = vmatpush.msra.mxu0 %v213
    %687 = vmatpush.msra.mxu0 %v209
    %688 = vmatpush.msra.mxu0 %v205
    %689 = vmatpush.msra.mxu0 %v201
    %690 = vmatpush.msra.mxu0 %v197
    %691 = vmatmul.f32.gmra.mxu0 0.0
    %v692 = vpop.f32.mrf.mxu0
    %v693 = vadd.f32 0.0, %v692
    %694 = vdwg.mxu0
    %695 = vmatpush.msra.mxu0 %v258
    %696 = vmatpush.msra.mxu0 %v254
    %697 = vmatpush.msra.mxu0 %v250
    %698 = vmatpush.msra.mxu0 %v246
    %699 = vmatpush.msra.mxu0 %v242
    %700 = vmatpush.msra.mxu0 %v238
    %701 = vmatpush.msra.mxu0 %v234
    %702 = vmatpush.msra.mxu0 %v230
    %703 = vmatpush.msra.mxu0 %v226
    %704 = vmatpush.msra.mxu0 %v222
    %705 = vmatpush.msra.mxu0 %v218
    %706 = vmatpush.msra.mxu0 %v214
    %707 = vmatpush.msra.mxu0 %v210
    %708 = vmatpush.msra.mxu0 %v206
    %709 = vmatpush.msra.mxu0 %v202
    %710 = vmatpush.msra.mxu0 %v198
    %711 = vmatmul.f32.gmra.mxu0 0.0
    %v712 = vpop.f32.mrf.mxu0
    %v713 = vadd.f32 0.0, %v712
    %714 = vdwg.mxu0
    %v715 = vadd.f32 %v489, %v653
    %v716 = vadd.f32 %v530, %v673
    %v717 = vadd.f32 %v571, %v693
    %v718 = vadd.f32 %v612, %v713
    %v719 = vxor.u32 %v715, 2147483648
    %v720 = vmul.f32 %v719, 1.442695
    %v721 = vpow.pop %v720
    %v722 = vadd.f32 %v721, 1.0
    %v723 = vrcp.pop %v722
    %v724 = vmul.f32 %v722, %v723
    %v725 = vsub.f32 1.0, %v724
    %v726 = vmul.f32 %v723, %v725
    %v727 = vadd.f32 %v723, %v726
    %vm728 = vweird.f32 %v722
    %vm729 = vweird.f32 %v723
    %vm730 = vmor %vm728, %vm729
    %v731 = vsel %vm730, %v723, %v727
    %v732 = vand.u32 2147483647, %v722
    %vm733 = vcmp.eq.f32.partialorder %v732, 8.507059e+37
    %v734 = vand.u32 %v722, 2147483648
    %v735 = vor.u32 1.1754944e-38, %v734
    %v736 = vsel %vm733, %v735, %v731
    %v737 = vmul.f32 1.0, %v736
    %v738 = vxor.u32 %v716, 2147483648
    %v739 = vmul.f32 %v738, 1.442695
    %v740 = vpow.pop %v739
    %v741 = vadd.f32 %v740, 1.0
    %v742 = vrcp.pop %v741
    %v743 = vmul.f32 %v741, %v742
    %v744 = vsub.f32 1.0, %v743
    %v745 = vmul.f32 %v742, %v744
    %v746 = vadd.f32 %v742, %v745
    %vm747 = vweird.f32 %v741
    %vm748 = vweird.f32 %v742
    %vm749 = vmor %vm747, %vm748
    %v750 = vsel %vm749, %v742, %v746
    %v751 = vand.u32 2147483647, %v741
    %vm752 = vcmp.eq.f32.partialorder %v751, 8.507059e+37
    %v753 = vand.u32 %v741, 2147483648
    %v754 = vor.u32 1.1754944e-38, %v753
    %v755 = vsel %vm752, %v754, %v750
    %v756 = vmul.f32 1.0, %v755
    %v757 = vtanh.pop %v717
    %v758 = vxor.u32 %v718, 2147483648
    %v759 = vmul.f32 %v758, 1.442695
    %v760 = vpow.pop %v759
    %v761 = vadd.f32 %v760, 1.0
    %v762 = vrcp.pop %v761
    %v763 = vmul.f32 %v761, %v762
    %v764 = vsub.f32 1.0, %v763
    %v765 = vmul.f32 %v762, %v764
    %v766 = vadd.f32 %v762, %v765
    %vm767 = vweird.f32 %v761
    %vm768 = vweird.f32 %v762
    %vm769 = vmor %vm767, %vm768
    %v770 = vsel %vm769, %v762, %v766
    %v771 = vand.u32 2147483647, %v761
    %vm772 = vcmp.eq.f32.partialorder %v771, 8.507059e+37
    %v773 = vand.u32 %v761, 2147483648
    %v774 = vor.u32 1.1754944e-38, %v773
    %v775 = vsel %vm772, %v774, %v770
    %v776 = vmul.f32 1.0, %v775
    %v777 = vmul.f32 %v756, 0.0
    %v778 = vmul.f32 %v737, %v757
    %v779 = vadd.f32 %v777, %v778
    %v780 = vtanh.pop %v779
    %v781 = vmul.f32 %v776, %v780
    %v783 = vperm.slane %v387, 0
    %v784 = vperm.slane %v387, 1
    %v785 = vperm.slane %v387, 2
    %v786 = vperm.slane %v387, 3
    %791 = vmatpush.msra.mxu0 %v319
    %792 = vmatpush.msra.mxu0 %v315
    %793 = vmatpush.msra.mxu0 %v311
    %794 = vmatpush.msra.mxu0 %v307
    %795 = vmatpush.msra.mxu0 %v303
    %796 = vmatpush.msra.mxu0 %v299
    %797 = vmatpush.msra.mxu0 %v295
    %798 = vmatpush.msra.mxu0 %v291
    %799 = vmatpush.msra.mxu0 %v287
    %800 = vmatpush.msra.mxu0 %v283
    %801 = vmatpush.msra.mxu0 %v279
    %802 = vmatpush.msra.mxu0 %v275
    %803 = vmatpush.msra.mxu0 %v271
    %804 = vmatpush.msra.mxu0 %v267
    %805 = vmatpush.msra.mxu0 %v263
    %806 = vmatpush.msra.mxu0 %v259
    %807 = vmatmul.f32.gmra.mxu0 %v781
    %v808 = vpop.f32.mrf.mxu0
    %v809 = vadd.f32 %v783, %v808
    %810 = vdwg.mxu0
    %811 = vmatpush.msra.mxu0 %v383
    %812 = vmatpush.msra.mxu0 %v379
    %813 = vmatpush.msra.mxu0 %v375
    %814 = vmatpush.msra.mxu0 %v371
    %815 = vmatpush.msra.mxu0 %v367
    %816 = vmatpush.msra.mxu0 %v363
    %817 = vmatpush.msra.mxu0 %v359
    %818 = vmatpush.msra.mxu0 %v355
    %819 = vmatpush.msra.mxu0 %v351
    %820 = vmatpush.msra.mxu0 %v347
    %821 = vmatpush.msra.mxu0 %v343
    %822 = vmatpush.msra.mxu0 %v339
    %823 = vmatpush.msra.mxu0 %v335
    %824 = vmatpush.msra.mxu0 %v331
    %825 = vmatpush.msra.mxu0 %v327
    %826 = vmatpush.msra.mxu0 %v323
    %827 = vmatmul.f32.gmra.mxu0 0.0
    %v828 = vpop.f32.mrf.mxu0
    %v829 = vadd.f32 %v809, %v828
    %830 = vdwg.mxu0
    %831 = vmatpush.msra.mxu0 %v320
    %832 = vmatpush.msra.mxu0 %v316
    %833 = vmatpush.msra.mxu0 %v312
    %834 = vmatpush.msra.mxu0 %v308
    %835 = vmatpush.msra.mxu0 %v304
    %836 = vmatpush.msra.mxu0 %v300
    %837 = vmatpush.msra.mxu0 %v296
    %838 = vmatpush.msra.mxu0 %v292
    %839 = vmatpush.msra.mxu0 %v288
    %840 = vmatpush.msra.mxu0 %v284
    %841 = vmatpush.msra.mxu0 %v280
    %842 = vmatpush.msra.mxu0 %v276
    %843 = vmatpush.msra.mxu0 %v272
    %844 = vmatpush.msra.mxu0 %v268
    %845 = vmatpush.msra.mxu0 %v264
    %846 = vmatpush.msra.mxu0 %v260
    %847 = vmatmul.f32.gmra.mxu0 %v781
    %v848 = vpop.f32.mrf.mxu0
    %v849 = vadd.f32 %v784, %v848
    %850 = vdwg.mxu0
    %851 = vmatpush.msra.mxu0 %v384
    %852 = vmatpush.msra.mxu0 %v380
    %853 = vmatpush.msra.mxu0 %v376
    %854 = vmatpush.msra.mxu0 %v372
    %855 = vmatpush.msra.mxu0 %v368
    %856 = vmatpush.msra.mxu0 %v364
    %857 = vmatpush.msra.mxu0 %v360
    %858 = vmatpush.msra.mxu0 %v356
    %859 = vmatpush.msra.mxu0 %v352
    %860 = vmatpush.msra.mxu0 %v348
    %861 = vmatpush.msra.mxu0 %v344
    %862 = vmatpush.msra.mxu0 %v340
    %863 = vmatpush.msra.mxu0 %v336
    %864 = vmatpush.msra.mxu0 %v332
    %865 = vmatpush.msra.mxu0 %v328
    %866 = vmatpush.msra.mxu0 %v324
    %867 = vmatmul.f32.gmra.mxu0 0.0
    %v868 = vpop.f32.mrf.mxu0
    %v869 = vadd.f32 %v849, %v868
    %870 = vdwg.mxu0
    %871 = vmatpush.msra.mxu0 %v321
    %872 = vmatpush.msra.mxu0 %v317
    %873 = vmatpush.msra.mxu0 %v313
    %874 = vmatpush.msra.mxu0 %v309
    %875 = vmatpush.msra.mxu0 %v305
    %876 = vmatpush.msra.mxu0 %v301
    %877 = vmatpush.msra.mxu0 %v297
    %878 = vmatpush.msra.mxu0 %v293
    %879 = vmatpush.msra.mxu0 %v289
    %880 = vmatpush.msra.mxu0 %v285
    %881 = vmatpush.msra.mxu0 %v281
    %882 = vmatpush.msra.mxu0 %v277
    %883 = vmatpush.msra.mxu0 %v273
    %884 = vmatpush.msra.mxu0 %v269
    %885 = vmatpush.msra.mxu0 %v265
    %886 = vmatpush.msra.mxu0 %v261
    %887 = vmatmul.f32.gmra.mxu0 %v781
    %v888 = vpop.f32.mrf.mxu0
    %v889 = vadd.f32 %v785, %v888
    %890 = vdwg.mxu0
    %891 = vmatpush.msra.mxu0 %v385
    %892 = vmatpush.msra.mxu0 %v381
    %893 = vmatpush.msra.mxu0 %v377
    %894 = vmatpush.msra.mxu0 %v373
    %895 = vmatpush.msra.mxu0 %v369
    %896 = vmatpush.msra.mxu0 %v365
    %897 = vmatpush.msra.mxu0 %v361
    %898 = vmatpush.msra.mxu0 %v357
    %899 = vmatpush.msra.mxu0 %v353
    %900 = vmatpush.msra.mxu0 %v349
    %901 = vmatpush.msra.mxu0 %v345
    %902 = vmatpush.msra.mxu0 %v341
    %903 = vmatpush.msra.mxu0 %v337
    %904 = vmatpush.msra.mxu0 %v333
    %905 = vmatpush.msra.mxu0 %v329
    %906 = vmatpush.msra.mxu0 %v325
    %907 = vmatmul.f32.gmra.mxu0 0.0
    %v908 = vpop.f32.mrf.mxu0
    %v909 = vadd.f32 %v889, %v908
    %910 = vdwg.mxu0
    %911 = vmatpush.msra.mxu0 %v322
    %912 = vmatpush.msra.mxu0 %v318
    %913 = vmatpush.msra.mxu0 %v314
    %914 = vmatpush.msra.mxu0 %v310
    %915 = vmatpush.msra.mxu0 %v306
    %916 = vmatpush.msra.mxu0 %v302
    %917 = vmatpush.msra.mxu0 %v298
    %918 = vmatpush.msra.mxu0 %v294
    %919 = vmatpush.msra.mxu0 %v290
    %920 = vmatpush.msra.mxu0 %v286
    %921 = vmatpush.msra.mxu0 %v282
    %922 = vmatpush.msra.mxu0 %v278
    %923 = vmatpush.msra.mxu0 %v274
    %924 = vmatpush.msra.mxu0 %v270
    %925 = vmatpush.msra.mxu0 %v266
    %926 = vmatpush.msra.mxu0 %v262
    %927 = vmatmul.f32.gmra.mxu0 %v781
    %v928 = vpop.f32.mrf.mxu0
    %v929 = vadd.f32 %v786, %v928
    %930 = vdwg.mxu0
    %931 = vmatpush.msra.mxu0 %v386
    %932 = vmatpush.msra.mxu0 %v382
    %933 = vmatpush.msra.mxu0 %v378
    %934 = vmatpush.msra.mxu0 %v374
    %935 = vmatpush.msra.mxu0 %v370
    %936 = vmatpush.msra.mxu0 %v366
    %937 = vmatpush.msra.mxu0 %v362
    %938 = vmatpush.msra.mxu0 %v358
    %939 = vmatpush.msra.mxu0 %v354
    %940 = vmatpush.msra.mxu0 %v350
    %941 = vmatpush.msra.mxu0 %v346
    %942 = vmatpush.msra.mxu0 %v342
    %943 = vmatpush.msra.mxu0 %v338
    %944 = vmatpush.msra.mxu0 %v334
    %945 = vmatpush.msra.mxu0 %v330
    %946 = vmatpush.msra.mxu0 %v326
    %947 = vmatmul.f32.gmra.mxu0 0.0
    %v948 = vpop.f32.mrf.mxu0
    %v949 = vadd.f32 %v929, %v948
    %950 = vdwg.mxu0
    %v951 = vxor.u32 %v829, 2147483648
    %v952 = vmul.f32 %v951, 1.442695
    %v953 = vpow.pop %v952
    %v954 = vadd.f32 %v953, 1.0
    %v955 = vrcp.pop %v954
    %v956 = vmul.f32 %v954, %v955
    %v957 = vsub.f32 1.0, %v956
    %v958 = vmul.f32 %v955, %v957
    %v959 = vadd.f32 %v955, %v958
    %vm960 = vweird.f32 %v954
    %vm961 = vweird.f32 %v955
    %vm962 = vmor %vm960, %vm961
    %v963 = vsel %vm962, %v955, %v959
    %v964 = vand.u32 2147483647, %v954
    %vm965 = vcmp.eq.f32.partialorder %v964, 8.507059e+37
    %v966 = vand.u32 %v954, 2147483648
    %v967 = vor.u32 1.1754944e-38, %v966
    %v968 = vsel %vm965, %v967, %v963
    %v969 = vmul.f32 1.0, %v968
    %v970 = vxor.u32 %v869, 2147483648
    %v971 = vmul.f32 %v970, 1.442695
    %v972 = vpow.pop %v971
    %v973 = vadd.f32 %v972, 1.0
    %v974 = vrcp.pop %v973
    %v975 = vmul.f32 %v973, %v974
    %v976 = vsub.f32 1.0, %v975
    %v977 = vmul.f32 %v974, %v976
    %v978 = vadd.f32 %v974, %v977
    %vm979 = vweird.f32 %v973
    %vm980 = vweird.f32 %v974
    %vm981 = vmor %vm979, %vm980
    %v982 = vsel %vm981, %v974, %v978
    %v983 = vand.u32 2147483647, %v973
    %vm984 = vcmp.eq.f32.partialorder %v983, 8.507059e+37
    %v985 = vand.u32 %v973, 2147483648
    %v986 = vor.u32 1.1754944e-38, %v985
    %v987 = vsel %vm984, %v986, %v982
    %v988 = vmul.f32 1.0, %v987
    %v989 = vtanh.pop %v909
    %v990 = vxor.u32 %v949, 2147483648
    %v991 = vmul.f32 %v990, 1.442695
    %v992 = vpow.pop %v991
    %v993 = vadd.f32 %v992, 1.0
    %v994 = vrcp.pop %v993
    %v995 = vmul.f32 %v993, %v994
    %v996 = vsub.f32 1.0, %v995
    %v997 = vmul.f32 %v994, %v996
    %v998 = vadd.f32 %v994, %v997
    %vm999 = vweird.f32 %v993
    %vm1000 = vweird.f32 %v994
    %vm1001 = vmor %vm999, %vm1000
    %v1002 = vsel %vm1001, %v994, %v998
    %v1003 = vand.u32 2147483647, %v993
    %vm1004 = vcmp.eq.f32.partialorder %v1003, 8.507059e+37
    %v1005 = vand.u32 %v993, 2147483648
    %v1006 = vor.u32 1.1754944e-38, %v1005
    %v1007 = vsel %vm1004, %v1006, %v1002
    %v1008 = vmul.f32 1.0, %v1007
    %v1009 = vmul.f32 %v988, 0.0
    %v1010 = vmul.f32 %v969, %v989
    %v1011 = vadd.f32 %v1009, %v1010
    %v1012 = vtanh.pop %v1011
    %v1013 = vmul.f32 %v1008, %v1012
    %vm1014 = vcmp.eq.s32.totalorder %v388, 0
    %v1015 = vsel %vm1014, 1, 0
    %1016 = vset.pattern.permute.xlu0 0
    %1017 = vperm.xlu0 %1016, %v1015
    %v1018 = vpop.permute.xlu0 %1017
    %vm1019 = vcmp.eq.s32.totalorder %v1018, 1
    %v1020 = vsel %vm1019, %v1013, 0.0
    %1021 = vmatpush.msra.mxu0 %v255
    %1022 = vmatpush.msra.mxu0 %v251
    %1023 = vmatpush.msra.mxu0 %v247
    %1024 = vmatpush.msra.mxu0 %v243
    %1025 = vmatpush.msra.mxu0 %v239
    %1026 = vmatpush.msra.mxu0 %v235
    %1027 = vmatpush.msra.mxu0 %v231
    %1028 = vmatpush.msra.mxu0 %v227
    %1029 = vmatpush.msra.mxu0 %v223
    %1030 = vmatpush.msra.mxu0 %v219
    %1031 = vmatpush.msra.mxu0 %v215
    %1032 = vmatpush.msra.mxu0 %v211
    %1033 = vmatpush.msra.mxu0 %v207
    %1034 = vmatpush.msra.mxu0 %v203
    %1035 = vmatpush.msra.mxu0 %v199
    %1036 = vmatpush.msra.mxu0 %v195
    %1037 = vmatmul.f32.gmra.mxu0 %v781
    %v1038 = vpop.f32.mrf.mxu0
    %v1039 = vadd.f32 0.0, %v1038
    %1040 = vdwg.mxu0
    %1041 = vmatpush.msra.mxu0 %v256
    %1042 = vmatpush.msra.mxu0 %v252
    %1043 = vmatpush.msra.mxu0 %v248
    %1044 = vmatpush.msra.mxu0 %v244
    %1045 = vmatpush.msra.mxu0 %v240
    %1046 = vmatpush.msra.mxu0 %v236
    %1047 = vmatpush.msra.mxu0 %v232
    %1048 = vmatpush.msra.mxu0 %v228
    %1049 = vmatpush.msra.mxu0 %v224
    %1050 = vmatpush.msra.mxu0 %v220
    %1051 = vmatpush.msra.mxu0 %v216
    %1052 = vmatpush.msra.mxu0 %v212
    %1053 = vmatpush.msra.mxu0 %v208
    %1054 = vmatpush.msra.mxu0 %v204
    %1055 = vmatpush.msra.mxu0 %v200
    %1056 = vmatpush.msra.mxu0 %v196
    %1057 = vmatmul.f32.gmra.mxu0 %v781
    %v1058 = vpop.f32.mrf.mxu0
    %v1059 = vadd.f32 0.0, %v1058
    %1060 = vdwg.mxu0
    %1061 = vmatpush.msra.mxu0 %v257
    %1062 = vmatpush.msra.mxu0 %v253
    %1063 = vmatpush.msra.mxu0 %v249
    %1064 = vmatpush.msra.mxu0 %v245
    %1065 = vmatpush.msra.mxu0 %v241
    %1066 = vmatpush.msra.mxu0 %v237
    %1067 = vmatpush.msra.mxu0 %v233
    %1068 = vmatpush.msra.mxu0 %v229
    %1069 = vmatpush.msra.mxu0 %v225
    %1070 = vmatpush.msra.mxu0 %v221
    %1071 = vmatpush.msra.mxu0 %v217
    %1072 = vmatpush.msra.mxu0 %v213
    %1073 = vmatpush.msra.mxu0 %v209
    %1074 = vmatpush.msra.mxu0 %v205
    %1075 = vmatpush.msra.mxu0 %v201
    %1076 = vmatpush.msra.mxu0 %v197
    %1077 = vmatmul.f32.gmra.mxu0 %v781
    %v1078 = vpop.f32.mrf.mxu0
    %v1079 = vadd.f32 0.0, %v1078
    %1080 = vdwg.mxu0
    %1081 = vmatpush.msra.mxu0 %v258
    %1082 = vmatpush.msra.mxu0 %v254
    %1083 = vmatpush.msra.mxu0 %v250
    %1084 = vmatpush.msra.mxu0 %v246
    %1085 = vmatpush.msra.mxu0 %v242
    %1086 = vmatpush.msra.mxu0 %v238
    %1087 = vmatpush.msra.mxu0 %v234
    %1088 = vmatpush.msra.mxu0 %v230
    %1089 = vmatpush.msra.mxu0 %v226
    %1090 = vmatpush.msra.mxu0 %v222
    %1091 = vmatpush.msra.mxu0 %v218
    %1092 = vmatpush.msra.mxu0 %v214
    %1093 = vmatpush.msra.mxu0 %v210
    %1094 = vmatpush.msra.mxu0 %v206
    %1095 = vmatpush.msra.mxu0 %v202
    %1096 = vmatpush.msra.mxu0 %v198
    %1097 = vmatmul.f32.gmra.mxu0 %v781
    %v1098 = vpop.f32.mrf.mxu0
    %v1099 = vadd.f32 0.0, %v1098
    %1100 = vdwg.mxu0
    %v1101 = vadd.f32 %v492, %v1039
    %v1102 = vadd.f32 %v533, %v1059
    %v1103 = vadd.f32 %v574, %v1079
    %v1104 = vadd.f32 %v615, %v1099
    %v1105 = vxor.u32 %v1101, 2147483648
    %v1106 = vmul.f32 %v1105, 1.442695
    %v1107 = vpow.pop %v1106
    %v1108 = vadd.f32 %v1107, 1.0
    %v1109 = vrcp.pop %v1108
    %v1110 = vmul.f32 %v1108, %v1109
    %v1111 = vsub.f32 1.0, %v1110
    %v1112 = vmul.f32 %v1109, %v1111
    %v1113 = vadd.f32 %v1109, %v1112
    %vm1114 = vweird.f32 %v1108
    %vm1115 = vweird.f32 %v1109
    %vm1116 = vmor %vm1114, %vm1115
    %v1117 = vsel %vm1116, %v1109, %v1113
    %v1118 = vand.u32 2147483647, %v1108
    %vm1119 = vcmp.eq.f32.partialorder %v1118, 8.507059e+37
    %v1120 = vand.u32 %v1108, 2147483648
    %v1121 = vor.u32 1.1754944e-38, %v1120
    %v1122 = vsel %vm1119, %v1121, %v1117
    %v1123 = vmul.f32 1.0, %v1122
    %v1124 = vxor.u32 %v1102, 2147483648
    %v1125 = vmul.f32 %v1124, 1.442695
    %v1126 = vpow.pop %v1125
    %v1127 = vadd.f32 %v1126, 1.0
    %v1128 = vrcp.pop %v1127
    %v1129 = vmul.f32 %v1127, %v1128
    %v1130 = vsub.f32 1.0, %v1129
    %v1131 = vmul.f32 %v1128, %v1130
    %v1132 = vadd.f32 %v1128, %v1131
    %vm1133 = vweird.f32 %v1127
    %vm1134 = vweird.f32 %v1128
    %vm1135 = vmor %vm1133, %vm1134
    %v1136 = vsel %vm1135, %v1128, %v1132
    %v1137 = vand.u32 2147483647, %v1127
    %vm1138 = vcmp.eq.f32.partialorder %v1137, 8.507059e+37
    %v1139 = vand.u32 %v1127, 2147483648
    %v1140 = vor.u32 1.1754944e-38, %v1139
    %v1141 = vsel %vm1138, %v1140, %v1136
    %v1142 = vmul.f32 1.0, %v1141
    %v1143 = vtanh.pop %v1103
    %v1144 = vxor.u32 %v1104, 2147483648
    %v1145 = vmul.f32 %v1144, 1.442695
    %v1146 = vpow.pop %v1145
    %v1147 = vadd.f32 %v1146, 1.0
    %v1148 = vrcp.pop %v1147
    %v1149 = vmul.f32 %v1147, %v1148
    %v1150 = vsub.f32 1.0, %v1149
    %v1151 = vmul.f32 %v1148, %v1150
    %v1152 = vadd.f32 %v1148, %v1151
    %vm1153 = vweird.f32 %v1147
    %vm1154 = vweird.f32 %v1148
    %vm1155 = vmor %vm1153, %vm1154
    %v1156 = vsel %vm1155, %v1148, %v1152
    %v1157 = vand.u32 2147483647, %v1147
    %vm1158 = vcmp.eq.f32.partialorder %v1157, 8.507059e+37
    %v1159 = vand.u32 %v1147, 2147483648
    %v1160 = vor.u32 1.1754944e-38, %v1159
    %v1161 = vsel %vm1158, %v1160, %v1156
    %v1162 = vmul.f32 1.0, %v1161
    %v1163 = vmul.f32 %v1142, %v779
    %v1164 = vmul.f32 %v1123, %v1143
    %v1165 = vadd.f32 %v1163, %v1164
    %v1166 = vtanh.pop %v1165
    %v1167 = vmul.f32 %v1162, %v1166
    %1168 = vmatpush.msra.mxu0 %v319
    %1169 = vmatpush.msra.mxu0 %v315
    %1170 = vmatpush.msra.mxu0 %v311
    %1171 = vmatpush.msra.mxu0 %v307
    %1172 = vmatpush.msra.mxu0 %v303
    %1173 = vmatpush.msra.mxu0 %v299
    %1174 = vmatpush.msra.mxu0 %v295
    %1175 = vmatpush.msra.mxu0 %v291
    %1176 = vmatpush.msra.mxu0 %v287
    %1177 = vmatpush.msra.mxu0 %v283
    %1178 = vmatpush.msra.mxu0 %v279
    %1179 = vmatpush.msra.mxu0 %v275
    %1180 = vmatpush.msra.mxu0 %v271
    %1181 = vmatpush.msra.mxu0 %v267
    %1182 = vmatpush.msra.mxu0 %v263
    %1183 = vmatpush.msra.mxu0 %v259
    %1184 = vmatmul.f32.gmra.mxu0 %v1167
    %v1185 = vpop.f32.mrf.mxu0
    %v1186 = vadd.f32 %v783, %v1185
    %1187 = vdwg.mxu0
    %1188 = vmatpush.msra.mxu0 %v383
    %1189 = vmatpush.msra.mxu0 %v379
    %1190 = vmatpush.msra.mxu0 %v375
    %1191 = vmatpush.msra.mxu0 %v371
    %1192 = vmatpush.msra.mxu0 %v367
    %1193 = vmatpush.msra.mxu0 %v363
    %1194 = vmatpush.msra.mxu0 %v359
    %1195 = vmatpush.msra.mxu0 %v355
    %1196 = vmatpush.msra.mxu0 %v351
    %1197 = vmatpush.msra.mxu0 %v347
    %1198 = vmatpush.msra.mxu0 %v343
    %1199 = vmatpush.msra.mxu0 %v339
    %1200 = vmatpush.msra.mxu0 %v335
    %1201 = vmatpush.msra.mxu0 %v331
    %1202 = vmatpush.msra.mxu0 %v327
    %1203 = vmatpush.msra.mxu0 %v323
    %1204 = vmatmul.f32.gmra.mxu0 %v1013
    %v1205 = vpop.f32.mrf.mxu0
    %v1206 = vadd.f32 %v1186, %v1205
    %1207 = vdwg.mxu0
    %1208 = vmatpush.msra.mxu0 %v320
    %1209 = vmatpush.msra.mxu0 %v316
    %1210 = vmatpush.msra.mxu0 %v312
    %1211 = vmatpush.msra.mxu0 %v308
    %1212 = vmatpush.msra.mxu0 %v304
    %1213 = vmatpush.msra.mxu0 %v300
    %1214 = vmatpush.msra.mxu0 %v296
    %1215 = vmatpush.msra.mxu0 %v292
    %1216 = vmatpush.msra.mxu0 %v288
    %1217 = vmatpush.msra.mxu0 %v284
    %1218 = vmatpush.msra.mxu0 %v280
    %1219 = vmatpush.msra.mxu0 %v276
    %1220 = vmatpush.msra.mxu0 %v272
    %1221 = vmatpush.msra.mxu0 %v268
    %1222 = vmatpush.msra.mxu0 %v264
    %1223 = vmatpush.msra.mxu0 %v260
    %1224 = vmatmul.f32.gmra.mxu0 %v1167
    %v1225 = vpop.f32.mrf.mxu0
    %v1226 = vadd.f32 %v784, %v1225
    %1227 = vdwg.mxu0
    %1228 = vmatpush.msra.mxu0 %v384
    %1229 = vmatpush.msra.mxu0 %v380
    %1230 = vmatpush.msra.mxu0 %v376
    %1231 = vmatpush.msra.mxu0 %v372
    %1232 = vmatpush.msra.mxu0 %v368
    %1233 = vmatpush.msra.mxu0 %v364
    %1234 = vmatpush.msra.mxu0 %v360
    %1235 = vmatpush.msra.mxu0 %v356
    %1236 = vmatpush.msra.mxu0 %v352
    %1237 = vmatpush.msra.mxu0 %v348
    %1238 = vmatpush.msra.mxu0 %v344
    %1239 = vmatpush.msra.mxu0 %v340
    %1240 = vmatpush.msra.mxu0 %v336
    %1241 = vmatpush.msra.mxu0 %v332
    %1242 = vmatpush.msra.mxu0 %v328
    %1243 = vmatpush.msra.mxu0 %v324
    %1244 = vmatmul.f32.gmra.mxu0 %v1013
    %v1245 = vpop.f32.mrf.mxu0
    %v1246 = vadd.f32 %v1226, %v1245
    %1247 = vdwg.mxu0
    %1248 = vmatpush.msra.mxu0 %v321
    %1249 = vmatpush.msra.mxu0 %v317
    %1250 = vmatpush.msra.mxu0 %v313
    %1251 = vmatpush.msra.mxu0 %v309
    %1252 = vmatpush.msra.mxu0 %v305
    %1253 = vmatpush.msra.mxu0 %v301
    %1254 = vmatpush.msra.mxu0 %v297
    %1255 = vmatpush.msra.mxu0 %v293
    %1256 = vmatpush.msra.mxu0 %v289
    %1257 = vmatpush.msra.mxu0 %v285
    %1258 = vmatpush.msra.mxu0 %v281
    %1259 = vmatpush.msra.mxu0 %v277
    %1260 = vmatpush.msra.mxu0 %v273
    %1261 = vmatpush.msra.mxu0 %v269
    %1262 = vmatpush.msra.mxu0 %v265
    %1263 = vmatpush.msra.mxu0 %v261
    %1264 = vmatmul.f32.gmra.mxu0 %v1167
    %v1265 = vpop.f32.mrf.mxu0
    %v1266 = vadd.f32 %v785, %v1265
    %1267 = vdwg.mxu0
    %1268 = vmatpush.msra.mxu0 %v385
    %1269 = vmatpush.msra.mxu0 %v381
    %1270 = vmatpush.msra.mxu0 %v377
    %1271 = vmatpush.msra.mxu0 %v373
    %1272 = vmatpush.msra.mxu0 %v369
    %1273 = vmatpush.msra.mxu0 %v365
    %1274 = vmatpush.msra.mxu0 %v361
    %1275 = vmatpush.msra.mxu0 %v357
    %1276 = vmatpush.msra.mxu0 %v353
    %1277 = vmatpush.msra.mxu0 %v349
    %1278 = vmatpush.msra.mxu0 %v345
    %1279 = vmatpush.msra.mxu0 %v341
    %1280 = vmatpush.msra.mxu0 %v337
    %1281 = vmatpush.msra.mxu0 %v333
    %1282 = vmatpush.msra.mxu0 %v329
    %1283 = vmatpush.msra.mxu0 %v325
    %1284 = vmatmul.f32.gmra.mxu0 %v1013
    %v1285 = vpop.f32.mrf.mxu0
    %v1286 = vadd.f32 %v1266, %v1285
    %1287 = vdwg.mxu0
    %1288 = vmatpush.msra.mxu0 %v322
    %1289 = vmatpush.msra.mxu0 %v318
    %1290 = vmatpush.msra.mxu0 %v314
    %1291 = vmatpush.msra.mxu0 %v310
    %1292 = vmatpush.msra.mxu0 %v306
    %1293 = vmatpush.msra.mxu0 %v302
    %1294 = vmatpush.msra.mxu0 %v298
    %1295 = vmatpush.msra.mxu0 %v294
    %1296 = vmatpush.msra.mxu0 %v290
    %1297 = vmatpush.msra.mxu0 %v286
    %1298 = vmatpush.msra.mxu0 %v282
    %1299 = vmatpush.msra.mxu0 %v278
    %1300 = vmatpush.msra.mxu0 %v274
    %1301 = vmatpush.msra.mxu0 %v270
    %1302 = vmatpush.msra.mxu0 %v266
    %1303 = vmatpush.msra.mxu0 %v262
    %1304 = vmatmul.f32.gmra.mxu0 %v1167
    %v1305 = vpop.f32.mrf.mxu0
    %v1306 = vadd.f32 %v786, %v1305
    %1307 = vdwg.mxu0
    %1308 = vmatpush.msra.mxu0 %v386
    %1309 = vmatpush.msra.mxu0 %v382
    %1310 = vmatpush.msra.mxu0 %v378
    %1311 = vmatpush.msra.mxu0 %v374
    %1312 = vmatpush.msra.mxu0 %v370
    %1313 = vmatpush.msra.mxu0 %v366
    %1314 = vmatpush.msra.mxu0 %v362
    %1315 = vmatpush.msra.mxu0 %v358
    %1316 = vmatpush.msra.mxu0 %v354
    %1317 = vmatpush.msra.mxu0 %v350
    %1318 = vmatpush.msra.mxu0 %v346
    %1319 = vmatpush.msra.mxu0 %v342
    %1320 = vmatpush.msra.mxu0 %v338
    %1321 = vmatpush.msra.mxu0 %v334
    %1322 = vmatpush.msra.mxu0 %v330
    %1323 = vmatpush.msra.mxu0 %v326
    %1324 = vmatmul.f32.gmra.mxu0 %v1013
    %v1325 = vpop.f32.mrf.mxu0
    %v1326 = vadd.f32 %v1306, %v1325
    %1327 = vdwg.mxu0
    %v1328 = vxor.u32 %v1206, 2147483648
    %v1329 = vmul.f32 %v1328, 1.442695
    %v1330 = vpow.pop %v1329
    %v1331 = vadd.f32 %v1330, 1.0
    %v1332 = vrcp.pop %v1331
    %v1333 = vmul.f32 %v1331, %v1332
    %v1334 = vsub.f32 1.0, %v1333
    %v1335 = vmul.f32 %v1332, %v1334
    %v1336 = vadd.f32 %v1332, %v1335
    %vm1337 = vweird.f32 %v1331
    %vm1338 = vweird.f32 %v1332
    %vm1339 = vmor %vm1337, %vm1338
    %v1340 = vsel %vm1339, %v1332, %v1336
    %v1341 = vand.u32 2147483647, %v1331
    %vm1342 = vcmp.eq.f32.partialorder %v1341, 8.507059e+37
    %v1343 = vand.u32 %v1331, 2147483648
    %v1344 = vor.u32 1.1754944e-38, %v1343
    %v1345 = vsel %vm1342, %v1344, %v1340
    %v1346 = vmul.f32 1.0, %v1345
    %v1347 = vxor.u32 %v1246, 2147483648
    %v1348 = vmul.f32 %v1347, 1.442695
    %v1349 = vpow.pop %v1348
    %v1350 = vadd.f32 %v1349, 1.0
    %v1351 = vrcp.pop %v1350
    %v1352 = vmul.f32 %v1350, %v1351
    %v1353 = vsub.f32 1.0, %v1352
    %v1354 = vmul.f32 %v1351, %v1353
    %v1355 = vadd.f32 %v1351, %v1354
    %vm1356 = vweird.f32 %v1350
    %vm1357 = vweird.f32 %v1351
    %vm1358 = vmor %vm1356, %vm1357
    %v1359 = vsel %vm1358, %v1351, %v1355
    %v1360 = vand.u32 2147483647, %v1350
    %vm1361 = vcmp.eq.f32.partialorder %v1360, 8.507059e+37
    %v1362 = vand.u32 %v1350, 2147483648
    %v1363 = vor.u32 1.1754944e-38, %v1362
    %v1364 = vsel %vm1361, %v1363, %v1359
    %v1365 = vmul.f32 1.0, %v1364
    %v1366 = vtanh.pop %v1286
    %v1367 = vxor.u32 %v1326, 2147483648
    %v1368 = vmul.f32 %v1367, 1.442695
    %v1369 = vpow.pop %v1368
    %v1370 = vadd.f32 %v1369, 1.0
    %v1371 = vrcp.pop %v1370
    %v1372 = vmul.f32 %v1370, %v1371
    %v1373 = vsub.f32 1.0, %v1372
    %v1374 = vmul.f32 %v1371, %v1373
    %v1375 = vadd.f32 %v1371, %v1374
    %vm1376 = vweird.f32 %v1370
    %vm1377 = vweird.f32 %v1371
    %vm1378 = vmor %vm1376, %vm1377
    %v1379 = vsel %vm1378, %v1371, %v1375
    %v1380 = vand.u32 2147483647, %v1370
    %vm1381 = vcmp.eq.f32.partialorder %v1380, 8.507059e+37
    %v1382 = vand.u32 %v1370, 2147483648
    %v1383 = vor.u32 1.1754944e-38, %v1382
    %v1384 = vsel %vm1381, %v1383, %v1379
    %v1385 = vmul.f32 1.0, %v1384
    %v1386 = vmul.f32 %v1365, %v1011
    %v1387 = vmul.f32 %v1346, %v1366
    %v1388 = vadd.f32 %v1386, %v1387
    %v1389 = vtanh.pop %v1388
    %v1390 = vmul.f32 %v1385, %v1389
    %vm1391 = vcmp.eq.s32.totalorder %v388, 1
    %v1392 = vsel %vm1391, 1, 0
    %1393 = vset.pattern.permute.xlu0 0
    %1394 = vperm.xlu0 %1393, %v1392
    %v1395 = vpop.permute.xlu0 %1394
    %vm1396 = vcmp.eq.s32.totalorder %v1395, 1
    %v1397 = vsel %vm1396, %v1390, %v1020
    %1398 = vmatpush.msra.mxu0 %v255
    %1399 = vmatpush.msra.mxu0 %v251
    %1400 = vmatpush.msra.mxu0 %v247
    %1401 = vmatpush.msra.mxu0 %v243
    %1402 = vmatpush.msra.mxu0 %v239
    %1403 = vmatpush.msra.mxu0 %v235
    %1404 = vmatpush.msra.mxu0 %v231
    %1405 = vmatpush.msra.mxu0 %v227
    %1406 = vmatpush.msra.mxu0 %v223
    %1407 = vmatpush.msra.mxu0 %v219
    %1408 = vmatpush.msra.mxu0 %v215
    %1409 = vmatpush.msra.mxu0 %v211
    %1410 = vmatpush.msra.mxu0 %v207
    %1411 = vmatpush.msra.mxu0 %v203
    %1412 = vmatpush.msra.mxu0 %v199
    %1413 = vmatpush.msra.mxu0 %v195
    %1414 = vmatmul.f32.gmra.mxu0 %v1167
    %v1415 = vpop.f32.mrf.mxu0
    %v1416 = vadd.f32 0.0, %v1415
    %1417 = vdwg.mxu0
    %1418 = vmatpush.msra.mxu0 %v256
    %1419 = vmatpush.msra.mxu0 %v252
    %1420 = vmatpush.msra.mxu0 %v248
    %1421 = vmatpush.msra.mxu0 %v244
    %1422 = vmatpush.msra.mxu0 %v240
    %1423 = vmatpush.msra.mxu0 %v236
    %1424 = vmatpush.msra.mxu0 %v232
    %1425 = vmatpush.msra.mxu0 %v228
    %1426 = vmatpush.msra.mxu0 %v224
    %1427 = vmatpush.msra.mxu0 %v220
    %1428 = vmatpush.msra.mxu0 %v216
    %1429 = vmatpush.msra.mxu0 %v212
    %1430 = vmatpush.msra.mxu0 %v208
    %1431 = vmatpush.msra.mxu0 %v204
    %1432 = vmatpush.msra.mxu0 %v200
    %1433 = vmatpush.msra.mxu0 %v196
    %1434 = vmatmul.f32.gmra.mxu0 %v1167
    %v1435 = vpop.f32.mrf.mxu0
    %v1436 = vadd.f32 0.0, %v1435
    %1437 = vdwg.mxu0
    %1438 = vmatpush.msra.mxu0 %v257
    %1439 = vmatpush.msra.mxu0 %v253
    %1440 = vmatpush.msra.mxu0 %v249
    %1441 = vmatpush.msra.mxu0 %v245
    %1442 = vmatpush.msra.mxu0 %v241
    %1443 = vmatpush.msra.mxu0 %v237
    %1444 = vmatpush.msra.mxu0 %v233
    %1445 = vmatpush.msra.mxu0 %v229
    %1446 = vmatpush.msra.mxu0 %v225
    %1447 = vmatpush.msra.mxu0 %v221
    %1448 = vmatpush.msra.mxu0 %v217
    %1449 = vmatpush.msra.mxu0 %v213
    %1450 = vmatpush.msra.mxu0 %v209
    %1451 = vmatpush.msra.mxu0 %v205
    %1452 = vmatpush.msra.mxu0 %v201
    %1453 = vmatpush.msra.mxu0 %v197
    %1454 = vmatmul.f32.gmra.mxu0 %v1167
    %v1455 = vpop.f32.mrf.mxu0
    %v1456 = vadd.f32 0.0, %v1455
    %1457 = vdwg.mxu0
    %1458 = vmatpush.msra.mxu0 %v258
    %1459 = vmatpush.msra.mxu0 %v254
    %1460 = vmatpush.msra.mxu0 %v250
    %1461 = vmatpush.msra.mxu0 %v246
    %1462 = vmatpush.msra.mxu0 %v242
    %1463 = vmatpush.msra.mxu0 %v238
    %1464 = vmatpush.msra.mxu0 %v234
    %1465 = vmatpush.msra.mxu0 %v230
    %1466 = vmatpush.msra.mxu0 %v226
    %1467 = vmatpush.msra.mxu0 %v222
    %1468 = vmatpush.msra.mxu0 %v218
    %1469 = vmatpush.msra.mxu0 %v214
    %1470 = vmatpush.msra.mxu0 %v210
    %1471 = vmatpush.msra.mxu0 %v206
    %1472 = vmatpush.msra.mxu0 %v202
    %1473 = vmatpush.msra.mxu0 %v198
    %1474 = vmatmul.f32.gmra.mxu0 %v1167
    %v1475 = vpop.f32.mrf.mxu0
    %v1476 = vadd.f32 0.0, %v1475
    %1477 = vdwg.mxu0
    %v1478 = vadd.f32 %v495, %v1416
    %v1479 = vadd.f32 %v536, %v1436
    %v1480 = vadd.f32 %v577, %v1456
    %v1481 = vadd.f32 %v618, %v1476
    %v1482 = vxor.u32 %v1478, 2147483648
    %v1483 = vmul.f32 %v1482, 1.442695
    %v1484 = vpow.pop %v1483
    %v1485 = vadd.f32 %v1484, 1.0
    %v1486 = vrcp.pop %v1485
    %v1487 = vmul.f32 %v1485, %v1486
    %v1488 = vsub.f32 1.0, %v1487
    %v1489 = vmul.f32 %v1486, %v1488
    %v1490 = vadd.f32 %v1486, %v1489
    %vm1491 = vweird.f32 %v1485
    %vm1492 = vweird.f32 %v1486
    %vm1493 = vmor %vm1491, %vm1492
    %v1494 = vsel %vm1493, %v1486, %v1490
    %v1495 = vand.u32 2147483647, %v1485
    %vm1496 = vcmp.eq.f32.partialorder %v1495, 8.507059e+37
    %v1497 = vand.u32 %v1485, 2147483648
    %v1498 = vor.u32 1.1754944e-38, %v1497
    %v1499 = vsel %vm1496, %v1498, %v1494
    %v1500 = vmul.f32 1.0, %v1499
    %v1501 = vxor.u32 %v1479, 2147483648
    %v1502 = vmul.f32 %v1501, 1.442695
    %v1503 = vpow.pop %v1502
    %v1504 = vadd.f32 %v1503, 1.0
    %v1505 = vrcp.pop %v1504
    %v1506 = vmul.f32 %v1504, %v1505
    %v1507 = vsub.f32 1.0, %v1506
    %v1508 = vmul.f32 %v1505, %v1507
    %v1509 = vadd.f32 %v1505, %v1508
    %vm1510 = vweird.f32 %v1504
    %vm1511 = vweird.f32 %v1505
    %vm1512 = vmor %vm1510, %vm1511
    %v1513 = vsel %vm1512, %v1505, %v1509
    %v1514 = vand.u32 2147483647, %v1504
    %vm1515 = vcmp.eq.f32.partialorder %v1514, 8.507059e+37
    %v1516 = vand.u32 %v1504, 2147483648
    %v1517 = vor.u32 1.1754944e-38, %v1516
    %v1518 = vsel %vm1515, %v1517, %v1513
    %v1519 = vmul.f32 1.0, %v1518
    %v1520 = vtanh.pop %v1480
    %v1521 = vxor.u32 %v1481, 2147483648
    %v1522 = vmul.f32 %v1521, 1.442695
    %v1523 = vpow.pop %v1522
    %v1524 = vadd.f32 %v1523, 1.0
    %v1525 = vrcp.pop %v1524
    %v1526 = vmul.f32 %v1524, %v1525
    %v1527 = vsub.f32 1.0, %v1526
    %v1528 = vmul.f32 %v1525, %v1527
    %v1529 = vadd.f32 %v1525, %v1528
    %vm1530 = vweird.f32 %v1524
    %vm1531 = vweird.f32 %v1525
    %vm1532 = vmor %vm1530, %vm1531
    %v1533 = vsel %vm1532, %v1525, %v1529
    %v1534 = vand.u32 2147483647, %v1524
    %vm1535 = vcmp.eq.f32.partialorder %v1534, 8.507059e+37
    %v1536 = vand.u32 %v1524, 2147483648
    %v1537 = vor.u32 1.1754944e-38, %v1536
    %v1538 = vsel %vm1535, %v1537, %v1533
    %v1539 = vmul.f32 1.0, %v1538
    %v1540 = vmul.f32 %v1519, %v1165
    %v1541 = vmul.f32 %v1500, %v1520
    %v1542 = vadd.f32 %v1540, %v1541
    %v1543 = vtanh.pop %v1542
    %v1544 = vmul.f32 %v1539, %v1543
    %1545 = vmatpush.msra.mxu0 %v319
    %1546 = vmatpush.msra.mxu0 %v315
    %1547 = vmatpush.msra.mxu0 %v311
    %1548 = vmatpush.msra.mxu0 %v307
    %1549 = vmatpush.msra.mxu0 %v303
    %1550 = vmatpush.msra.mxu0 %v299
    %1551 = vmatpush.msra.mxu0 %v295
    %1552 = vmatpush.msra.mxu0 %v291
    %1553 = vmatpush.msra.mxu0 %v287
    %1554 = vmatpush.msra.mxu0 %v283
    %1555 = vmatpush.msra.mxu0 %v279
    %1556 = vmatpush.msra.mxu0 %v275
    %1557 = vmatpush.msra.mxu0 %v271
    %1558 = vmatpush.msra.mxu0 %v267
    %1559 = vmatpush.msra.mxu0 %v263
    %1560 = vmatpush.msra.mxu0 %v259
    %1561 = vmatmul.f32.gmra.mxu0 %v1544
    %v1562 = vpop.f32.mrf.mxu0
    %v1563 = vadd.f32 %v783, %v1562
    %1564 = vdwg.mxu0
    %1565 = vmatpush.msra.mxu0 %v383
    %1566 = vmatpush.msra.mxu0 %v379
    %1567 = vmatpush.msra.mxu0 %v375
    %1568 = vmatpush.msra.mxu0 %v371
    %1569 = vmatpush.msra.mxu0 %v367
    %1570 = vmatpush.msra.mxu0 %v363
    %1571 = vmatpush.msra.mxu0 %v359
    %1572 = vmatpush.msra.mxu0 %v355
    %1573 = vmatpush.msra.mxu0 %v351
    %1574 = vmatpush.msra.mxu0 %v347
    %1575 = vmatpush.msra.mxu0 %v343
    %1576 = vmatpush.msra.mxu0 %v339
    %1577 = vmatpush.msra.mxu0 %v335
    %1578 = vmatpush.msra.mxu0 %v331
    %1579 = vmatpush.msra.mxu0 %v327
    %1580 = vmatpush.msra.mxu0 %v323
    %1581 = vmatmul.f32.gmra.mxu0 %v1390
    %v1582 = vpop.f32.mrf.mxu0
    %v1583 = vadd.f32 %v1563, %v1582
    %1584 = vdwg.mxu0
    %1585 = vmatpush.msra.mxu0 %v320
    %1586 = vmatpush.msra.mxu0 %v316
    %1587 = vmatpush.msra.mxu0 %v312
    %1588 = vmatpush.msra.mxu0 %v308
    %1589 = vmatpush.msra.mxu0 %v304
    %1590 = vmatpush.msra.mxu0 %v300
    %1591 = vmatpush.msra.mxu0 %v296
    %1592 = vmatpush.msra.mxu0 %v292
    %1593 = vmatpush.msra.mxu0 %v288
    %1594 = vmatpush.msra.mxu0 %v284
    %1595 = vmatpush.msra.mxu0 %v280
    %1596 = vmatpush.msra.mxu0 %v276
    %1597 = vmatpush.msra.mxu0 %v272
    %1598 = vmatpush.msra.mxu0 %v268
    %1599 = vmatpush.msra.mxu0 %v264
    %1600 = vmatpush.msra.mxu0 %v260
    %1601 = vmatmul.f32.gmra.mxu0 %v1544
    %v1602 = vpop.f32.mrf.mxu0
    %v1603 = vadd.f32 %v784, %v1602
    %1604 = vdwg.mxu0
    %1605 = vmatpush.msra.mxu0 %v384
    %1606 = vmatpush.msra.mxu0 %v380
    %1607 = vmatpush.msra.mxu0 %v376
    %1608 = vmatpush.msra.mxu0 %v372
    %1609 = vmatpush.msra.mxu0 %v368
    %1610 = vmatpush.msra.mxu0 %v364
    %1611 = vmatpush.msra.mxu0 %v360
    %1612 = vmatpush.msra.mxu0 %v356
    %1613 = vmatpush.msra.mxu0 %v352
    %1614 = vmatpush.msra.mxu0 %v348
    %1615 = vmatpush.msra.mxu0 %v344
    %1616 = vmatpush.msra.mxu0 %v340
    %1617 = vmatpush.msra.mxu0 %v336
    %1618 = vmatpush.msra.mxu0 %v332
    %1619 = vmatpush.msra.mxu0 %v328
    %1620 = vmatpush.msra.mxu0 %v324
    %1621 = vmatmul.f32.gmra.mxu0 %v1390
    %v1622 = vpop.f32.mrf.mxu0
    %v1623 = vadd.f32 %v1603, %v1622
    %1624 = vdwg.mxu0
    %1625 = vmatpush.msra.mxu0 %v321
    %1626 = vmatpush.msra.mxu0 %v317
    %1627 = vmatpush.msra.mxu0 %v313
    %1628 = vmatpush.msra.mxu0 %v309
    %1629 = vmatpush.msra.mxu0 %v305
    %1630 = vmatpush.msra.mxu0 %v301
    %1631 = vmatpush.msra.mxu0 %v297
    %1632 = vmatpush.msra.mxu0 %v293
    %1633 = vmatpush.msra.mxu0 %v289
    %1634 = vmatpush.msra.mxu0 %v285
    %1635 = vmatpush.msra.mxu0 %v281
    %1636 = vmatpush.msra.mxu0 %v277
    %1637 = vmatpush.msra.mxu0 %v273
    %1638 = vmatpush.msra.mxu0 %v269
    %1639 = vmatpush.msra.mxu0 %v265
    %1640 = vmatpush.msra.mxu0 %v261
    %1641 = vmatmul.f32.gmra.mxu0 %v1544
    %v1642 = vpop.f32.mrf.mxu0
    %v1643 = vadd.f32 %v785, %v1642
    %1644 = vdwg.mxu0
    %1645 = vmatpush.msra.mxu0 %v385
    %1646 = vmatpush.msra.mxu0 %v381
    %1647 = vmatpush.msra.mxu0 %v377
    %1648 = vmatpush.msra.mxu0 %v373
    %1649 = vmatpush.msra.mxu0 %v369
    %1650 = vmatpush.msra.mxu0 %v365
    %1651 = vmatpush.msra.mxu0 %v361
    %1652 = vmatpush.msra.mxu0 %v357
    %1653 = vmatpush.msra.mxu0 %v353
    %1654 = vmatpush.msra.mxu0 %v349
    %1655 = vmatpush.msra.mxu0 %v345
    %1656 = vmatpush.msra.mxu0 %v341
    %1657 = vmatpush.msra.mxu0 %v337
    %1658 = vmatpush.msra.mxu0 %v333
    %1659 = vmatpush.msra.mxu0 %v329
    %1660 = vmatpush.msra.mxu0 %v325
    %1661 = vmatmul.f32.gmra.mxu0 %v1390
    %v1662 = vpop.f32.mrf.mxu0
    %v1663 = vadd.f32 %v1643, %v1662
    %1664 = vdwg.mxu0
    %1665 = vmatpush.msra.mxu0 %v322
    %1666 = vmatpush.msra.mxu0 %v318
    %1667 = vmatpush.msra.mxu0 %v314
    %1668 = vmatpush.msra.mxu0 %v310
    %1669 = vmatpush.msra.mxu0 %v306
    %1670 = vmatpush.msra.mxu0 %v302
    %1671 = vmatpush.msra.mxu0 %v298
    %1672 = vmatpush.msra.mxu0 %v294
    %1673 = vmatpush.msra.mxu0 %v290
    %1674 = vmatpush.msra.mxu0 %v286
    %1675 = vmatpush.msra.mxu0 %v282
    %1676 = vmatpush.msra.mxu0 %v278
    %1677 = vmatpush.msra.mxu0 %v274
    %1678 = vmatpush.msra.mxu0 %v270
    %1679 = vmatpush.msra.mxu0 %v266
    %1680 = vmatpush.msra.mxu0 %v262
    %1681 = vmatmul.f32.gmra.mxu0 %v1544
    %v1682 = vpop.f32.mrf.mxu0
    %v1683 = vadd.f32 %v786, %v1682
    %1684 = vdwg.mxu0
    %1685 = vmatpush.msra.mxu0 %v386
    %1686 = vmatpush.msra.mxu0 %v382
    %1687 = vmatpush.msra.mxu0 %v378
    %1688 = vmatpush.msra.mxu0 %v374
    %1689 = vmatpush.msra.mxu0 %v370
    %1690 = vmatpush.msra.mxu0 %v366
    %1691 = vmatpush.msra.mxu0 %v362
    %1692 = vmatpush.msra.mxu0 %v358
    %1693 = vmatpush.msra.mxu0 %v354
    %1694 = vmatpush.msra.mxu0 %v350
    %1695 = vmatpush.msra.mxu0 %v346
    %1696 = vmatpush.msra.mxu0 %v342
    %1697 = vmatpush.msra.mxu0 %v338
    %1698 = vmatpush.msra.mxu0 %v334
    %1699 = vmatpush.msra.mxu0 %v330
    %1700 = vmatpush.msra.mxu0 %v326
    %1701 = vmatmul.f32.gmra.mxu0 %v1390
    %v1702 = vpop.f32.mrf.mxu0
    %v1703 = vadd.f32 %v1683, %v1702
    %1704 = vdwg.mxu0
    %v1705 = vxor.u32 %v1583, 2147483648
    %v1706 = vmul.f32 %v1705, 1.442695
    %v1707 = vpow.pop %v1706
    %v1708 = vadd.f32 %v1707, 1.0
    %v1709 = vrcp.pop %v1708
    %v1710 = vmul.f32 %v1708, %v1709
    %v1711 = vsub.f32 1.0, %v1710
    %v1712 = vmul.f32 %v1709, %v1711
    %v1713 = vadd.f32 %v1709, %v1712
    %vm1714 = vweird.f32 %v1708
    %vm1715 = vweird.f32 %v1709
    %vm1716 = vmor %vm1714, %vm1715
    %v1717 = vsel %vm1716, %v1709, %v1713
    %v1718 = vand.u32 2147483647, %v1708
    %vm1719 = vcmp.eq.f32.partialorder %v1718, 8.507059e+37
    %v1720 = vand.u32 %v1708, 2147483648
    %v1721 = vor.u32 1.1754944e-38, %v1720
    %v1722 = vsel %vm1719, %v1721, %v1717
    %v1723 = vmul.f32 1.0, %v1722
    %v1724 = vxor.u32 %v1623, 2147483648
    %v1725 = vmul.f32 %v1724, 1.442695
    %v1726 = vpow.pop %v1725
    %v1727 = vadd.f32 %v1726, 1.0
    %v1728 = vrcp.pop %v1727
    %v1729 = vmul.f32 %v1727, %v1728
    %v1730 = vsub.f32 1.0, %v1729
    %v1731 = vmul.f32 %v1728, %v1730
    %v1732 = vadd.f32 %v1728, %v1731
    %vm1733 = vweird.f32 %v1727
    %vm1734 = vweird.f32 %v1728
    %vm1735 = vmor %vm1733, %vm1734
    %v1736 = vsel %vm1735, %v1728, %v1732
    %v1737 = vand.u32 2147483647, %v1727
    %vm1738 = vcmp.eq.f32.partialorder %v1737, 8.507059e+37
    %v1739 = vand.u32 %v1727, 2147483648
    %v1740 = vor.u32 1.1754944e-38, %v1739
    %v1741 = vsel %vm1738, %v1740, %v1736
    %v1742 = vmul.f32 1.0, %v1741
    %v1743 = vtanh.pop %v1663
    %v1744 = vxor.u32 %v1703, 2147483648
    %v1745 = vmul.f32 %v1744, 1.442695
    %v1746 = vpow.pop %v1745
    %v1747 = vadd.f32 %v1746, 1.0
    %v1748 = vrcp.pop %v1747
    %v1749 = vmul.f32 %v1747, %v1748
    %v1750 = vsub.f32 1.0, %v1749
    %v1751 = vmul.f32 %v1748, %v1750
    %v1752 = vadd.f32 %v1748, %v1751
    %vm1753 = vweird.f32 %v1747
    %vm1754 = vweird.f32 %v1748
    %vm1755 = vmor %vm1753, %vm1754
    %v1756 = vsel %vm1755, %v1748, %v1752
    %v1757 = vand.u32 2147483647, %v1747
    %vm1758 = vcmp.eq.f32.partialorder %v1757, 8.507059e+37
    %v1759 = vand.u32 %v1747, 2147483648
    %v1760 = vor.u32 1.1754944e-38, %v1759
    %v1761 = vsel %vm1758, %v1760, %v1756
    %v1762 = vmul.f32 1.0, %v1761
    %v1763 = vmul.f32 %v1742, %v1388
    %v1764 = vmul.f32 %v1723, %v1743
    %v1765 = vadd.f32 %v1763, %v1764
    %v1766 = vtanh.pop %v1765
    %v1767 = vmul.f32 %v1762, %v1766
    %vm1768 = vcmp.eq.s32.totalorder %v388, 2
    %v1769 = vsel %vm1768, 1, 0
    %1770 = vset.pattern.permute.xlu0 0
    %1771 = vperm.xlu0 %1770, %v1769
    %v1772 = vpop.permute.xlu0 %1771
    %vm1773 = vcmp.eq.s32.totalorder %v1772, 1
    %v1774 = vsel %vm1773, %v1767, %v1397
    %1775 = vmatpush.msra.mxu0 %v255
    %1776 = vmatpush.msra.mxu0 %v251
    %1777 = vmatpush.msra.mxu0 %v247
    %1778 = vmatpush.msra.mxu0 %v243
    %1779 = vmatpush.msra.mxu0 %v239
    %1780 = vmatpush.msra.mxu0 %v235
    %1781 = vmatpush.msra.mxu0 %v231
    %1782 = vmatpush.msra.mxu0 %v227
    %1783 = vmatpush.msra.mxu0 %v223
    %1784 = vmatpush.msra.mxu0 %v219
    %1785 = vmatpush.msra.mxu0 %v215
    %1786 = vmatpush.msra.mxu0 %v211
    %1787 = vmatpush.msra.mxu0 %v207
    %1788 = vmatpush.msra.mxu0 %v203
    %1789 = vmatpush.msra.mxu0 %v199
    %1790 = vmatpush.msra.mxu0 %v195
    %1791 = vmatmul.f32.gmra.mxu0 %v1544
    %v1792 = vpop.f32.mrf.mxu0
    %v1793 = vadd.f32 0.0, %v1792
    %1794 = vdwg.mxu0
    %1795 = vmatpush.msra.mxu0 %v256
    %1796 = vmatpush.msra.mxu0 %v252
    %1797 = vmatpush.msra.mxu0 %v248
    %1798 = vmatpush.msra.mxu0 %v244
    %1799 = vmatpush.msra.mxu0 %v240
    %1800 = vmatpush.msra.mxu0 %v236
    %1801 = vmatpush.msra.mxu0 %v232
    %1802 = vmatpush.msra.mxu0 %v228
    %1803 = vmatpush.msra.mxu0 %v224
    %1804 = vmatpush.msra.mxu0 %v220
    %1805 = vmatpush.msra.mxu0 %v216
    %1806 = vmatpush.msra.mxu0 %v212
    %1807 = vmatpush.msra.mxu0 %v208
    %1808 = vmatpush.msra.mxu0 %v204
    %1809 = vmatpush.msra.mxu0 %v200
    %1810 = vmatpush.msra.mxu0 %v196
    %1811 = vmatmul.f32.gmra.mxu0 %v1544
    %v1812 = vpop.f32.mrf.mxu0
    %v1813 = vadd.f32 0.0, %v1812
    %1814 = vdwg.mxu0
    %1815 = vmatpush.msra.mxu0 %v257
    %1816 = vmatpush.msra.mxu0 %v253
    %1817 = vmatpush.msra.mxu0 %v249
    %1818 = vmatpush.msra.mxu0 %v245
    %1819 = vmatpush.msra.mxu0 %v241
    %1820 = vmatpush.msra.mxu0 %v237
    %1821 = vmatpush.msra.mxu0 %v233
    %1822 = vmatpush.msra.mxu0 %v229
    %1823 = vmatpush.msra.mxu0 %v225
    %1824 = vmatpush.msra.mxu0 %v221
    %1825 = vmatpush.msra.mxu0 %v217
    %1826 = vmatpush.msra.mxu0 %v213
    %1827 = vmatpush.msra.mxu0 %v209
    %1828 = vmatpush.msra.mxu0 %v205
    %1829 = vmatpush.msra.mxu0 %v201
    %1830 = vmatpush.msra.mxu0 %v197
    %1831 = vmatmul.f32.gmra.mxu0 %v1544
    %v1832 = vpop.f32.mrf.mxu0
    %v1833 = vadd.f32 0.0, %v1832
    %1834 = vdwg.mxu0
    %1835 = vmatpush.msra.mxu0 %v258
    %1836 = vmatpush.msra.mxu0 %v254
    %1837 = vmatpush.msra.mxu0 %v250
    %1838 = vmatpush.msra.mxu0 %v246
    %1839 = vmatpush.msra.mxu0 %v242
    %1840 = vmatpush.msra.mxu0 %v238
    %1841 = vmatpush.msra.mxu0 %v234
    %1842 = vmatpush.msra.mxu0 %v230
    %1843 = vmatpush.msra.mxu0 %v226
    %1844 = vmatpush.msra.mxu0 %v222
    %1845 = vmatpush.msra.mxu0 %v218
    %1846 = vmatpush.msra.mxu0 %v214
    %1847 = vmatpush.msra.mxu0 %v210
    %1848 = vmatpush.msra.mxu0 %v206
    %1849 = vmatpush.msra.mxu0 %v202
    %1850 = vmatpush.msra.mxu0 %v198
    %1851 = vmatmul.f32.gmra.mxu0 %v1544
    %v1852 = vpop.f32.mrf.mxu0
    %v1853 = vadd.f32 0.0, %v1852
    %1854 = vdwg.mxu0
    %v1855 = vadd.f32 %v498, %v1793
    %v1856 = vadd.f32 %v539, %v1813
    %v1857 = vadd.f32 %v580, %v1833
    %v1858 = vadd.f32 %v621, %v1853
    %v1859 = vxor.u32 %v1855, 2147483648
    %v1860 = vmul.f32 %v1859, 1.442695
    %v1861 = vpow.pop %v1860
    %v1862 = vadd.f32 %v1861, 1.0
    %v1863 = vrcp.pop %v1862
    %v1864 = vmul.f32 %v1862, %v1863
    %v1865 = vsub.f32 1.0, %v1864
    %v1866 = vmul.f32 %v1863, %v1865
    %v1867 = vadd.f32 %v1863, %v1866
    %vm1868 = vweird.f32 %v1862
    %vm1869 = vweird.f32 %v1863
    %vm1870 = vmor %vm1868, %vm1869
    %v1871 = vsel %vm1870, %v1863, %v1867
    %v1872 = vand.u32 2147483647, %v1862
    %vm1873 = vcmp.eq.f32.partialorder %v1872, 8.507059e+37
    %v1874 = vand.u32 %v1862, 2147483648
    %v1875 = vor.u32 1.1754944e-38, %v1874
    %v1876 = vsel %vm1873, %v1875, %v1871
    %v1877 = vmul.f32 1.0, %v1876
    %v1878 = vxor.u32 %v1856, 2147483648
    %v1879 = vmul.f32 %v1878, 1.442695
    %v1880 = vpow.pop %v1879
    %v1881 = vadd.f32 %v1880, 1.0
    %v1882 = vrcp.pop %v1881
    %v1883 = vmul.f32 %v1881, %v1882
    %v1884 = vsub.f32 1.0, %v1883
    %v1885 = vmul.f32 %v1882, %v1884
    %v1886 = vadd.f32 %v1882, %v1885
    %vm1887 = vweird.f32 %v1881
    %vm1888 = vweird.f32 %v1882
    %vm1889 = vmor %vm1887, %vm1888
    %v1890 = vsel %vm1889, %v1882, %v1886
    %v1891 = vand.u32 2147483647, %v1881
    %vm1892 = vcmp.eq.f32.partialorder %v1891, 8.507059e+37
    %v1893 = vand.u32 %v1881, 2147483648
    %v1894 = vor.u32 1.1754944e-38, %v1893
    %v1895 = vsel %vm1892, %v1894, %v1890
    %v1896 = vmul.f32 1.0, %v1895
    %v1897 = vtanh.pop %v1857
    %v1898 = vxor.u32 %v1858, 2147483648
    %v1899 = vmul.f32 %v1898, 1.442695
    %v1900 = vpow.pop %v1899
    %v1901 = vadd.f32 %v1900, 1.0
    %v1902 = vrcp.pop %v1901
    %v1903 = vmul.f32 %v1901, %v1902
    %v1904 = vsub.f32 1.0, %v1903
    %v1905 = vmul.f32 %v1902, %v1904
    %v1906 = vadd.f32 %v1902, %v1905
    %vm1907 = vweird.f32 %v1901
    %vm1908 = vweird.f32 %v1902
    %vm1909 = vmor %vm1907, %vm1908
    %v1910 = vsel %vm1909, %v1902, %v1906
    %v1911 = vand.u32 2147483647, %v1901
    %vm1912 = vcmp.eq.f32.partialorder %v1911, 8.507059e+37
    %v1913 = vand.u32 %v1901, 2147483648
    %v1914 = vor.u32 1.1754944e-38, %v1913
    %v1915 = vsel %vm1912, %v1914, %v1910
    %v1916 = vmul.f32 1.0, %v1915
    %v1917 = vmul.f32 %v1896, %v1542
    %v1918 = vmul.f32 %v1877, %v1897
    %v1919 = vadd.f32 %v1917, %v1918
    %v1920 = vtanh.pop %v1919
    %v1921 = vmul.f32 %v1916, %v1920
    %1922 = vmatpush.msra.mxu0 %v319
    %1923 = vmatpush.msra.mxu0 %v315
    %1924 = vmatpush.msra.mxu0 %v311
    %1925 = vmatpush.msra.mxu0 %v307
    %1926 = vmatpush.msra.mxu0 %v303
    %1927 = vmatpush.msra.mxu0 %v299
    %1928 = vmatpush.msra.mxu0 %v295
    %1929 = vmatpush.msra.mxu0 %v291
    %1930 = vmatpush.msra.mxu0 %v287
    %1931 = vmatpush.msra.mxu0 %v283
    %1932 = vmatpush.msra.mxu0 %v279
    %1933 = vmatpush.msra.mxu0 %v275
    %1934 = vmatpush.msra.mxu0 %v271
    %1935 = vmatpush.msra.mxu0 %v267
    %1936 = vmatpush.msra.mxu0 %v263
    %1937 = vmatpush.msra.mxu0 %v259
    %1938 = vmatmul.f32.gmra.mxu0 %v1921
    %v1939 = vpop.f32.mrf.mxu0
    %v1940 = vadd.f32 %v783, %v1939
    %1941 = vdwg.mxu0
    %1942 = vmatpush.msra.mxu0 %v383
    %1943 = vmatpush.msra.mxu0 %v379
    %1944 = vmatpush.msra.mxu0 %v375
    %1945 = vmatpush.msra.mxu0 %v371
    %1946 = vmatpush.msra.mxu0 %v367
    %1947 = vmatpush.msra.mxu0 %v363
    %1948 = vmatpush.msra.mxu0 %v359
    %1949 = vmatpush.msra.mxu0 %v355
    %1950 = vmatpush.msra.mxu0 %v351
    %1951 = vmatpush.msra.mxu0 %v347
    %1952 = vmatpush.msra.mxu0 %v343
    %1953 = vmatpush.msra.mxu0 %v339
    %1954 = vmatpush.msra.mxu0 %v335
    %1955 = vmatpush.msra.mxu0 %v331
    %1956 = vmatpush.msra.mxu0 %v327
    %1957 = vmatpush.msra.mxu0 %v323
    %1958 = vmatmul.f32.gmra.mxu0 %v1767
    %v1959 = vpop.f32.mrf.mxu0
    %v1960 = vadd.f32 %v1940, %v1959
    %1961 = vdwg.mxu0
    %1962 = vmatpush.msra.mxu0 %v320
    %1963 = vmatpush.msra.mxu0 %v316
    %1964 = vmatpush.msra.mxu0 %v312
    %1965 = vmatpush.msra.mxu0 %v308
    %1966 = vmatpush.msra.mxu0 %v304
    %1967 = vmatpush.msra.mxu0 %v300
    %1968 = vmatpush.msra.mxu0 %v296
    %1969 = vmatpush.msra.mxu0 %v292
    %1970 = vmatpush.msra.mxu0 %v288
    %1971 = vmatpush.msra.mxu0 %v284
    %1972 = vmatpush.msra.mxu0 %v280
    %1973 = vmatpush.msra.mxu0 %v276
    %1974 = vmatpush.msra.mxu0 %v272
    %1975 = vmatpush.msra.mxu0 %v268
    %1976 = vmatpush.msra.mxu0 %v264
    %1977 = vmatpush.msra.mxu0 %v260
    %1978 = vmatmul.f32.gmra.mxu0 %v1921
    %v1979 = vpop.f32.mrf.mxu0
    %v1980 = vadd.f32 %v784, %v1979
    %1981 = vdwg.mxu0
    %1982 = vmatpush.msra.mxu0 %v384
    %1983 = vmatpush.msra.mxu0 %v380
    %1984 = vmatpush.msra.mxu0 %v376
    %1985 = vmatpush.msra.mxu0 %v372
    %1986 = vmatpush.msra.mxu0 %v368
    %1987 = vmatpush.msra.mxu0 %v364
    %1988 = vmatpush.msra.mxu0 %v360
    %1989 = vmatpush.msra.mxu0 %v356
    %1990 = vmatpush.msra.mxu0 %v352
    %1991 = vmatpush.msra.mxu0 %v348
    %1992 = vmatpush.msra.mxu0 %v344
    %1993 = vmatpush.msra.mxu0 %v340
    %1994 = vmatpush.msra.mxu0 %v336
    %1995 = vmatpush.msra.mxu0 %v332
    %1996 = vmatpush.msra.mxu0 %v328
    %1997 = vmatpush.msra.mxu0 %v324
    %1998 = vmatmul.f32.gmra.mxu0 %v1767
    %v1999 = vpop.f32.mrf.mxu0
    %v2000 = vadd.f32 %v1980, %v1999
    %2001 = vdwg.mxu0
    %2002 = vmatpush.msra.mxu0 %v321
    %2003 = vmatpush.msra.mxu0 %v317
    %2004 = vmatpush.msra.mxu0 %v313
    %2005 = vmatpush.msra.mxu0 %v309
    %2006 = vmatpush.msra.mxu0 %v305
    %2007 = vmatpush.msra.mxu0 %v301
    %2008 = vmatpush.msra.mxu0 %v297
    %2009 = vmatpush.msra.mxu0 %v293
    %2010 = vmatpush.msra.mxu0 %v289
    %2011 = vmatpush.msra.mxu0 %v285
    %2012 = vmatpush.msra.mxu0 %v281
    %2013 = vmatpush.msra.mxu0 %v277
    %2014 = vmatpush.msra.mxu0 %v273
    %2015 = vmatpush.msra.mxu0 %v269
    %2016 = vmatpush.msra.mxu0 %v265
    %2017 = vmatpush.msra.mxu0 %v261
    %2018 = vmatmul.f32.gmra.mxu0 %v1921
    %v2019 = vpop.f32.mrf.mxu0
    %v2020 = vadd.f32 %v785, %v2019
    %2021 = vdwg.mxu0
    %2022 = vmatpush.msra.mxu0 %v385
    %2023 = vmatpush.msra.mxu0 %v381
    %2024 = vmatpush.msra.mxu0 %v377
    %2025 = vmatpush.msra.mxu0 %v373
    %2026 = vmatpush.msra.mxu0 %v369
    %2027 = vmatpush.msra.mxu0 %v365
    %2028 = vmatpush.msra.mxu0 %v361
    %2029 = vmatpush.msra.mxu0 %v357
    %2030 = vmatpush.msra.mxu0 %v353
    %2031 = vmatpush.msra.mxu0 %v349
    %2032 = vmatpush.msra.mxu0 %v345
    %2033 = vmatpush.msra.mxu0 %v341
    %2034 = vmatpush.msra.mxu0 %v337
    %2035 = vmatpush.msra.mxu0 %v333
    %2036 = vmatpush.msra.mxu0 %v329
    %2037 = vmatpush.msra.mxu0 %v325
    %2038 = vmatmul.f32.gmra.mxu0 %v1767
    %v2039 = vpop.f32.mrf.mxu0
    %v2040 = vadd.f32 %v2020, %v2039
    %2041 = vdwg.mxu0
    %2042 = vmatpush.msra.mxu0 %v322
    %2043 = vmatpush.msra.mxu0 %v318
    %2044 = vmatpush.msra.mxu0 %v314
    %2045 = vmatpush.msra.mxu0 %v310
    %2046 = vmatpush.msra.mxu0 %v306
    %2047 = vmatpush.msra.mxu0 %v302
    %2048 = vmatpush.msra.mxu0 %v298
    %2049 = vmatpush.msra.mxu0 %v294
    %2050 = vmatpush.msra.mxu0 %v290
    %2051 = vmatpush.msra.mxu0 %v286
    %2052 = vmatpush.msra.mxu0 %v282
    %2053 = vmatpush.msra.mxu0 %v278
    %2054 = vmatpush.msra.mxu0 %v274
    %2055 = vmatpush.msra.mxu0 %v270
    %2056 = vmatpush.msra.mxu0 %v266
    %2057 = vmatpush.msra.mxu0 %v262
    %2058 = vmatmul.f32.gmra.mxu0 %v1921
    %v2059 = vpop.f32.mrf.mxu0
    %v2060 = vadd.f32 %v786, %v2059
    %2061 = vdwg.mxu0
    %2062 = vmatpush.msra.mxu0 %v386
    %2063 = vmatpush.msra.mxu0 %v382
    %2064 = vmatpush.msra.mxu0 %v378
    %2065 = vmatpush.msra.mxu0 %v374
    %2066 = vmatpush.msra.mxu0 %v370
    %2067 = vmatpush.msra.mxu0 %v366
    %2068 = vmatpush.msra.mxu0 %v362
    %2069 = vmatpush.msra.mxu0 %v358
    %2070 = vmatpush.msra.mxu0 %v354
    %2071 = vmatpush.msra.mxu0 %v350
    %2072 = vmatpush.msra.mxu0 %v346
    %2073 = vmatpush.msra.mxu0 %v342
    %2074 = vmatpush.msra.mxu0 %v338
    %2075 = vmatpush.msra.mxu0 %v334
    %2076 = vmatpush.msra.mxu0 %v330
    %2077 = vmatpush.msra.mxu0 %v326
    %2078 = vmatmul.f32.gmra.mxu0 %v1767
    %v2079 = vpop.f32.mrf.mxu0
    %v2080 = vadd.f32 %v2060, %v2079
    %2081 = vdwg.mxu0
    %v2082 = vxor.u32 %v1960, 2147483648
    %v2083 = vmul.f32 %v2082, 1.442695
    %v2084 = vpow.pop %v2083
    %v2085 = vadd.f32 %v2084, 1.0
    %v2086 = vrcp.pop %v2085
    %v2087 = vmul.f32 %v2085, %v2086
    %v2088 = vsub.f32 1.0, %v2087
    %v2089 = vmul.f32 %v2086, %v2088
    %v2090 = vadd.f32 %v2086, %v2089
    %vm2091 = vweird.f32 %v2085
    %vm2092 = vweird.f32 %v2086
    %vm2093 = vmor %vm2091, %vm2092
    %v2094 = vsel %vm2093, %v2086, %v2090
    %v2095 = vand.u32 2147483647, %v2085
    %vm2096 = vcmp.eq.f32.partialorder %v2095, 8.507059e+37
    %v2097 = vand.u32 %v2085, 2147483648
    %v2098 = vor.u32 1.1754944e-38, %v2097
    %v2099 = vsel %vm2096, %v2098, %v2094
    %v2100 = vmul.f32 1.0, %v2099
    %v2101 = vxor.u32 %v2000, 2147483648
    %v2102 = vmul.f32 %v2101, 1.442695
    %v2103 = vpow.pop %v2102
    %v2104 = vadd.f32 %v2103, 1.0
    %v2105 = vrcp.pop %v2104
    %v2106 = vmul.f32 %v2104, %v2105
    %v2107 = vsub.f32 1.0, %v2106
    %v2108 = vmul.f32 %v2105, %v2107
    %v2109 = vadd.f32 %v2105, %v2108
    %vm2110 = vweird.f32 %v2104
    %vm2111 = vweird.f32 %v2105
    %vm2112 = vmor %vm2110, %vm2111
    %v2113 = vsel %vm2112, %v2105, %v2109
    %v2114 = vand.u32 2147483647, %v2104
    %vm2115 = vcmp.eq.f32.partialorder %v2114, 8.507059e+37
    %v2116 = vand.u32 %v2104, 2147483648
    %v2117 = vor.u32 1.1754944e-38, %v2116
    %v2118 = vsel %vm2115, %v2117, %v2113
    %v2119 = vmul.f32 1.0, %v2118
    %v2120 = vtanh.pop %v2040
    %v2121 = vxor.u32 %v2080, 2147483648
    %v2122 = vmul.f32 %v2121, 1.442695
    %v2123 = vpow.pop %v2122
    %v2124 = vadd.f32 %v2123, 1.0
    %v2125 = vrcp.pop %v2124
    %v2126 = vmul.f32 %v2124, %v2125
    %v2127 = vsub.f32 1.0, %v2126
    %v2128 = vmul.f32 %v2125, %v2127
    %v2129 = vadd.f32 %v2125, %v2128
    %vm2130 = vweird.f32 %v2124
    %vm2131 = vweird.f32 %v2125
    %vm2132 = vmor %vm2130, %vm2131
    %v2133 = vsel %vm2132, %v2125, %v2129
    %v2134 = vand.u32 2147483647, %v2124
    %vm2135 = vcmp.eq.f32.partialorder %v2134, 8.507059e+37
    %v2136 = vand.u32 %v2124, 2147483648
    %v2137 = vor.u32 1.1754944e-38, %v2136
    %v2138 = vsel %vm2135, %v2137, %v2133
    %v2139 = vmul.f32 1.0, %v2138
    %v2140 = vmul.f32 %v2119, %v1765
    %v2141 = vmul.f32 %v2100, %v2120
    %v2142 = vadd.f32 %v2140, %v2141
    %v2143 = vtanh.pop %v2142
    %v2144 = vmul.f32 %v2139, %v2143
    %vm2145 = vcmp.eq.s32.totalorder %v388, 3
    %v2146 = vsel %vm2145, 1, 0
    %2147 = vset.pattern.permute.xlu0 0
    %2148 = vperm.xlu0 %2147, %v2146
    %v2149 = vpop.permute.xlu0 %2148
    %vm2150 = vcmp.eq.s32.totalorder %v2149, 1
    %v2151 = vsel %vm2150, %v2144, %v1774
    %2152 = vmatpush.msra.mxu0 %v255
    %2153 = vmatpush.msra.mxu0 %v251
    %2154 = vmatpush.msra.mxu0 %v247
    %2155 = vmatpush.msra.mxu0 %v243
    %2156 = vmatpush.msra.mxu0 %v239
    %2157 = vmatpush.msra.mxu0 %v235
    %2158 = vmatpush.msra.mxu0 %v231
    %2159 = vmatpush.msra.mxu0 %v227
    %2160 = vmatpush.msra.mxu0 %v223
    %2161 = vmatpush.msra.mxu0 %v219
    %2162 = vmatpush.msra.mxu0 %v215
    %2163 = vmatpush.msra.mxu0 %v211
    %2164 = vmatpush.msra.mxu0 %v207
    %2165 = vmatpush.msra.mxu0 %v203
    %2166 = vmatpush.msra.mxu0 %v199
    %2167 = vmatpush.msra.mxu0 %v195
    %2168 = vmatmul.f32.gmra.mxu0 %v1921
    %v2169 = vpop.f32.mrf.mxu0
    %v2170 = vadd.f32 0.0, %v2169
    %2171 = vdwg.mxu0
    %2172 = vmatpush.msra.mxu0 %v256
    %2173 = vmatpush.msra.mxu0 %v252
    %2174 = vmatpush.msra.mxu0 %v248
    %2175 = vmatpush.msra.mxu0 %v244
    %2176 = vmatpush.msra.mxu0 %v240
    %2177 = vmatpush.msra.mxu0 %v236
    %2178 = vmatpush.msra.mxu0 %v232
    %2179 = vmatpush.msra.mxu0 %v228
    %2180 = vmatpush.msra.mxu0 %v224
    %2181 = vmatpush.msra.mxu0 %v220
    %2182 = vmatpush.msra.mxu0 %v216
    %2183 = vmatpush.msra.mxu0 %v212
    %2184 = vmatpush.msra.mxu0 %v208
    %2185 = vmatpush.msra.mxu0 %v204
    %2186 = vmatpush.msra.mxu0 %v200
    %2187 = vmatpush.msra.mxu0 %v196
    %2188 = vmatmul.f32.gmra.mxu0 %v1921
    %v2189 = vpop.f32.mrf.mxu0
    %v2190 = vadd.f32 0.0, %v2189
    %2191 = vdwg.mxu0
    %2192 = vmatpush.msra.mxu0 %v257
    %2193 = vmatpush.msra.mxu0 %v253
    %2194 = vmatpush.msra.mxu0 %v249
    %2195 = vmatpush.msra.mxu0 %v245
    %2196 = vmatpush.msra.mxu0 %v241
    %2197 = vmatpush.msra.mxu0 %v237
    %2198 = vmatpush.msra.mxu0 %v233
    %2199 = vmatpush.msra.mxu0 %v229
    %2200 = vmatpush.msra.mxu0 %v225
    %2201 = vmatpush.msra.mxu0 %v221
    %2202 = vmatpush.msra.mxu0 %v217
    %2203 = vmatpush.msra.mxu0 %v213
    %2204 = vmatpush.msra.mxu0 %v209
    %2205 = vmatpush.msra.mxu0 %v205
    %2206 = vmatpush.msra.mxu0 %v201
    %2207 = vmatpush.msra.mxu0 %v197
    %2208 = vmatmul.f32.gmra.mxu0 %v1921
    %v2209 = vpop.f32.mrf.mxu0
    %v2210 = vadd.f32 0.0, %v2209
    %2211 = vdwg.mxu0
    %2212 = vmatpush.msra.mxu0 %v258
    %2213 = vmatpush.msra.mxu0 %v254
    %2214 = vmatpush.msra.mxu0 %v250
    %2215 = vmatpush.msra.mxu0 %v246
    %2216 = vmatpush.msra.mxu0 %v242
    %2217 = vmatpush.msra.mxu0 %v238
    %2218 = vmatpush.msra.mxu0 %v234
    %2219 = vmatpush.msra.mxu0 %v230
    %2220 = vmatpush.msra.mxu0 %v226
    %2221 = vmatpush.msra.mxu0 %v222
    %2222 = vmatpush.msra.mxu0 %v218
    %2223 = vmatpush.msra.mxu0 %v214
    %2224 = vmatpush.msra.mxu0 %v210
    %2225 = vmatpush.msra.mxu0 %v206
    %2226 = vmatpush.msra.mxu0 %v202
    %2227 = vmatpush.msra.mxu0 %v198
    %2228 = vmatmul.f32.gmra.mxu0 %v1921
    %v2229 = vpop.f32.mrf.mxu0
    %v2230 = vadd.f32 0.0, %v2229
    %2231 = vdwg.mxu0
    %v2232 = vadd.f32 %v501, %v2170
    %v2233 = vadd.f32 %v542, %v2190
    %v2234 = vadd.f32 %v583, %v2210
    %v2235 = vadd.f32 %v624, %v2230
    %v2236 = vxor.u32 %v2232, 2147483648
    %v2237 = vmul.f32 %v2236, 1.442695
    %v2238 = vpow.pop %v2237
    %v2239 = vadd.f32 %v2238, 1.0
    %v2240 = vrcp.pop %v2239
    %v2241 = vmul.f32 %v2239, %v2240
    %v2242 = vsub.f32 1.0, %v2241
    %v2243 = vmul.f32 %v2240, %v2242
    %v2244 = vadd.f32 %v2240, %v2243
    %vm2245 = vweird.f32 %v2239
    %vm2246 = vweird.f32 %v2240
    %vm2247 = vmor %vm2245, %vm2246
    %v2248 = vsel %vm2247, %v2240, %v2244
    %v2249 = vand.u32 2147483647, %v2239
    %vm2250 = vcmp.eq.f32.partialorder %v2249, 8.507059e+37
    %v2251 = vand.u32 %v2239, 2147483648
    %v2252 = vor.u32 1.1754944e-38, %v2251
    %v2253 = vsel %vm2250, %v2252, %v2248
    %v2254 = vmul.f32 1.0, %v2253
    %v2255 = vxor.u32 %v2233, 2147483648
    %v2256 = vmul.f32 %v2255, 1.442695
    %v2257 = vpow.pop %v2256
    %v2258 = vadd.f32 %v2257, 1.0
    %v2259 = vrcp.pop %v2258
    %v2260 = vmul.f32 %v2258, %v2259
    %v2261 = vsub.f32 1.0, %v2260
    %v2262 = vmul.f32 %v2259, %v2261
    %v2263 = vadd.f32 %v2259, %v2262
    %vm2264 = vweird.f32 %v2258
    %vm2265 = vweird.f32 %v2259
    %vm2266 = vmor %vm2264, %vm2265
    %v2267 = vsel %vm2266, %v2259, %v2263
    %v2268 = vand.u32 2147483647, %v2258
    %vm2269 = vcmp.eq.f32.partialorder %v2268, 8.507059e+37
    %v2270 = vand.u32 %v2258, 2147483648
    %v2271 = vor.u32 1.1754944e-38, %v2270
    %v2272 = vsel %vm2269, %v2271, %v2267
    %v2273 = vmul.f32 1.0, %v2272
    %v2274 = vtanh.pop %v2234
    %v2275 = vxor.u32 %v2235, 2147483648
    %v2276 = vmul.f32 %v2275, 1.442695
    %v2277 = vpow.pop %v2276
    %v2278 = vadd.f32 %v2277, 1.0
    %v2279 = vrcp.pop %v2278
    %v2280 = vmul.f32 %v2278, %v2279
    %v2281 = vsub.f32 1.0, %v2280
    %v2282 = vmul.f32 %v2279, %v2281
    %v2283 = vadd.f32 %v2279, %v2282
    %vm2284 = vweird.f32 %v2278
    %vm2285 = vweird.f32 %v2279
    %vm2286 = vmor %vm2284, %vm2285
    %v2287 = vsel %vm2286, %v2279, %v2283
    %v2288 = vand.u32 2147483647, %v2278
    %vm2289 = vcmp.eq.f32.partialorder %v2288, 8.507059e+37
    %v2290 = vand.u32 %v2278, 2147483648
    %v2291 = vor.u32 1.1754944e-38, %v2290
    %v2292 = vsel %vm2289, %v2291, %v2287
    %v2293 = vmul.f32 1.0, %v2292
    %v2294 = vmul.f32 %v2273, %v1919
    %v2295 = vmul.f32 %v2254, %v2274
    %v2296 = vadd.f32 %v2294, %v2295
    %v2297 = vtanh.pop %v2296
    %v2298 = vmul.f32 %v2293, %v2297
    %2299 = vmatpush.msra.mxu0 %v319
    %2300 = vmatpush.msra.mxu0 %v315
    %2301 = vmatpush.msra.mxu0 %v311
    %2302 = vmatpush.msra.mxu0 %v307
    %2303 = vmatpush.msra.mxu0 %v303
    %2304 = vmatpush.msra.mxu0 %v299
    %2305 = vmatpush.msra.mxu0 %v295
    %2306 = vmatpush.msra.mxu0 %v291
    %2307 = vmatpush.msra.mxu0 %v287
    %2308 = vmatpush.msra.mxu0 %v283
    %2309 = vmatpush.msra.mxu0 %v279
    %2310 = vmatpush.msra.mxu0 %v275
    %2311 = vmatpush.msra.mxu0 %v271
    %2312 = vmatpush.msra.mxu0 %v267
    %2313 = vmatpush.msra.mxu0 %v263
    %2314 = vmatpush.msra.mxu0 %v259
    %2315 = vmatmul.f32.gmra.mxu0 %v2298
    %v2316 = vpop.f32.mrf.mxu0
    %v2317 = vadd.f32 %v783, %v2316
    %2318 = vdwg.mxu0
    %2319 = vmatpush.msra.mxu0 %v383
    %2320 = vmatpush.msra.mxu0 %v379
    %2321 = vmatpush.msra.mxu0 %v375
    %2322 = vmatpush.msra.mxu0 %v371
    %2323 = vmatpush.msra.mxu0 %v367
    %2324 = vmatpush.msra.mxu0 %v363
    %2325 = vmatpush.msra.mxu0 %v359
    %2326 = vmatpush.msra.mxu0 %v355
    %2327 = vmatpush.msra.mxu0 %v351
    %2328 = vmatpush.msra.mxu0 %v347
    %2329 = vmatpush.msra.mxu0 %v343
    %2330 = vmatpush.msra.mxu0 %v339
    %2331 = vmatpush.msra.mxu0 %v335
    %2332 = vmatpush.msra.mxu0 %v331
    %2333 = vmatpush.msra.mxu0 %v327
    %2334 = vmatpush.msra.mxu0 %v323
    %2335 = vmatmul.f32.gmra.mxu0 %v2144
    %v2336 = vpop.f32.mrf.mxu0
    %v2337 = vadd.f32 %v2317, %v2336
    %2338 = vdwg.mxu0
    %2339 = vmatpush.msra.mxu0 %v320
    %2340 = vmatpush.msra.mxu0 %v316
    %2341 = vmatpush.msra.mxu0 %v312
    %2342 = vmatpush.msra.mxu0 %v308
    %2343 = vmatpush.msra.mxu0 %v304
    %2344 = vmatpush.msra.mxu0 %v300
    %2345 = vmatpush.msra.mxu0 %v296
    %2346 = vmatpush.msra.mxu0 %v292
    %2347 = vmatpush.msra.mxu0 %v288
    %2348 = vmatpush.msra.mxu0 %v284
    %2349 = vmatpush.msra.mxu0 %v280
    %2350 = vmatpush.msra.mxu0 %v276
    %2351 = vmatpush.msra.mxu0 %v272
    %2352 = vmatpush.msra.mxu0 %v268
    %2353 = vmatpush.msra.mxu0 %v264
    %2354 = vmatpush.msra.mxu0 %v260
    %2355 = vmatmul.f32.gmra.mxu0 %v2298
    %v2356 = vpop.f32.mrf.mxu0
    %v2357 = vadd.f32 %v784, %v2356
    %2358 = vdwg.mxu0
    %2359 = vmatpush.msra.mxu0 %v384
    %2360 = vmatpush.msra.mxu0 %v380
    %2361 = vmatpush.msra.mxu0 %v376
    %2362 = vmatpush.msra.mxu0 %v372
    %2363 = vmatpush.msra.mxu0 %v368
    %2364 = vmatpush.msra.mxu0 %v364
    %2365 = vmatpush.msra.mxu0 %v360
    %2366 = vmatpush.msra.mxu0 %v356
    %2367 = vmatpush.msra.mxu0 %v352
    %2368 = vmatpush.msra.mxu0 %v348
    %2369 = vmatpush.msra.mxu0 %v344
    %2370 = vmatpush.msra.mxu0 %v340
    %2371 = vmatpush.msra.mxu0 %v336
    %2372 = vmatpush.msra.mxu0 %v332
    %2373 = vmatpush.msra.mxu0 %v328
    %2374 = vmatpush.msra.mxu0 %v324
    %2375 = vmatmul.f32.gmra.mxu0 %v2144
    %v2376 = vpop.f32.mrf.mxu0
    %v2377 = vadd.f32 %v2357, %v2376
    %2378 = vdwg.mxu0
    %2379 = vmatpush.msra.mxu0 %v321
    %2380 = vmatpush.msra.mxu0 %v317
    %2381 = vmatpush.msra.mxu0 %v313
    %2382 = vmatpush.msra.mxu0 %v309
    %2383 = vmatpush.msra.mxu0 %v305
    %2384 = vmatpush.msra.mxu0 %v301
    %2385 = vmatpush.msra.mxu0 %v297
    %2386 = vmatpush.msra.mxu0 %v293
    %2387 = vmatpush.msra.mxu0 %v289
    %2388 = vmatpush.msra.mxu0 %v285
    %2389 = vmatpush.msra.mxu0 %v281
    %2390 = vmatpush.msra.mxu0 %v277
    %2391 = vmatpush.msra.mxu0 %v273
    %2392 = vmatpush.msra.mxu0 %v269
    %2393 = vmatpush.msra.mxu0 %v265
    %2394 = vmatpush.msra.mxu0 %v261
    %2395 = vmatmul.f32.gmra.mxu0 %v2298
    %v2396 = vpop.f32.mrf.mxu0
    %v2397 = vadd.f32 %v785, %v2396
    %2398 = vdwg.mxu0
    %2399 = vmatpush.msra.mxu0 %v385
    %2400 = vmatpush.msra.mxu0 %v381
    %2401 = vmatpush.msra.mxu0 %v377
    %2402 = vmatpush.msra.mxu0 %v373
    %2403 = vmatpush.msra.mxu0 %v369
    %2404 = vmatpush.msra.mxu0 %v365
    %2405 = vmatpush.msra.mxu0 %v361
    %2406 = vmatpush.msra.mxu0 %v357
    %2407 = vmatpush.msra.mxu0 %v353
    %2408 = vmatpush.msra.mxu0 %v349
    %2409 = vmatpush.msra.mxu0 %v345
    %2410 = vmatpush.msra.mxu0 %v341
    %2411 = vmatpush.msra.mxu0 %v337
    %2412 = vmatpush.msra.mxu0 %v333
    %2413 = vmatpush.msra.mxu0 %v329
    %2414 = vmatpush.msra.mxu0 %v325
    %2415 = vmatmul.f32.gmra.mxu0 %v2144
    %v2416 = vpop.f32.mrf.mxu0
    %v2417 = vadd.f32 %v2397, %v2416
    %2418 = vdwg.mxu0
    %2419 = vmatpush.msra.mxu0 %v322
    %2420 = vmatpush.msra.mxu0 %v318
    %2421 = vmatpush.msra.mxu0 %v314
    %2422 = vmatpush.msra.mxu0 %v310
    %2423 = vmatpush.msra.mxu0 %v306
    %2424 = vmatpush.msra.mxu0 %v302
    %2425 = vmatpush.msra.mxu0 %v298
    %2426 = vmatpush.msra.mxu0 %v294
    %2427 = vmatpush.msra.mxu0 %v290
    %2428 = vmatpush.msra.mxu0 %v286
    %2429 = vmatpush.msra.mxu0 %v282
    %2430 = vmatpush.msra.mxu0 %v278
    %2431 = vmatpush.msra.mxu0 %v274
    %2432 = vmatpush.msra.mxu0 %v270
    %2433 = vmatpush.msra.mxu0 %v266
    %2434 = vmatpush.msra.mxu0 %v262
    %2435 = vmatmul.f32.gmra.mxu0 %v2298
    %v2436 = vpop.f32.mrf.mxu0
    %v2437 = vadd.f32 %v786, %v2436
    %2438 = vdwg.mxu0
    %2439 = vmatpush.msra.mxu0 %v386
    %2440 = vmatpush.msra.mxu0 %v382
    %2441 = vmatpush.msra.mxu0 %v378
    %2442 = vmatpush.msra.mxu0 %v374
    %2443 = vmatpush.msra.mxu0 %v370
    %2444 = vmatpush.msra.mxu0 %v366
    %2445 = vmatpush.msra.mxu0 %v362
    %2446 = vmatpush.msra.mxu0 %v358
    %2447 = vmatpush.msra.mxu0 %v354
    %2448 = vmatpush.msra.mxu0 %v350
    %2449 = vmatpush.msra.mxu0 %v346
    %2450 = vmatpush.msra.mxu0 %v342
    %2451 = vmatpush.msra.mxu0 %v338
    %2452 = vmatpush.msra.mxu0 %v334
    %2453 = vmatpush.msra.mxu0 %v330
    %2454 = vmatpush.msra.mxu0 %v326
    %2455 = vmatmul.f32.gmra.mxu0 %v2144
    %v2456 = vpop.f32.mrf.mxu0
    %v2457 = vadd.f32 %v2437, %v2456
    %2458 = vdwg.mxu0
    %v2459 = vxor.u32 %v2337, 2147483648
    %v2460 = vmul.f32 %v2459, 1.442695
    %v2461 = vpow.pop %v2460
    %v2462 = vadd.f32 %v2461, 1.0
    %v2463 = vrcp.pop %v2462
    %v2464 = vmul.f32 %v2462, %v2463
    %v2465 = vsub.f32 1.0, %v2464
    %v2466 = vmul.f32 %v2463, %v2465
    %v2467 = vadd.f32 %v2463, %v2466
    %vm2468 = vweird.f32 %v2462
    %vm2469 = vweird.f32 %v2463
    %vm2470 = vmor %vm2468, %vm2469
    %v2471 = vsel %vm2470, %v2463, %v2467
    %v2472 = vand.u32 2147483647, %v2462
    %vm2473 = vcmp.eq.f32.partialorder %v2472, 8.507059e+37
    %v2474 = vand.u32 %v2462, 2147483648
    %v2475 = vor.u32 1.1754944e-38, %v2474
    %v2476 = vsel %vm2473, %v2475, %v2471
    %v2477 = vmul.f32 1.0, %v2476
    %v2478 = vxor.u32 %v2377, 2147483648
    %v2479 = vmul.f32 %v2478, 1.442695
    %v2480 = vpow.pop %v2479
    %v2481 = vadd.f32 %v2480, 1.0
    %v2482 = vrcp.pop %v2481
    %v2483 = vmul.f32 %v2481, %v2482
    %v2484 = vsub.f32 1.0, %v2483
    %v2485 = vmul.f32 %v2482, %v2484
    %v2486 = vadd.f32 %v2482, %v2485
    %vm2487 = vweird.f32 %v2481
    %vm2488 = vweird.f32 %v2482
    %vm2489 = vmor %vm2487, %vm2488
    %v2490 = vsel %vm2489, %v2482, %v2486
    %v2491 = vand.u32 2147483647, %v2481
    %vm2492 = vcmp.eq.f32.partialorder %v2491, 8.507059e+37
    %v2493 = vand.u32 %v2481, 2147483648
    %v2494 = vor.u32 1.1754944e-38, %v2493
    %v2495 = vsel %vm2492, %v2494, %v2490
    %v2496 = vmul.f32 1.0, %v2495
    %v2497 = vtanh.pop %v2417
    %v2498 = vxor.u32 %v2457, 2147483648
    %v2499 = vmul.f32 %v2498, 1.442695
    %v2500 = vpow.pop %v2499
    %v2501 = vadd.f32 %v2500, 1.0
    %v2502 = vrcp.pop %v2501
    %v2503 = vmul.f32 %v2501, %v2502
    %v2504 = vsub.f32 1.0, %v2503
    %v2505 = vmul.f32 %v2502, %v2504
    %v2506 = vadd.f32 %v2502, %v2505
    %vm2507 = vweird.f32 %v2501
    %vm2508 = vweird.f32 %v2502
    %vm2509 = vmor %vm2507, %vm2508
    %v2510 = vsel %vm2509, %v2502, %v2506
    %v2511 = vand.u32 2147483647, %v2501
    %vm2512 = vcmp.eq.f32.partialorder %v2511, 8.507059e+37
    %v2513 = vand.u32 %v2501, 2147483648
    %v2514 = vor.u32 1.1754944e-38, %v2513
    %v2515 = vsel %vm2512, %v2514, %v2510
    %v2516 = vmul.f32 1.0, %v2515
    %v2517 = vmul.f32 %v2496, %v2142
    %v2518 = vmul.f32 %v2477, %v2497
    %v2519 = vadd.f32 %v2517, %v2518
    %v2520 = vtanh.pop %v2519
    %v2521 = vmul.f32 %v2516, %v2520
    %vm2522 = vcmp.eq.s32.totalorder %v388, 4
    %v2523 = vsel %vm2522, 1, 0
    %2524 = vset.pattern.permute.xlu0 0
    %2525 = vperm.xlu0 %2524, %v2523
    %v2526 = vpop.permute.xlu0 %2525
    %vm2527 = vcmp.eq.s32.totalorder %v2526, 1
    %v2528 = vsel %vm2527, %v2521, %v2151
    %2529 = vmatpush.msra.mxu0 %v255
    %2530 = vmatpush.msra.mxu0 %v251
    %2531 = vmatpush.msra.mxu0 %v247
    %2532 = vmatpush.msra.mxu0 %v243
    %2533 = vmatpush.msra.mxu0 %v239
    %2534 = vmatpush.msra.mxu0 %v235
    %2535 = vmatpush.msra.mxu0 %v231
    %2536 = vmatpush.msra.mxu0 %v227
    %2537 = vmatpush.msra.mxu0 %v223
    %2538 = vmatpush.msra.mxu0 %v219
    %2539 = vmatpush.msra.mxu0 %v215
    %2540 = vmatpush.msra.mxu0 %v211
    %2541 = vmatpush.msra.mxu0 %v207
    %2542 = vmatpush.msra.mxu0 %v203
    %2543 = vmatpush.msra.mxu0 %v199
    %2544 = vmatpush.msra.mxu0 %v195
    %2545 = vmatmul.f32.gmra.mxu0 %v2298
    %v2546 = vpop.f32.mrf.mxu0
    %v2547 = vadd.f32 0.0, %v2546
    %2548 = vdwg.mxu0
    %2549 = vmatpush.msra.mxu0 %v256
    %2550 = vmatpush.msra.mxu0 %v252
    %2551 = vmatpush.msra.mxu0 %v248
    %2552 = vmatpush.msra.mxu0 %v244
    %2553 = vmatpush.msra.mxu0 %v240
    %2554 = vmatpush.msra.mxu0 %v236
    %2555 = vmatpush.msra.mxu0 %v232
    %2556 = vmatpush.msra.mxu0 %v228
    %2557 = vmatpush.msra.mxu0 %v224
    %2558 = vmatpush.msra.mxu0 %v220
    %2559 = vmatpush.msra.mxu0 %v216
    %2560 = vmatpush.msra.mxu0 %v212
    %2561 = vmatpush.msra.mxu0 %v208
    %2562 = vmatpush.msra.mxu0 %v204
    %2563 = vmatpush.msra.mxu0 %v200
    %2564 = vmatpush.msra.mxu0 %v196
    %2565 = vmatmul.f32.gmra.mxu0 %v2298
    %v2566 = vpop.f32.mrf.mxu0
    %v2567 = vadd.f32 0.0, %v2566
    %2568 = vdwg.mxu0
    %2569 = vmatpush.msra.mxu0 %v257
    %2570 = vmatpush.msra.mxu0 %v253
    %2571 = vmatpush.msra.mxu0 %v249
    %2572 = vmatpush.msra.mxu0 %v245
    %2573 = vmatpush.msra.mxu0 %v241
    %2574 = vmatpush.msra.mxu0 %v237
    %2575 = vmatpush.msra.mxu0 %v233
    %2576 = vmatpush.msra.mxu0 %v229
    %2577 = vmatpush.msra.mxu0 %v225
    %2578 = vmatpush.msra.mxu0 %v221
    %2579 = vmatpush.msra.mxu0 %v217
    %2580 = vmatpush.msra.mxu0 %v213
    %2581 = vmatpush.msra.mxu0 %v209
    %2582 = vmatpush.msra.mxu0 %v205
    %2583 = vmatpush.msra.mxu0 %v201
    %2584 = vmatpush.msra.mxu0 %v197
    %2585 = vmatmul.f32.gmra.mxu0 %v2298
    %v2586 = vpop.f32.mrf.mxu0
    %v2587 = vadd.f32 0.0, %v2586
    %2588 = vdwg.mxu0
    %2589 = vmatpush.msra.mxu0 %v258
    %2590 = vmatpush.msra.mxu0 %v254
    %2591 = vmatpush.msra.mxu0 %v250
    %2592 = vmatpush.msra.mxu0 %v246
    %2593 = vmatpush.msra.mxu0 %v242
    %2594 = vmatpush.msra.mxu0 %v238
    %2595 = vmatpush.msra.mxu0 %v234
    %2596 = vmatpush.msra.mxu0 %v230
    %2597 = vmatpush.msra.mxu0 %v226
    %2598 = vmatpush.msra.mxu0 %v222
    %2599 = vmatpush.msra.mxu0 %v218
    %2600 = vmatpush.msra.mxu0 %v214
    %2601 = vmatpush.msra.mxu0 %v210
    %2602 = vmatpush.msra.mxu0 %v206
    %2603 = vmatpush.msra.mxu0 %v202
    %2604 = vmatpush.msra.mxu0 %v198
    %2605 = vmatmul.f32.gmra.mxu0 %v2298
    %v2606 = vpop.f32.mrf.mxu0
    %v2607 = vadd.f32 0.0, %v2606
    %2608 = vdwg.mxu0
    %v2609 = vadd.f32 %v504, %v2547
    %v2610 = vadd.f32 %v545, %v2567
    %v2611 = vadd.f32 %v586, %v2587
    %v2612 = vadd.f32 %v627, %v2607
    %v2613 = vxor.u32 %v2609, 2147483648
    %v2614 = vmul.f32 %v2613, 1.442695
    %v2615 = vpow.pop %v2614
    %v2616 = vadd.f32 %v2615, 1.0
    %v2617 = vrcp.pop %v2616
    %v2618 = vmul.f32 %v2616, %v2617
    %v2619 = vsub.f32 1.0, %v2618
    %v2620 = vmul.f32 %v2617, %v2619
    %v2621 = vadd.f32 %v2617, %v2620
    %vm2622 = vweird.f32 %v2616
    %vm2623 = vweird.f32 %v2617
    %vm2624 = vmor %vm2622, %vm2623
    %v2625 = vsel %vm2624, %v2617, %v2621
    %v2626 = vand.u32 2147483647, %v2616
    %vm2627 = vcmp.eq.f32.partialorder %v2626, 8.507059e+37
    %v2628 = vand.u32 %v2616, 2147483648
    %v2629 = vor.u32 1.1754944e-38, %v2628
    %v2630 = vsel %vm2627, %v2629, %v2625
    %v2631 = vmul.f32 1.0, %v2630
    %v2632 = vxor.u32 %v2610, 2147483648
    %v2633 = vmul.f32 %v2632, 1.442695
    %v2634 = vpow.pop %v2633
    %v2635 = vadd.f32 %v2634, 1.0
    %v2636 = vrcp.pop %v2635
    %v2637 = vmul.f32 %v2635, %v2636
    %v2638 = vsub.f32 1.0, %v2637
    %v2639 = vmul.f32 %v2636, %v2638
    %v2640 = vadd.f32 %v2636, %v2639
    %vm2641 = vweird.f32 %v2635
    %vm2642 = vweird.f32 %v2636
    %vm2643 = vmor %vm2641, %vm2642
    %v2644 = vsel %vm2643, %v2636, %v2640
    %v2645 = vand.u32 2147483647, %v2635
    %vm2646 = vcmp.eq.f32.partialorder %v2645, 8.507059e+37
    %v2647 = vand.u32 %v2635, 2147483648
    %v2648 = vor.u32 1.1754944e-38, %v2647
    %v2649 = vsel %vm2646, %v2648, %v2644
    %v2650 = vmul.f32 1.0, %v2649
    %v2651 = vtanh.pop %v2611
    %v2652 = vxor.u32 %v2612, 2147483648
    %v2653 = vmul.f32 %v2652, 1.442695
    %v2654 = vpow.pop %v2653
    %v2655 = vadd.f32 %v2654, 1.0
    %v2656 = vrcp.pop %v2655
    %v2657 = vmul.f32 %v2655, %v2656
    %v2658 = vsub.f32 1.0, %v2657
    %v2659 = vmul.f32 %v2656, %v2658
    %v2660 = vadd.f32 %v2656, %v2659
    %vm2661 = vweird.f32 %v2655
    %vm2662 = vweird.f32 %v2656
    %vm2663 = vmor %vm2661, %vm2662
    %v2664 = vsel %vm2663, %v2656, %v2660
    %v2665 = vand.u32 2147483647, %v2655
    %vm2666 = vcmp.eq.f32.partialorder %v2665, 8.507059e+37
    %v2667 = vand.u32 %v2655, 2147483648
    %v2668 = vor.u32 1.1754944e-38, %v2667
    %v2669 = vsel %vm2666, %v2668, %v2664
    %v2670 = vmul.f32 1.0, %v2669
    %v2671 = vmul.f32 %v2650, %v2296
    %v2672 = vmul.f32 %v2631, %v2651
    %v2673 = vadd.f32 %v2671, %v2672
    %v2674 = vtanh.pop %v2673
    %v2675 = vmul.f32 %v2670, %v2674
    %2676 = vmatpush.msra.mxu0 %v319
    %2677 = vmatpush.msra.mxu0 %v315
    %2678 = vmatpush.msra.mxu0 %v311
    %2679 = vmatpush.msra.mxu0 %v307
    %2680 = vmatpush.msra.mxu0 %v303
    %2681 = vmatpush.msra.mxu0 %v299
    %2682 = vmatpush.msra.mxu0 %v295
    %2683 = vmatpush.msra.mxu0 %v291
    %2684 = vmatpush.msra.mxu0 %v287
    %2685 = vmatpush.msra.mxu0 %v283
    %2686 = vmatpush.msra.mxu0 %v279
    %2687 = vmatpush.msra.mxu0 %v275
    %2688 = vmatpush.msra.mxu0 %v271
    %2689 = vmatpush.msra.mxu0 %v267
    %2690 = vmatpush.msra.mxu0 %v263
    %2691 = vmatpush.msra.mxu0 %v259
    %2692 = vmatmul.f32.gmra.mxu0 %v2675
    %v2693 = vpop.f32.mrf.mxu0
    %v2694 = vadd.f32 %v783, %v2693
    %2695 = vdwg.mxu0
    %2696 = vmatpush.msra.mxu0 %v383
    %2697 = vmatpush.msra.mxu0 %v379
    %2698 = vmatpush.msra.mxu0 %v375
    %2699 = vmatpush.msra.mxu0 %v371
    %2700 = vmatpush.msra.mxu0 %v367
    %2701 = vmatpush.msra.mxu0 %v363
    %2702 = vmatpush.msra.mxu0 %v359
    %2703 = vmatpush.msra.mxu0 %v355
    %2704 = vmatpush.msra.mxu0 %v351
    %2705 = vmatpush.msra.mxu0 %v347
    %2706 = vmatpush.msra.mxu0 %v343
    %2707 = vmatpush.msra.mxu0 %v339
    %2708 = vmatpush.msra.mxu0 %v335
    %2709 = vmatpush.msra.mxu0 %v331
    %2710 = vmatpush.msra.mxu0 %v327
    %2711 = vmatpush.msra.mxu0 %v323
    %2712 = vmatmul.f32.gmra.mxu0 %v2521
    %v2713 = vpop.f32.mrf.mxu0
    %v2714 = vadd.f32 %v2694, %v2713
    %2715 = vdwg.mxu0
    %2716 = vmatpush.msra.mxu0 %v320
    %2717 = vmatpush.msra.mxu0 %v316
    %2718 = vmatpush.msra.mxu0 %v312
    %2719 = vmatpush.msra.mxu0 %v308
    %2720 = vmatpush.msra.mxu0 %v304
    %2721 = vmatpush.msra.mxu0 %v300
    %2722 = vmatpush.msra.mxu0 %v296
    %2723 = vmatpush.msra.mxu0 %v292
    %2724 = vmatpush.msra.mxu0 %v288
    %2725 = vmatpush.msra.mxu0 %v284
    %2726 = vmatpush.msra.mxu0 %v280
    %2727 = vmatpush.msra.mxu0 %v276
    %2728 = vmatpush.msra.mxu0 %v272
    %2729 = vmatpush.msra.mxu0 %v268
    %2730 = vmatpush.msra.mxu0 %v264
    %2731 = vmatpush.msra.mxu0 %v260
    %2732 = vmatmul.f32.gmra.mxu0 %v2675
    %v2733 = vpop.f32.mrf.mxu0
    %v2734 = vadd.f32 %v784, %v2733
    %2735 = vdwg.mxu0
    %2736 = vmatpush.msra.mxu0 %v384
    %2737 = vmatpush.msra.mxu0 %v380
    %2738 = vmatpush.msra.mxu0 %v376
    %2739 = vmatpush.msra.mxu0 %v372
    %2740 = vmatpush.msra.mxu0 %v368
    %2741 = vmatpush.msra.mxu0 %v364
    %2742 = vmatpush.msra.mxu0 %v360
    %2743 = vmatpush.msra.mxu0 %v356
    %2744 = vmatpush.msra.mxu0 %v352
    %2745 = vmatpush.msra.mxu0 %v348
    %2746 = vmatpush.msra.mxu0 %v344
    %2747 = vmatpush.msra.mxu0 %v340
    %2748 = vmatpush.msra.mxu0 %v336
    %2749 = vmatpush.msra.mxu0 %v332
    %2750 = vmatpush.msra.mxu0 %v328
    %2751 = vmatpush.msra.mxu0 %v324
    %2752 = vmatmul.f32.gmra.mxu0 %v2521
    %v2753 = vpop.f32.mrf.mxu0
    %v2754 = vadd.f32 %v2734, %v2753
    %2755 = vdwg.mxu0
    %2756 = vmatpush.msra.mxu0 %v321
    %2757 = vmatpush.msra.mxu0 %v317
    %2758 = vmatpush.msra.mxu0 %v313
    %2759 = vmatpush.msra.mxu0 %v309
    %2760 = vmatpush.msra.mxu0 %v305
    %2761 = vmatpush.msra.mxu0 %v301
    %2762 = vmatpush.msra.mxu0 %v297
    %2763 = vmatpush.msra.mxu0 %v293
    %2764 = vmatpush.msra.mxu0 %v289
    %2765 = vmatpush.msra.mxu0 %v285
    %2766 = vmatpush.msra.mxu0 %v281
    %2767 = vmatpush.msra.mxu0 %v277
    %2768 = vmatpush.msra.mxu0 %v273
    %2769 = vmatpush.msra.mxu0 %v269
    %2770 = vmatpush.msra.mxu0 %v265
    %2771 = vmatpush.msra.mxu0 %v261
    %2772 = vmatmul.f32.gmra.mxu0 %v2675
    %v2773 = vpop.f32.mrf.mxu0
    %v2774 = vadd.f32 %v785, %v2773
    %2775 = vdwg.mxu0
    %2776 = vmatpush.msra.mxu0 %v385
    %2777 = vmatpush.msra.mxu0 %v381
    %2778 = vmatpush.msra.mxu0 %v377
    %2779 = vmatpush.msra.mxu0 %v373
    %2780 = vmatpush.msra.mxu0 %v369
    %2781 = vmatpush.msra.mxu0 %v365
    %2782 = vmatpush.msra.mxu0 %v361
    %2783 = vmatpush.msra.mxu0 %v357
    %2784 = vmatpush.msra.mxu0 %v353
    %2785 = vmatpush.msra.mxu0 %v349
    %2786 = vmatpush.msra.mxu0 %v345
    %2787 = vmatpush.msra.mxu0 %v341
    %2788 = vmatpush.msra.mxu0 %v337
    %2789 = vmatpush.msra.mxu0 %v333
    %2790 = vmatpush.msra.mxu0 %v329
    %2791 = vmatpush.msra.mxu0 %v325
    %2792 = vmatmul.f32.gmra.mxu0 %v2521
    %v2793 = vpop.f32.mrf.mxu0
    %v2794 = vadd.f32 %v2774, %v2793
    %2795 = vdwg.mxu0
    %2796 = vmatpush.msra.mxu0 %v322
    %2797 = vmatpush.msra.mxu0 %v318
    %2798 = vmatpush.msra.mxu0 %v314
    %2799 = vmatpush.msra.mxu0 %v310
    %2800 = vmatpush.msra.mxu0 %v306
    %2801 = vmatpush.msra.mxu0 %v302
    %2802 = vmatpush.msra.mxu0 %v298
    %2803 = vmatpush.msra.mxu0 %v294
    %2804 = vmatpush.msra.mxu0 %v290
    %2805 = vmatpush.msra.mxu0 %v286
    %2806 = vmatpush.msra.mxu0 %v282
    %2807 = vmatpush.msra.mxu0 %v278
    %2808 = vmatpush.msra.mxu0 %v274
    %2809 = vmatpush.msra.mxu0 %v270
    %2810 = vmatpush.msra.mxu0 %v266
    %2811 = vmatpush.msra.mxu0 %v262
    %2812 = vmatmul.f32.gmra.mxu0 %v2675
    %v2813 = vpop.f32.mrf.mxu0
    %v2814 = vadd.f32 %v786, %v2813
    %2815 = vdwg.mxu0
    %2816 = vmatpush.msra.mxu0 %v386
    %2817 = vmatpush.msra.mxu0 %v382
    %2818 = vmatpush.msra.mxu0 %v378
    %2819 = vmatpush.msra.mxu0 %v374
    %2820 = vmatpush.msra.mxu0 %v370
    %2821 = vmatpush.msra.mxu0 %v366
    %2822 = vmatpush.msra.mxu0 %v362
    %2823 = vmatpush.msra.mxu0 %v358
    %2824 = vmatpush.msra.mxu0 %v354
    %2825 = vmatpush.msra.mxu0 %v350
    %2826 = vmatpush.msra.mxu0 %v346
    %2827 = vmatpush.msra.mxu0 %v342
    %2828 = vmatpush.msra.mxu0 %v338
    %2829 = vmatpush.msra.mxu0 %v334
    %2830 = vmatpush.msra.mxu0 %v330
    %2831 = vmatpush.msra.mxu0 %v326
    %2832 = vmatmul.f32.gmra.mxu0 %v2521
    %v2833 = vpop.f32.mrf.mxu0
    %v2834 = vadd.f32 %v2814, %v2833
    %2835 = vdwg.mxu0
    %v2836 = vxor.u32 %v2714, 2147483648
    %v2837 = vmul.f32 %v2836, 1.442695
    %v2838 = vpow.pop %v2837
    %v2839 = vadd.f32 %v2838, 1.0
    %v2840 = vrcp.pop %v2839
    %v2841 = vmul.f32 %v2839, %v2840
    %v2842 = vsub.f32 1.0, %v2841
    %v2843 = vmul.f32 %v2840, %v2842
    %v2844 = vadd.f32 %v2840, %v2843
    %vm2845 = vweird.f32 %v2839
    %vm2846 = vweird.f32 %v2840
    %vm2847 = vmor %vm2845, %vm2846
    %v2848 = vsel %vm2847, %v2840, %v2844
    %v2849 = vand.u32 2147483647, %v2839
    %vm2850 = vcmp.eq.f32.partialorder %v2849, 8.507059e+37
    %v2851 = vand.u32 %v2839, 2147483648
    %v2852 = vor.u32 1.1754944e-38, %v2851
    %v2853 = vsel %vm2850, %v2852, %v2848
    %v2854 = vmul.f32 1.0, %v2853
    %v2855 = vxor.u32 %v2754, 2147483648
    %v2856 = vmul.f32 %v2855, 1.442695
    %v2857 = vpow.pop %v2856
    %v2858 = vadd.f32 %v2857, 1.0
    %v2859 = vrcp.pop %v2858
    %v2860 = vmul.f32 %v2858, %v2859
    %v2861 = vsub.f32 1.0, %v2860
    %v2862 = vmul.f32 %v2859, %v2861
    %v2863 = vadd.f32 %v2859, %v2862
    %vm2864 = vweird.f32 %v2858
    %vm2865 = vweird.f32 %v2859
    %vm2866 = vmor %vm2864, %vm2865
    %v2867 = vsel %vm2866, %v2859, %v2863
    %v2868 = vand.u32 2147483647, %v2858
    %vm2869 = vcmp.eq.f32.partialorder %v2868, 8.507059e+37
    %v2870 = vand.u32 %v2858, 2147483648
    %v2871 = vor.u32 1.1754944e-38, %v2870
    %v2872 = vsel %vm2869, %v2871, %v2867
    %v2873 = vmul.f32 1.0, %v2872
    %v2874 = vtanh.pop %v2794
    %v2875 = vxor.u32 %v2834, 2147483648
    %v2876 = vmul.f32 %v2875, 1.442695
    %v2877 = vpow.pop %v2876
    %v2878 = vadd.f32 %v2877, 1.0
    %v2879 = vrcp.pop %v2878
    %v2880 = vmul.f32 %v2878, %v2879
    %v2881 = vsub.f32 1.0, %v2880
    %v2882 = vmul.f32 %v2879, %v2881
    %v2883 = vadd.f32 %v2879, %v2882
    %vm2884 = vweird.f32 %v2878
    %vm2885 = vweird.f32 %v2879
    %vm2886 = vmor %vm2884, %vm2885
    %v2887 = vsel %vm2886, %v2879, %v2883
    %v2888 = vand.u32 2147483647, %v2878
    %vm2889 = vcmp.eq.f32.partialorder %v2888, 8.507059e+37
    %v2890 = vand.u32 %v2878, 2147483648
    %v2891 = vor.u32 1.1754944e-38, %v2890
    %v2892 = vsel %vm2889, %v2891, %v2887
    %v2893 = vmul.f32 1.0, %v2892
    %v2894 = vmul.f32 %v2873, %v2519
    %v2895 = vmul.f32 %v2854, %v2874
    %v2896 = vadd.f32 %v2894, %v2895
    %v2897 = vtanh.pop %v2896
    %v2898 = vmul.f32 %v2893, %v2897
    %vm2899 = vcmp.eq.s32.totalorder %v388, 5
    %v2900 = vsel %vm2899, 1, 0
    %2901 = vset.pattern.permute.xlu0 0
    %2902 = vperm.xlu0 %2901, %v2900
    %v2903 = vpop.permute.xlu0 %2902
    %vm2904 = vcmp.eq.s32.totalorder %v2903, 1
    %v2905 = vsel %vm2904, %v2898, %v2528
    %2906 = vmatpush.msra.mxu0 %v255
    %2907 = vmatpush.msra.mxu0 %v251
    %2908 = vmatpush.msra.mxu0 %v247
    %2909 = vmatpush.msra.mxu0 %v243
    %2910 = vmatpush.msra.mxu0 %v239
    %2911 = vmatpush.msra.mxu0 %v235
    %2912 = vmatpush.msra.mxu0 %v231
    %2913 = vmatpush.msra.mxu0 %v227
    %2914 = vmatpush.msra.mxu0 %v223
    %2915 = vmatpush.msra.mxu0 %v219
    %2916 = vmatpush.msra.mxu0 %v215
    %2917 = vmatpush.msra.mxu0 %v211
    %2918 = vmatpush.msra.mxu0 %v207
    %2919 = vmatpush.msra.mxu0 %v203
    %2920 = vmatpush.msra.mxu0 %v199
    %2921 = vmatpush.msra.mxu0 %v195
    %2922 = vmatmul.f32.gmra.mxu0 %v2675
    %v2923 = vpop.f32.mrf.mxu0
    %v2924 = vadd.f32 0.0, %v2923
    %2925 = vdwg.mxu0
    %2926 = vmatpush.msra.mxu0 %v256
    %2927 = vmatpush.msra.mxu0 %v252
    %2928 = vmatpush.msra.mxu0 %v248
    %2929 = vmatpush.msra.mxu0 %v244
    %2930 = vmatpush.msra.mxu0 %v240
    %2931 = vmatpush.msra.mxu0 %v236
    %2932 = vmatpush.msra.mxu0 %v232
    %2933 = vmatpush.msra.mxu0 %v228
    %2934 = vmatpush.msra.mxu0 %v224
    %2935 = vmatpush.msra.mxu0 %v220
    %2936 = vmatpush.msra.mxu0 %v216
    %2937 = vmatpush.msra.mxu0 %v212
    %2938 = vmatpush.msra.mxu0 %v208
    %2939 = vmatpush.msra.mxu0 %v204
    %2940 = vmatpush.msra.mxu0 %v200
    %2941 = vmatpush.msra.mxu0 %v196
    %2942 = vmatmul.f32.gmra.mxu0 %v2675
    %v2943 = vpop.f32.mrf.mxu0
    %v2944 = vadd.f32 0.0, %v2943
    %2945 = vdwg.mxu0
    %2946 = vmatpush.msra.mxu0 %v257
    %2947 = vmatpush.msra.mxu0 %v253
    %2948 = vmatpush.msra.mxu0 %v249
    %2949 = vmatpush.msra.mxu0 %v245
    %2950 = vmatpush.msra.mxu0 %v241
    %2951 = vmatpush.msra.mxu0 %v237
    %2952 = vmatpush.msra.mxu0 %v233
    %2953 = vmatpush.msra.mxu0 %v229
    %2954 = vmatpush.msra.mxu0 %v225
    %2955 = vmatpush.msra.mxu0 %v221
    %2956 = vmatpush.msra.mxu0 %v217
    %2957 = vmatpush.msra.mxu0 %v213
    %2958 = vmatpush.msra.mxu0 %v209
    %2959 = vmatpush.msra.mxu0 %v205
    %2960 = vmatpush.msra.mxu0 %v201
    %2961 = vmatpush.msra.mxu0 %v197
    %2962 = vmatmul.f32.gmra.mxu0 %v2675
    %v2963 = vpop.f32.mrf.mxu0
    %v2964 = vadd.f32 0.0, %v2963
    %2965 = vdwg.mxu0
    %2966 = vmatpush.msra.mxu0 %v258
    %2967 = vmatpush.msra.mxu0 %v254
    %2968 = vmatpush.msra.mxu0 %v250
    %2969 = vmatpush.msra.mxu0 %v246
    %2970 = vmatpush.msra.mxu0 %v242
    %2971 = vmatpush.msra.mxu0 %v238
    %2972 = vmatpush.msra.mxu0 %v234
    %2973 = vmatpush.msra.mxu0 %v230
    %2974 = vmatpush.msra.mxu0 %v226
    %2975 = vmatpush.msra.mxu0 %v222
    %2976 = vmatpush.msra.mxu0 %v218
    %2977 = vmatpush.msra.mxu0 %v214
    %2978 = vmatpush.msra.mxu0 %v210
    %2979 = vmatpush.msra.mxu0 %v206
    %2980 = vmatpush.msra.mxu0 %v202
    %2981 = vmatpush.msra.mxu0 %v198
    %2982 = vmatmul.f32.gmra.mxu0 %v2675
    %v2983 = vpop.f32.mrf.mxu0
    %v2984 = vadd.f32 0.0, %v2983
    %2985 = vdwg.mxu0
    %v2986 = vadd.f32 %v507, %v2924
    %v2987 = vadd.f32 %v548, %v2944
    %v2988 = vadd.f32 %v589, %v2964
    %v2989 = vadd.f32 %v630, %v2984
    %v2990 = vxor.u32 %v2986, 2147483648
    %v2991 = vmul.f32 %v2990, 1.442695
    %v2992 = vpow.pop %v2991
    %v2993 = vadd.f32 %v2992, 1.0
    %v2994 = vrcp.pop %v2993
    %v2995 = vmul.f32 %v2993, %v2994
    %v2996 = vsub.f32 1.0, %v2995
    %v2997 = vmul.f32 %v2994, %v2996
    %v2998 = vadd.f32 %v2994, %v2997
    %vm2999 = vweird.f32 %v2993
    %vm3000 = vweird.f32 %v2994
    %vm3001 = vmor %vm2999, %vm3000
    %v3002 = vsel %vm3001, %v2994, %v2998
    %v3003 = vand.u32 2147483647, %v2993
    %vm3004 = vcmp.eq.f32.partialorder %v3003, 8.507059e+37
    %v3005 = vand.u32 %v2993, 2147483648
    %v3006 = vor.u32 1.1754944e-38, %v3005
    %v3007 = vsel %vm3004, %v3006, %v3002
    %v3008 = vmul.f32 1.0, %v3007
    %v3009 = vxor.u32 %v2987, 2147483648
    %v3010 = vmul.f32 %v3009, 1.442695
    %v3011 = vpow.pop %v3010
    %v3012 = vadd.f32 %v3011, 1.0
    %v3013 = vrcp.pop %v3012
    %v3014 = vmul.f32 %v3012, %v3013
    %v3015 = vsub.f32 1.0, %v3014
    %v3016 = vmul.f32 %v3013, %v3015
    %v3017 = vadd.f32 %v3013, %v3016
    %vm3018 = vweird.f32 %v3012
    %vm3019 = vweird.f32 %v3013
    %vm3020 = vmor %vm3018, %vm3019
    %v3021 = vsel %vm3020, %v3013, %v3017
    %v3022 = vand.u32 2147483647, %v3012
    %vm3023 = vcmp.eq.f32.partialorder %v3022, 8.507059e+37
    %v3024 = vand.u32 %v3012, 2147483648
    %v3025 = vor.u32 1.1754944e-38, %v3024
    %v3026 = vsel %vm3023, %v3025, %v3021
    %v3027 = vmul.f32 1.0, %v3026
    %v3028 = vtanh.pop %v2988
    %v3029 = vxor.u32 %v2989, 2147483648
    %v3030 = vmul.f32 %v3029, 1.442695
    %v3031 = vpow.pop %v3030
    %v3032 = vadd.f32 %v3031, 1.0
    %v3033 = vrcp.pop %v3032
    %v3034 = vmul.f32 %v3032, %v3033
    %v3035 = vsub.f32 1.0, %v3034
    %v3036 = vmul.f32 %v3033, %v3035
    %v3037 = vadd.f32 %v3033, %v3036
    %vm3038 = vweird.f32 %v3032
    %vm3039 = vweird.f32 %v3033
    %vm3040 = vmor %vm3038, %vm3039
    %v3041 = vsel %vm3040, %v3033, %v3037
    %v3042 = vand.u32 2147483647, %v3032
    %vm3043 = vcmp.eq.f32.partialorder %v3042, 8.507059e+37
    %v3044 = vand.u32 %v3032, 2147483648
    %v3045 = vor.u32 1.1754944e-38, %v3044
    %v3046 = vsel %vm3043, %v3045, %v3041
    %v3047 = vmul.f32 1.0, %v3046
    %v3048 = vmul.f32 %v3027, %v2673
    %v3049 = vmul.f32 %v3008, %v3028
    %v3050 = vadd.f32 %v3048, %v3049
    %v3051 = vtanh.pop %v3050
    %v3052 = vmul.f32 %v3047, %v3051
    %3053 = vmatpush.msra.mxu0 %v319
    %3054 = vmatpush.msra.mxu0 %v315
    %3055 = vmatpush.msra.mxu0 %v311
    %3056 = vmatpush.msra.mxu0 %v307
    %3057 = vmatpush.msra.mxu0 %v303
    %3058 = vmatpush.msra.mxu0 %v299
    %3059 = vmatpush.msra.mxu0 %v295
    %3060 = vmatpush.msra.mxu0 %v291
    %3061 = vmatpush.msra.mxu0 %v287
    %3062 = vmatpush.msra.mxu0 %v283
    %3063 = vmatpush.msra.mxu0 %v279
    %3064 = vmatpush.msra.mxu0 %v275
    %3065 = vmatpush.msra.mxu0 %v271
    %3066 = vmatpush.msra.mxu0 %v267
    %3067 = vmatpush.msra.mxu0 %v263
    %3068 = vmatpush.msra.mxu0 %v259
    %3069 = vmatmul.f32.gmra.mxu0 %v3052
    %v3070 = vpop.f32.mrf.mxu0
    %v3071 = vadd.f32 %v783, %v3070
    %3072 = vdwg.mxu0
    %3073 = vmatpush.msra.mxu0 %v383
    %3074 = vmatpush.msra.mxu0 %v379
    %3075 = vmatpush.msra.mxu0 %v375
    %3076 = vmatpush.msra.mxu0 %v371
    %3077 = vmatpush.msra.mxu0 %v367
    %3078 = vmatpush.msra.mxu0 %v363
    %3079 = vmatpush.msra.mxu0 %v359
    %3080 = vmatpush.msra.mxu0 %v355
    %3081 = vmatpush.msra.mxu0 %v351
    %3082 = vmatpush.msra.mxu0 %v347
    %3083 = vmatpush.msra.mxu0 %v343
    %3084 = vmatpush.msra.mxu0 %v339
    %3085 = vmatpush.msra.mxu0 %v335
    %3086 = vmatpush.msra.mxu0 %v331
    %3087 = vmatpush.msra.mxu0 %v327
    %3088 = vmatpush.msra.mxu0 %v323
    %3089 = vmatmul.f32.gmra.mxu0 %v2898
    %v3090 = vpop.f32.mrf.mxu0
    %v3091 = vadd.f32 %v3071, %v3090
    %3092 = vdwg.mxu0
    %3093 = vmatpush.msra.mxu0 %v320
    %3094 = vmatpush.msra.mxu0 %v316
    %3095 = vmatpush.msra.mxu0 %v312
    %3096 = vmatpush.msra.mxu0 %v308
    %3097 = vmatpush.msra.mxu0 %v304
    %3098 = vmatpush.msra.mxu0 %v300
    %3099 = vmatpush.msra.mxu0 %v296
    %3100 = vmatpush.msra.mxu0 %v292
    %3101 = vmatpush.msra.mxu0 %v288
    %3102 = vmatpush.msra.mxu0 %v284
    %3103 = vmatpush.msra.mxu0 %v280
    %3104 = vmatpush.msra.mxu0 %v276
    %3105 = vmatpush.msra.mxu0 %v272
    %3106 = vmatpush.msra.mxu0 %v268
    %3107 = vmatpush.msra.mxu0 %v264
    %3108 = vmatpush.msra.mxu0 %v260
    %3109 = vmatmul.f32.gmra.mxu0 %v3052
    %v3110 = vpop.f32.mrf.mxu0
    %v3111 = vadd.f32 %v784, %v3110
    %3112 = vdwg.mxu0
    %3113 = vmatpush.msra.mxu0 %v384
    %3114 = vmatpush.msra.mxu0 %v380
    %3115 = vmatpush.msra.mxu0 %v376
    %3116 = vmatpush.msra.mxu0 %v372
    %3117 = vmatpush.msra.mxu0 %v368
    %3118 = vmatpush.msra.mxu0 %v364
    %3119 = vmatpush.msra.mxu0 %v360
    %3120 = vmatpush.msra.mxu0 %v356
    %3121 = vmatpush.msra.mxu0 %v352
    %3122 = vmatpush.msra.mxu0 %v348
    %3123 = vmatpush.msra.mxu0 %v344
    %3124 = vmatpush.msra.mxu0 %v340
    %3125 = vmatpush.msra.mxu0 %v336
    %3126 = vmatpush.msra.mxu0 %v332
    %3127 = vmatpush.msra.mxu0 %v328
    %3128 = vmatpush.msra.mxu0 %v324
    %3129 = vmatmul.f32.gmra.mxu0 %v2898
    %v3130 = vpop.f32.mrf.mxu0
    %v3131 = vadd.f32 %v3111, %v3130
    %3132 = vdwg.mxu0
    %3133 = vmatpush.msra.mxu0 %v321
    %3134 = vmatpush.msra.mxu0 %v317
    %3135 = vmatpush.msra.mxu0 %v313
    %3136 = vmatpush.msra.mxu0 %v309
    %3137 = vmatpush.msra.mxu0 %v305
    %3138 = vmatpush.msra.mxu0 %v301
    %3139 = vmatpush.msra.mxu0 %v297
    %3140 = vmatpush.msra.mxu0 %v293
    %3141 = vmatpush.msra.mxu0 %v289
    %3142 = vmatpush.msra.mxu0 %v285
    %3143 = vmatpush.msra.mxu0 %v281
    %3144 = vmatpush.msra.mxu0 %v277
    %3145 = vmatpush.msra.mxu0 %v273
    %3146 = vmatpush.msra.mxu0 %v269
    %3147 = vmatpush.msra.mxu0 %v265
    %3148 = vmatpush.msra.mxu0 %v261
    %3149 = vmatmul.f32.gmra.mxu0 %v3052
    %v3150 = vpop.f32.mrf.mxu0
    %v3151 = vadd.f32 %v785, %v3150
    %3152 = vdwg.mxu0
    %3153 = vmatpush.msra.mxu0 %v385
    %3154 = vmatpush.msra.mxu0 %v381
    %3155 = vmatpush.msra.mxu0 %v377
    %3156 = vmatpush.msra.mxu0 %v373
    %3157 = vmatpush.msra.mxu0 %v369
    %3158 = vmatpush.msra.mxu0 %v365
    %3159 = vmatpush.msra.mxu0 %v361
    %3160 = vmatpush.msra.mxu0 %v357
    %3161 = vmatpush.msra.mxu0 %v353
    %3162 = vmatpush.msra.mxu0 %v349
    %3163 = vmatpush.msra.mxu0 %v345
    %3164 = vmatpush.msra.mxu0 %v341
    %3165 = vmatpush.msra.mxu0 %v337
    %3166 = vmatpush.msra.mxu0 %v333
    %3167 = vmatpush.msra.mxu0 %v329
    %3168 = vmatpush.msra.mxu0 %v325
    %3169 = vmatmul.f32.gmra.mxu0 %v2898
    %v3170 = vpop.f32.mrf.mxu0
    %v3171 = vadd.f32 %v3151, %v3170
    %3172 = vdwg.mxu0
    %3173 = vmatpush.msra.mxu0 %v322
    %3174 = vmatpush.msra.mxu0 %v318
    %3175 = vmatpush.msra.mxu0 %v314
    %3176 = vmatpush.msra.mxu0 %v310
    %3177 = vmatpush.msra.mxu0 %v306
    %3178 = vmatpush.msra.mxu0 %v302
    %3179 = vmatpush.msra.mxu0 %v298
    %3180 = vmatpush.msra.mxu0 %v294
    %3181 = vmatpush.msra.mxu0 %v290
    %3182 = vmatpush.msra.mxu0 %v286
    %3183 = vmatpush.msra.mxu0 %v282
    %3184 = vmatpush.msra.mxu0 %v278
    %3185 = vmatpush.msra.mxu0 %v274
    %3186 = vmatpush.msra.mxu0 %v270
    %3187 = vmatpush.msra.mxu0 %v266
    %3188 = vmatpush.msra.mxu0 %v262
    %3189 = vmatmul.f32.gmra.mxu0 %v3052
    %v3190 = vpop.f32.mrf.mxu0
    %v3191 = vadd.f32 %v786, %v3190
    %3192 = vdwg.mxu0
    %3193 = vmatpush.msra.mxu0 %v386
    %3194 = vmatpush.msra.mxu0 %v382
    %3195 = vmatpush.msra.mxu0 %v378
    %3196 = vmatpush.msra.mxu0 %v374
    %3197 = vmatpush.msra.mxu0 %v370
    %3198 = vmatpush.msra.mxu0 %v366
    %3199 = vmatpush.msra.mxu0 %v362
    %3200 = vmatpush.msra.mxu0 %v358
    %3201 = vmatpush.msra.mxu0 %v354
    %3202 = vmatpush.msra.mxu0 %v350
    %3203 = vmatpush.msra.mxu0 %v346
    %3204 = vmatpush.msra.mxu0 %v342
    %3205 = vmatpush.msra.mxu0 %v338
    %3206 = vmatpush.msra.mxu0 %v334
    %3207 = vmatpush.msra.mxu0 %v330
    %3208 = vmatpush.msra.mxu0 %v326
    %3209 = vmatmul.f32.gmra.mxu0 %v2898
    %v3210 = vpop.f32.mrf.mxu0
    %v3211 = vadd.f32 %v3191, %v3210
    %3212 = vdwg.mxu0
    %v3213 = vxor.u32 %v3091, 2147483648
    %v3214 = vmul.f32 %v3213, 1.442695
    %v3215 = vpow.pop %v3214
    %v3216 = vadd.f32 %v3215, 1.0
    %v3217 = vrcp.pop %v3216
    %v3218 = vmul.f32 %v3216, %v3217
    %v3219 = vsub.f32 1.0, %v3218
    %v3220 = vmul.f32 %v3217, %v3219
    %v3221 = vadd.f32 %v3217, %v3220
    %vm3222 = vweird.f32 %v3216
    %vm3223 = vweird.f32 %v3217
    %vm3224 = vmor %vm3222, %vm3223
    %v3225 = vsel %vm3224, %v3217, %v3221
    %v3226 = vand.u32 2147483647, %v3216
    %vm3227 = vcmp.eq.f32.partialorder %v3226, 8.507059e+37
    %v3228 = vand.u32 %v3216, 2147483648
    %v3229 = vor.u32 1.1754944e-38, %v3228
    %v3230 = vsel %vm3227, %v3229, %v3225
    %v3231 = vmul.f32 1.0, %v3230
    %v3232 = vxor.u32 %v3131, 2147483648
    %v3233 = vmul.f32 %v3232, 1.442695
    %v3234 = vpow.pop %v3233
    %v3235 = vadd.f32 %v3234, 1.0
    %v3236 = vrcp.pop %v3235
    %v3237 = vmul.f32 %v3235, %v3236
    %v3238 = vsub.f32 1.0, %v3237
    %v3239 = vmul.f32 %v3236, %v3238
    %v3240 = vadd.f32 %v3236, %v3239
    %vm3241 = vweird.f32 %v3235
    %vm3242 = vweird.f32 %v3236
    %vm3243 = vmor %vm3241, %vm3242
    %v3244 = vsel %vm3243, %v3236, %v3240
    %v3245 = vand.u32 2147483647, %v3235
    %vm3246 = vcmp.eq.f32.partialorder %v3245, 8.507059e+37
    %v3247 = vand.u32 %v3235, 2147483648
    %v3248 = vor.u32 1.1754944e-38, %v3247
    %v3249 = vsel %vm3246, %v3248, %v3244
    %v3250 = vmul.f32 1.0, %v3249
    %v3251 = vtanh.pop %v3171
    %v3252 = vxor.u32 %v3211, 2147483648
    %v3253 = vmul.f32 %v3252, 1.442695
    %v3254 = vpow.pop %v3253
    %v3255 = vadd.f32 %v3254, 1.0
    %v3256 = vrcp.pop %v3255
    %v3257 = vmul.f32 %v3255, %v3256
    %v3258 = vsub.f32 1.0, %v3257
    %v3259 = vmul.f32 %v3256, %v3258
    %v3260 = vadd.f32 %v3256, %v3259
    %vm3261 = vweird.f32 %v3255
    %vm3262 = vweird.f32 %v3256
    %vm3263 = vmor %vm3261, %vm3262
    %v3264 = vsel %vm3263, %v3256, %v3260
    %v3265 = vand.u32 2147483647, %v3255
    %vm3266 = vcmp.eq.f32.partialorder %v3265, 8.507059e+37
    %v3267 = vand.u32 %v3255, 2147483648
    %v3268 = vor.u32 1.1754944e-38, %v3267
    %v3269 = vsel %vm3266, %v3268, %v3264
    %v3270 = vmul.f32 1.0, %v3269
    %v3271 = vmul.f32 %v3250, %v2896
    %v3272 = vmul.f32 %v3231, %v3251
    %v3273 = vadd.f32 %v3271, %v3272
    %v3274 = vtanh.pop %v3273
    %v3275 = vmul.f32 %v3270, %v3274
    %vm3276 = vcmp.eq.s32.totalorder %v388, 6
    %v3277 = vsel %vm3276, 1, 0
    %3278 = vset.pattern.permute.xlu0 0
    %3279 = vperm.xlu0 %3278, %v3277
    %v3280 = vpop.permute.xlu0 %3279
    %vm3281 = vcmp.eq.s32.totalorder %v3280, 1
    %v3282 = vsel %vm3281, %v3275, %v2905
    %3283 = vmatpush.msra.mxu0 %v255
    %3284 = vmatpush.msra.mxu0 %v251
    %3285 = vmatpush.msra.mxu0 %v247
    %3286 = vmatpush.msra.mxu0 %v243
    %3287 = vmatpush.msra.mxu0 %v239
    %3288 = vmatpush.msra.mxu0 %v235
    %3289 = vmatpush.msra.mxu0 %v231
    %3290 = vmatpush.msra.mxu0 %v227
    %3291 = vmatpush.msra.mxu0 %v223
    %3292 = vmatpush.msra.mxu0 %v219
    %3293 = vmatpush.msra.mxu0 %v215
    %3294 = vmatpush.msra.mxu0 %v211
    %3295 = vmatpush.msra.mxu0 %v207
    %3296 = vmatpush.msra.mxu0 %v203
    %3297 = vmatpush.msra.mxu0 %v199
    %3298 = vmatpush.msra.mxu0 %v195
    %3299 = vmatmul.f32.gmra.mxu0 %v3052
    %v3300 = vpop.f32.mrf.mxu0
    %v3301 = vadd.f32 0.0, %v3300
    %3302 = vdwg.mxu0
    %3303 = vmatpush.msra.mxu0 %v256
    %3304 = vmatpush.msra.mxu0 %v252
    %3305 = vmatpush.msra.mxu0 %v248
    %3306 = vmatpush.msra.mxu0 %v244
    %3307 = vmatpush.msra.mxu0 %v240
    %3308 = vmatpush.msra.mxu0 %v236
    %3309 = vmatpush.msra.mxu0 %v232
    %3310 = vmatpush.msra.mxu0 %v228
    %3311 = vmatpush.msra.mxu0 %v224
    %3312 = vmatpush.msra.mxu0 %v220
    %3313 = vmatpush.msra.mxu0 %v216
    %3314 = vmatpush.msra.mxu0 %v212
    %3315 = vmatpush.msra.mxu0 %v208
    %3316 = vmatpush.msra.mxu0 %v204
    %3317 = vmatpush.msra.mxu0 %v200
    %3318 = vmatpush.msra.mxu0 %v196
    %3319 = vmatmul.f32.gmra.mxu0 %v3052
    %v3320 = vpop.f32.mrf.mxu0
    %v3321 = vadd.f32 0.0, %v3320
    %3322 = vdwg.mxu0
    %3323 = vmatpush.msra.mxu0 %v257
    %3324 = vmatpush.msra.mxu0 %v253
    %3325 = vmatpush.msra.mxu0 %v249
    %3326 = vmatpush.msra.mxu0 %v245
    %3327 = vmatpush.msra.mxu0 %v241
    %3328 = vmatpush.msra.mxu0 %v237
    %3329 = vmatpush.msra.mxu0 %v233
    %3330 = vmatpush.msra.mxu0 %v229
    %3331 = vmatpush.msra.mxu0 %v225
    %3332 = vmatpush.msra.mxu0 %v221
    %3333 = vmatpush.msra.mxu0 %v217
    %3334 = vmatpush.msra.mxu0 %v213
    %3335 = vmatpush.msra.mxu0 %v209
    %3336 = vmatpush.msra.mxu0 %v205
    %3337 = vmatpush.msra.mxu0 %v201
    %3338 = vmatpush.msra.mxu0 %v197
    %3339 = vmatmul.f32.gmra.mxu0 %v3052
    %v3340 = vpop.f32.mrf.mxu0
    %v3341 = vadd.f32 0.0, %v3340
    %3342 = vdwg.mxu0
    %3343 = vmatpush.msra.mxu0 %v258
    %3344 = vmatpush.msra.mxu0 %v254
    %3345 = vmatpush.msra.mxu0 %v250
    %3346 = vmatpush.msra.mxu0 %v246
    %3347 = vmatpush.msra.mxu0 %v242
    %3348 = vmatpush.msra.mxu0 %v238
    %3349 = vmatpush.msra.mxu0 %v234
    %3350 = vmatpush.msra.mxu0 %v230
    %3351 = vmatpush.msra.mxu0 %v226
    %3352 = vmatpush.msra.mxu0 %v222
    %3353 = vmatpush.msra.mxu0 %v218
    %3354 = vmatpush.msra.mxu0 %v214
    %3355 = vmatpush.msra.mxu0 %v210
    %3356 = vmatpush.msra.mxu0 %v206
    %3357 = vmatpush.msra.mxu0 %v202
    %3358 = vmatpush.msra.mxu0 %v198
    %3359 = vmatmul.f32.gmra.mxu0 %v3052
    %v3360 = vpop.f32.mrf.mxu0
    %v3361 = vadd.f32 0.0, %v3360
    %3362 = vdwg.mxu0
    %v3363 = vadd.f32 %v510, %v3301
    %v3364 = vadd.f32 %v551, %v3321
    %v3365 = vadd.f32 %v592, %v3341
    %v3366 = vadd.f32 %v633, %v3361
    %v3367 = vxor.u32 %v3363, 2147483648
    %v3368 = vmul.f32 %v3367, 1.442695
    %v3369 = vpow.pop %v3368
    %v3370 = vadd.f32 %v3369, 1.0
    %v3371 = vrcp.pop %v3370
    %v3372 = vmul.f32 %v3370, %v3371
    %v3373 = vsub.f32 1.0, %v3372
    %v3374 = vmul.f32 %v3371, %v3373
    %v3375 = vadd.f32 %v3371, %v3374
    %vm3376 = vweird.f32 %v3370
    %vm3377 = vweird.f32 %v3371
    %vm3378 = vmor %vm3376, %vm3377
    %v3379 = vsel %vm3378, %v3371, %v3375
    %v3380 = vand.u32 2147483647, %v3370
    %vm3381 = vcmp.eq.f32.partialorder %v3380, 8.507059e+37
    %v3382 = vand.u32 %v3370, 2147483648
    %v3383 = vor.u32 1.1754944e-38, %v3382
    %v3384 = vsel %vm3381, %v3383, %v3379
    %v3385 = vmul.f32 1.0, %v3384
    %v3386 = vxor.u32 %v3364, 2147483648
    %v3387 = vmul.f32 %v3386, 1.442695
    %v3388 = vpow.pop %v3387
    %v3389 = vadd.f32 %v3388, 1.0
    %v3390 = vrcp.pop %v3389
    %v3391 = vmul.f32 %v3389, %v3390
    %v3392 = vsub.f32 1.0, %v3391
    %v3393 = vmul.f32 %v3390, %v3392
    %v3394 = vadd.f32 %v3390, %v3393
    %vm3395 = vweird.f32 %v3389
    %vm3396 = vweird.f32 %v3390
    %vm3397 = vmor %vm3395, %vm3396
    %v3398 = vsel %vm3397, %v3390, %v3394
    %v3399 = vand.u32 2147483647, %v3389
    %vm3400 = vcmp.eq.f32.partialorder %v3399, 8.507059e+37
    %v3401 = vand.u32 %v3389, 2147483648
    %v3402 = vor.u32 1.1754944e-38, %v3401
    %v3403 = vsel %vm3400, %v3402, %v3398
    %v3404 = vmul.f32 1.0, %v3403
    %v3405 = vtanh.pop %v3365
    %v3406 = vxor.u32 %v3366, 2147483648
    %v3407 = vmul.f32 %v3406, 1.442695
    %v3408 = vpow.pop %v3407
    %v3409 = vadd.f32 %v3408, 1.0
    %v3410 = vrcp.pop %v3409
    %v3411 = vmul.f32 %v3409, %v3410
    %v3412 = vsub.f32 1.0, %v3411
    %v3413 = vmul.f32 %v3410, %v3412
    %v3414 = vadd.f32 %v3410, %v3413
    %vm3415 = vweird.f32 %v3409
    %vm3416 = vweird.f32 %v3410
    %vm3417 = vmor %vm3415, %vm3416
    %v3418 = vsel %vm3417, %v3410, %v3414
    %v3419 = vand.u32 2147483647, %v3409
    %vm3420 = vcmp.eq.f32.partialorder %v3419, 8.507059e+37
    %v3421 = vand.u32 %v3409, 2147483648
    %v3422 = vor.u32 1.1754944e-38, %v3421
    %v3423 = vsel %vm3420, %v3422, %v3418
    %v3424 = vmul.f32 1.0, %v3423
    %v3425 = vmul.f32 %v3404, %v3050
    %v3426 = vmul.f32 %v3385, %v3405
    %v3427 = vadd.f32 %v3425, %v3426
    %v3428 = vtanh.pop %v3427
    %v3429 = vmul.f32 %v3424, %v3428
    %3430 = vmatpush.msra.mxu0 %v319
    %3431 = vmatpush.msra.mxu0 %v315
    %3432 = vmatpush.msra.mxu0 %v311
    %3433 = vmatpush.msra.mxu0 %v307
    %3434 = vmatpush.msra.mxu0 %v303
    %3435 = vmatpush.msra.mxu0 %v299
    %3436 = vmatpush.msra.mxu0 %v295
    %3437 = vmatpush.msra.mxu0 %v291
    %3438 = vmatpush.msra.mxu0 %v287
    %3439 = vmatpush.msra.mxu0 %v283
    %3440 = vmatpush.msra.mxu0 %v279
    %3441 = vmatpush.msra.mxu0 %v275
    %3442 = vmatpush.msra.mxu0 %v271
    %3443 = vmatpush.msra.mxu0 %v267
    %3444 = vmatpush.msra.mxu0 %v263
    %3445 = vmatpush.msra.mxu0 %v259
    %3446 = vmatmul.f32.gmra.mxu0 %v3429
    %v3447 = vpop.f32.mrf.mxu0
    %v3448 = vadd.f32 %v783, %v3447
    %3449 = vdwg.mxu0
    %3450 = vmatpush.msra.mxu0 %v383
    %3451 = vmatpush.msra.mxu0 %v379
    %3452 = vmatpush.msra.mxu0 %v375
    %3453 = vmatpush.msra.mxu0 %v371
    %3454 = vmatpush.msra.mxu0 %v367
    %3455 = vmatpush.msra.mxu0 %v363
    %3456 = vmatpush.msra.mxu0 %v359
    %3457 = vmatpush.msra.mxu0 %v355
    %3458 = vmatpush.msra.mxu0 %v351
    %3459 = vmatpush.msra.mxu0 %v347
    %3460 = vmatpush.msra.mxu0 %v343
    %3461 = vmatpush.msra.mxu0 %v339
    %3462 = vmatpush.msra.mxu0 %v335
    %3463 = vmatpush.msra.mxu0 %v331
    %3464 = vmatpush.msra.mxu0 %v327
    %3465 = vmatpush.msra.mxu0 %v323
    %3466 = vmatmul.f32.gmra.mxu0 %v3275
    %v3467 = vpop.f32.mrf.mxu0
    %v3468 = vadd.f32 %v3448, %v3467
    %3469 = vdwg.mxu0
    %3470 = vmatpush.msra.mxu0 %v320
    %3471 = vmatpush.msra.mxu0 %v316
    %3472 = vmatpush.msra.mxu0 %v312
    %3473 = vmatpush.msra.mxu0 %v308
    %3474 = vmatpush.msra.mxu0 %v304
    %3475 = vmatpush.msra.mxu0 %v300
    %3476 = vmatpush.msra.mxu0 %v296
    %3477 = vmatpush.msra.mxu0 %v292
    %3478 = vmatpush.msra.mxu0 %v288
    %3479 = vmatpush.msra.mxu0 %v284
    %3480 = vmatpush.msra.mxu0 %v280
    %3481 = vmatpush.msra.mxu0 %v276
    %3482 = vmatpush.msra.mxu0 %v272
    %3483 = vmatpush.msra.mxu0 %v268
    %3484 = vmatpush.msra.mxu0 %v264
    %3485 = vmatpush.msra.mxu0 %v260
    %3486 = vmatmul.f32.gmra.mxu0 %v3429
    %v3487 = vpop.f32.mrf.mxu0
    %v3488 = vadd.f32 %v784, %v3487
    %3489 = vdwg.mxu0
    %3490 = vmatpush.msra.mxu0 %v384
    %3491 = vmatpush.msra.mxu0 %v380
    %3492 = vmatpush.msra.mxu0 %v376
    %3493 = vmatpush.msra.mxu0 %v372
    %3494 = vmatpush.msra.mxu0 %v368
    %3495 = vmatpush.msra.mxu0 %v364
    %3496 = vmatpush.msra.mxu0 %v360
    %3497 = vmatpush.msra.mxu0 %v356
    %3498 = vmatpush.msra.mxu0 %v352
    %3499 = vmatpush.msra.mxu0 %v348
    %3500 = vmatpush.msra.mxu0 %v344
    %3501 = vmatpush.msra.mxu0 %v340
    %3502 = vmatpush.msra.mxu0 %v336
    %3503 = vmatpush.msra.mxu0 %v332
    %3504 = vmatpush.msra.mxu0 %v328
    %3505 = vmatpush.msra.mxu0 %v324
    %3506 = vmatmul.f32.gmra.mxu0 %v3275
    %v3507 = vpop.f32.mrf.mxu0
    %v3508 = vadd.f32 %v3488, %v3507
    %3509 = vdwg.mxu0
    %3510 = vmatpush.msra.mxu0 %v321
    %3511 = vmatpush.msra.mxu0 %v317
    %3512 = vmatpush.msra.mxu0 %v313
    %3513 = vmatpush.msra.mxu0 %v309
    %3514 = vmatpush.msra.mxu0 %v305
    %3515 = vmatpush.msra.mxu0 %v301
    %3516 = vmatpush.msra.mxu0 %v297
    %3517 = vmatpush.msra.mxu0 %v293
    %3518 = vmatpush.msra.mxu0 %v289
    %3519 = vmatpush.msra.mxu0 %v285
    %3520 = vmatpush.msra.mxu0 %v281
    %3521 = vmatpush.msra.mxu0 %v277
    %3522 = vmatpush.msra.mxu0 %v273
    %3523 = vmatpush.msra.mxu0 %v269
    %3524 = vmatpush.msra.mxu0 %v265
    %3525 = vmatpush.msra.mxu0 %v261
    %3526 = vmatmul.f32.gmra.mxu0 %v3429
    %v3527 = vpop.f32.mrf.mxu0
    %v3528 = vadd.f32 %v785, %v3527
    %3529 = vdwg.mxu0
    %3530 = vmatpush.msra.mxu0 %v385
    %3531 = vmatpush.msra.mxu0 %v381
    %3532 = vmatpush.msra.mxu0 %v377
    %3533 = vmatpush.msra.mxu0 %v373
    %3534 = vmatpush.msra.mxu0 %v369
    %3535 = vmatpush.msra.mxu0 %v365
    %3536 = vmatpush.msra.mxu0 %v361
    %3537 = vmatpush.msra.mxu0 %v357
    %3538 = vmatpush.msra.mxu0 %v353
    %3539 = vmatpush.msra.mxu0 %v349
    %3540 = vmatpush.msra.mxu0 %v345
    %3541 = vmatpush.msra.mxu0 %v341
    %3542 = vmatpush.msra.mxu0 %v337
    %3543 = vmatpush.msra.mxu0 %v333
    %3544 = vmatpush.msra.mxu0 %v329
    %3545 = vmatpush.msra.mxu0 %v325
    %3546 = vmatmul.f32.gmra.mxu0 %v3275
    %v3547 = vpop.f32.mrf.mxu0
    %v3548 = vadd.f32 %v3528, %v3547
    %3549 = vdwg.mxu0
    %3550 = vmatpush.msra.mxu0 %v322
    %3551 = vmatpush.msra.mxu0 %v318
    %3552 = vmatpush.msra.mxu0 %v314
    %3553 = vmatpush.msra.mxu0 %v310
    %3554 = vmatpush.msra.mxu0 %v306
    %3555 = vmatpush.msra.mxu0 %v302
    %3556 = vmatpush.msra.mxu0 %v298
    %3557 = vmatpush.msra.mxu0 %v294
    %3558 = vmatpush.msra.mxu0 %v290
    %3559 = vmatpush.msra.mxu0 %v286
    %3560 = vmatpush.msra.mxu0 %v282
    %3561 = vmatpush.msra.mxu0 %v278
    %3562 = vmatpush.msra.mxu0 %v274
    %3563 = vmatpush.msra.mxu0 %v270
    %3564 = vmatpush.msra.mxu0 %v266
    %3565 = vmatpush.msra.mxu0 %v262
    %3566 = vmatmul.f32.gmra.mxu0 %v3429
    %v3567 = vpop.f32.mrf.mxu0
    %v3568 = vadd.f32 %v786, %v3567
    %3569 = vdwg.mxu0
    %3570 = vmatpush.msra.mxu0 %v386
    %3571 = vmatpush.msra.mxu0 %v382
    %3572 = vmatpush.msra.mxu0 %v378
    %3573 = vmatpush.msra.mxu0 %v374
    %3574 = vmatpush.msra.mxu0 %v370
    %3575 = vmatpush.msra.mxu0 %v366
    %3576 = vmatpush.msra.mxu0 %v362
    %3577 = vmatpush.msra.mxu0 %v358
    %3578 = vmatpush.msra.mxu0 %v354
    %3579 = vmatpush.msra.mxu0 %v350
    %3580 = vmatpush.msra.mxu0 %v346
    %3581 = vmatpush.msra.mxu0 %v342
    %3582 = vmatpush.msra.mxu0 %v338
    %3583 = vmatpush.msra.mxu0 %v334
    %3584 = vmatpush.msra.mxu0 %v330
    %3585 = vmatpush.msra.mxu0 %v326
    %3586 = vmatmul.f32.gmra.mxu0 %v3275
    %v3587 = vpop.f32.mrf.mxu0
    %v3588 = vadd.f32 %v3568, %v3587
    %3589 = vdwg.mxu0
    %v3590 = vxor.u32 %v3468, 2147483648
    %v3591 = vmul.f32 %v3590, 1.442695
    %v3592 = vpow.pop %v3591
    %v3593 = vadd.f32 %v3592, 1.0
    %v3594 = vrcp.pop %v3593
    %v3595 = vmul.f32 %v3593, %v3594
    %v3596 = vsub.f32 1.0, %v3595
    %v3597 = vmul.f32 %v3594, %v3596
    %v3598 = vadd.f32 %v3594, %v3597
    %vm3599 = vweird.f32 %v3593
    %vm3600 = vweird.f32 %v3594
    %vm3601 = vmor %vm3599, %vm3600
    %v3602 = vsel %vm3601, %v3594, %v3598
    %v3603 = vand.u32 2147483647, %v3593
    %vm3604 = vcmp.eq.f32.partialorder %v3603, 8.507059e+37
    %v3605 = vand.u32 %v3593, 2147483648
    %v3606 = vor.u32 1.1754944e-38, %v3605
    %v3607 = vsel %vm3604, %v3606, %v3602
    %v3608 = vmul.f32 1.0, %v3607
    %v3609 = vxor.u32 %v3508, 2147483648
    %v3610 = vmul.f32 %v3609, 1.442695
    %v3611 = vpow.pop %v3610
    %v3612 = vadd.f32 %v3611, 1.0
    %v3613 = vrcp.pop %v3612
    %v3614 = vmul.f32 %v3612, %v3613
    %v3615 = vsub.f32 1.0, %v3614
    %v3616 = vmul.f32 %v3613, %v3615
    %v3617 = vadd.f32 %v3613, %v3616
    %vm3618 = vweird.f32 %v3612
    %vm3619 = vweird.f32 %v3613
    %vm3620 = vmor %vm3618, %vm3619
    %v3621 = vsel %vm3620, %v3613, %v3617
    %v3622 = vand.u32 2147483647, %v3612
    %vm3623 = vcmp.eq.f32.partialorder %v3622, 8.507059e+37
    %v3624 = vand.u32 %v3612, 2147483648
    %v3625 = vor.u32 1.1754944e-38, %v3624
    %v3626 = vsel %vm3623, %v3625, %v3621
    %v3627 = vmul.f32 1.0, %v3626
    %v3628 = vtanh.pop %v3548
    %v3629 = vxor.u32 %v3588, 2147483648
    %v3630 = vmul.f32 %v3629, 1.442695
    %v3631 = vpow.pop %v3630
    %v3632 = vadd.f32 %v3631, 1.0
    %v3633 = vrcp.pop %v3632
    %v3634 = vmul.f32 %v3632, %v3633
    %v3635 = vsub.f32 1.0, %v3634
    %v3636 = vmul.f32 %v3633, %v3635
    %v3637 = vadd.f32 %v3633, %v3636
    %vm3638 = vweird.f32 %v3632
    %vm3639 = vweird.f32 %v3633
    %vm3640 = vmor %vm3638, %vm3639
    %v3641 = vsel %vm3640, %v3633, %v3637
    %v3642 = vand.u32 2147483647, %v3632
    %vm3643 = vcmp.eq.f32.partialorder %v3642, 8.507059e+37
    %v3644 = vand.u32 %v3632, 2147483648
    %v3645 = vor.u32 1.1754944e-38, %v3644
    %v3646 = vsel %vm3643, %v3645, %v3641
    %v3647 = vmul.f32 1.0, %v3646
    %v3648 = vmul.f32 %v3627, %v3273
    %v3649 = vmul.f32 %v3608, %v3628
    %v3650 = vadd.f32 %v3648, %v3649
    %v3651 = vtanh.pop %v3650
    %v3652 = vmul.f32 %v3647, %v3651
    %vm3653 = vcmp.eq.s32.totalorder %v388, 7
    %v3654 = vsel %vm3653, 1, 0
    %3655 = vset.pattern.permute.xlu0 0
    %3656 = vperm.xlu0 %3655, %v3654
    %v3657 = vpop.permute.xlu0 %3656
    %vm3658 = vcmp.eq.s32.totalorder %v3657, 1
    %v3659 = vsel %vm3658, %v3652, %v3282
    %v3660 = vld [vmem:[#allocation11] sm:$0xff]
    %v3661 = vld [vmem:[#allocation11 + $0x8] sm:$0xff]
    %v3662 = vld [vmem:[#allocation11 + $0x10] sm:$0xff]
    %v3663 = vld [vmem:[#allocation11 + $0x18] sm:$0xff]
    %v3664 = vld [vmem:[#allocation11 + $0x20] sm:$0xff]
    %v3665 = vld [vmem:[#allocation11 + $0x28] sm:$0xff]
    %v3666 = vld [vmem:[#allocation11 + $0x30] sm:$0xff]
    %v3667 = vld [vmem:[#allocation11 + $0x38] sm:$0xff]
    %v3668 = vld [vmem:[#allocation11 + $0x40] sm:$0xff]
    %v3669 = vld [vmem:[#allocation11 + $0x48] sm:$0xff]
    %v3670 = vld [vmem:[#allocation11 + $0x50] sm:$0xff]
    %v3671 = vld [vmem:[#allocation11 + $0x58] sm:$0xff]
    %v3672 = vld [vmem:[#allocation11 + $0x60] sm:$0xff]
    %v3673 = vld [vmem:[#allocation11 + $0x68] sm:$0xff]
    %v3674 = vld [vmem:[#allocation11 + $0x70] sm:$0xff]
    %v3675 = vld [vmem:[#allocation11 + $0x78] sm:$0xff]
    %v3676 = vld [vmem:[#allocation11 + $0x80] sm:$0xff]
    %v3677 = vld [vmem:[#allocation11 + $0x88] sm:$0xff]
    %v3678 = vld [vmem:[#allocation11 + $0x90] sm:$0xff]
    %v3679 = vld [vmem:[#allocation11 + $0x98] sm:$0xff]
    %v3680 = vld [vmem:[#allocation11 + $0xa0] sm:$0xff]
    %v3681 = vld [vmem:[#allocation11 + $0xa8] sm:$0xff]
    %v3682 = vld [vmem:[#allocation11 + $0xb0] sm:$0xff]
    %v3683 = vld [vmem:[#allocation11 + $0xb8] sm:$0xff]
    %v3684 = vld [vmem:[#allocation11 + $0xc0] sm:$0xff]
    %v3685 = vld [vmem:[#allocation11 + $0xc8] sm:$0xff]
    %v3686 = vld [vmem:[#allocation11 + $0xd0] sm:$0xff]
    %v3687 = vld [vmem:[#allocation11 + $0xd8] sm:$0xff]
    %v3688 = vld [vmem:[#allocation11 + $0xe0] sm:$0xff]
    %v3689 = vld [vmem:[#allocation11 + $0xe8] sm:$0xff]
    %v3690 = vld [vmem:[#allocation11 + $0xf0] sm:$0xff]
    %v3691 = vld [vmem:[#allocation11 + $0xf8] sm:$0xff]
    %v3692 = vld [vmem:[#allocation13] sm:$0x3]
    %v3694 = vperm.slane %v3692, 0
    %v3695 = vperm.slane %v3692, 1
    %3698 = vmatpush.msra.mxu0 %v3690
    %3699 = vmatpush.msra.mxu0 %v3688
    %3700 = vmatpush.msra.mxu0 %v3686
    %3701 = vmatpush.msra.mxu0 %v3684
    %3702 = vmatpush.msra.mxu0 %v3682
    %3703 = vmatpush.msra.mxu0 %v3680
    %3704 = vmatpush.msra.mxu0 %v3678
    %3705 = vmatpush.msra.mxu0 %v3676
    %3706 = vmatpush.msra.mxu0 %v3674
    %3707 = vmatpush.msra.mxu0 %v3672
    %3708 = vmatpush.msra.mxu0 %v3670
    %3709 = vmatpush.msra.mxu0 %v3668
    %3710 = vmatpush.msra.mxu0 %v3666
    %3711 = vmatpush.msra.mxu0 %v3664
    %3712 = vmatpush.msra.mxu0 %v3662
    %3713 = vmatpush.msra.mxu0 %v3660
    %3714 = vmatmul.f32.gmra.mxu0 %v3659
    %v3715 = vpop.f32.mrf.mxu0
    %v3716 = vadd.f32 %v3694, %v3715
    %3717 = vdwg.mxu0
    %3718 = vmatpush.msra.mxu0 %v3691
    %3719 = vmatpush.msra.mxu0 %v3689
    %3720 = vmatpush.msra.mxu0 %v3687
    %3721 = vmatpush.msra.mxu0 %v3685
    %3722 = vmatpush.msra.mxu0 %v3683
    %3723 = vmatpush.msra.mxu0 %v3681
    %3724 = vmatpush.msra.mxu0 %v3679
    %3725 = vmatpush.msra.mxu0 %v3677
    %3726 = vmatpush.msra.mxu0 %v3675
    %3727 = vmatpush.msra.mxu0 %v3673
    %3728 = vmatpush.msra.mxu0 %v3671
    %3729 = vmatpush.msra.mxu0 %v3669
    %3730 = vmatpush.msra.mxu0 %v3667
    %3731 = vmatpush.msra.mxu0 %v3665
    %3732 = vmatpush.msra.mxu0 %v3663
    %3733 = vmatpush.msra.mxu0 %v3661
    %3734 = vmatmul.f32.gmra.mxu0 %v3659
    %v3735 = vpop.f32.mrf.mxu0
    %v3736 = vadd.f32 %v3695, %v3735
    %3737 = vdwg.mxu0
    %v3738 = vmax.f32 %v3716, 0.0
    %v3739 = vmax.f32 %v3736, 0.0
    %v3740 = vld [vmem:[#allocation14] sm:$0xff]
    %v3741 = vld [vmem:[#allocation14 + $0x8] sm:$0xff]
    %v3742 = vld [vmem:[#allocation14 + $0x10] sm:$0xff]
    %v3743 = vld [vmem:[#allocation14 + $0x18] sm:$0xff]
    %v3744 = vld [vmem:[#allocation14 + $0x20] sm:$0xff]
    %v3745 = vld [vmem:[#allocation14 + $0x28] sm:$0xff]
    %v3746 = vld [vmem:[#allocation14 + $0x30] sm:$0xff]
    %v3747 = vld [vmem:[#allocation14 + $0x38] sm:$0xff]
    %v3748 = vld [vmem:[#allocation14 + $0x40] sm:$0xff]
    %v3749 = vld [vmem:[#allocation14 + $0x48] sm:$0xff]
    %v3750 = vld [vmem:[#allocation14 + $0x50] sm:$0xff]
    %v3751 = vld [vmem:[#allocation14 + $0x58] sm:$0xff]
    %v3752 = vld [vmem:[#allocation14 + $0x60] sm:$0xff]
    %v3753 = vld [vmem:[#allocation14 + $0x68] sm:$0xff]
    %v3754 = vld [vmem:[#allocation14 + $0x70] sm:$0xff]
    %v3755 = vld [vmem:[#allocation14 + $0x78] sm:$0xff]
    %v3756 = vld [vmem:[#allocation14 + $0x80] sm:$0xff]
    %v3757 = vld [vmem:[#allocation14 + $0x88] sm:$0xff]
    %v3758 = vld [vmem:[#allocation14 + $0x90] sm:$0xff]
    %v3759 = vld [vmem:[#allocation14 + $0x98] sm:$0xff]
    %v3760 = vld [vmem:[#allocation14 + $0xa0] sm:$0xff]
    %v3761 = vld [vmem:[#allocation14 + $0xa8] sm:$0xff]
    %v3762 = vld [vmem:[#allocation14 + $0xb0] sm:$0xff]
    %v3763 = vld [vmem:[#allocation14 + $0xb8] sm:$0xff]
    %v3764 = vld [vmem:[#allocation14 + $0xc0] sm:$0xff]
    %v3765 = vld [vmem:[#allocation14 + $0xc8] sm:$0xff]
    %v3766 = vld [vmem:[#allocation14 + $0xd0] sm:$0xff]
    %v3767 = vld [vmem:[#allocation14 + $0xd8] sm:$0xff]
    %v3768 = vld [vmem:[#allocation14 + $0xe0] sm:$0xff]
    %v3769 = vld [vmem:[#allocation14 + $0xe8] sm:$0xff]
    %v3770 = vld [vmem:[#allocation14 + $0xf0] sm:$0xff]
    %v3771 = vld [vmem:[#allocation14 + $0xf8] sm:$0xff]
    %v3772 = vld [vmem:[#allocation16] sm:$0x1]
    %v3774 = vperm.slane %v3772, 0
    %3776 = vmatpush.msra.mxu0 %v3755
    %3777 = vmatpush.msra.mxu0 %v3754
    %3778 = vmatpush.msra.mxu0 %v3753
    %3779 = vmatpush.msra.mxu0 %v3752
    %3780 = vmatpush.msra.mxu0 %v3751
    %3781 = vmatpush.msra.mxu0 %v3750
    %3782 = vmatpush.msra.mxu0 %v3749
    %3783 = vmatpush.msra.mxu0 %v3748
    %3784 = vmatpush.msra.mxu0 %v3747
    %3785 = vmatpush.msra.mxu0 %v3746
    %3786 = vmatpush.msra.mxu0 %v3745
    %3787 = vmatpush.msra.mxu0 %v3744
    %3788 = vmatpush.msra.mxu0 %v3743
    %3789 = vmatpush.msra.mxu0 %v3742
    %3790 = vmatpush.msra.mxu0 %v3741
    %3791 = vmatpush.msra.mxu0 %v3740
    %3792 = vmatmul.f32.gmra.mxu0 %v3738
    %v3793 = vpop.f32.mrf.mxu0
    %v3794 = vadd.f32 %v3774, %v3793
    %3795 = vdwg.mxu0
    %3796 = vmatpush.msra.mxu0 %v3771
    %3797 = vmatpush.msra.mxu0 %v3770
    %3798 = vmatpush.msra.mxu0 %v3769
    %3799 = vmatpush.msra.mxu0 %v3768
    %3800 = vmatpush.msra.mxu0 %v3767
    %3801 = vmatpush.msra.mxu0 %v3766
    %3802 = vmatpush.msra.mxu0 %v3765
    %3803 = vmatpush.msra.mxu0 %v3764
    %3804 = vmatpush.msra.mxu0 %v3763
    %3805 = vmatpush.msra.mxu0 %v3762
    %3806 = vmatpush.msra.mxu0 %v3761
    %3807 = vmatpush.msra.mxu0 %v3760
    %3808 = vmatpush.msra.mxu0 %v3759
    %3809 = vmatpush.msra.mxu0 %v3758
    %3810 = vmatpush.msra.mxu0 %v3757
    %3811 = vmatpush.msra.mxu0 %v3756
    %3812 = vmatmul.f32.gmra.mxu0 %v3739
    %v3813 = vpop.f32.mrf.mxu0
    %v3814 = vadd.f32 %v3794, %v3813
    %3815 = vdwg.mxu0
    %v3816 = vmax.f32 %v3814, 0.0
    %v3817 = vld [vmem:[#allocation17] sm:$0xff]
    %v3818 = vld [vmem:[#allocation17 + $0x8] sm:$0xff]
    %v3819 = vld [vmem:[#allocation17 + $0x10] sm:$0xff]
    %v3820 = vld [vmem:[#allocation17 + $0x18] sm:$0xff]
    %v3821 = vld [vmem:[#allocation17 + $0x20] sm:$0xff]
    %v3822 = vld [vmem:[#allocation17 + $0x28] sm:$0xff]
    %v3823 = vld [vmem:[#allocation17 + $0x30] sm:$0xff]
    %v3824 = vld [vmem:[#allocation17 + $0x38] sm:$0xff]
    %v3825 = vld [vmem:[#allocation17 + $0x40] sm:$0xff]
    %v3826 = vld [vmem:[#allocation17 + $0x48] sm:$0xff]
    %v3827 = vld [vmem:[#allocation17 + $0x50] sm:$0xff]
    %v3828 = vld [vmem:[#allocation17 + $0x58] sm:$0xff]
    %v3829 = vld [vmem:[#allocation17 + $0x60] sm:$0xff]
    %v3830 = vld [vmem:[#allocation17 + $0x68] sm:$0xff]
    %v3831 = vld [vmem:[#allocation17 + $0x70] sm:$0xff]
    %v3832 = vld [vmem:[#allocation17 + $0x78] sm:$0xff]
    %v3833 = vld [vmem:[#allocation17 + $0x80] sm:$0xff]
    %v3834 = vld [vmem:[#allocation17 + $0x88] sm:$0xff]
    %v3835 = vld [vmem:[#allocation17 + $0x90] sm:$0xff]
    %v3836 = vld [vmem:[#allocation17 + $0x98] sm:$0xff]
    %v3837 = vld [vmem:[#allocation17 + $0xa0] sm:$0xff]
    %v3838 = vld [vmem:[#allocation17 + $0xa8] sm:$0xff]
    %v3839 = vld [vmem:[#allocation17 + $0xb0] sm:$0xff]
    %v3840 = vld [vmem:[#allocation17 + $0xb8] sm:$0xff]
    %v3841 = vld [vmem:[#allocation17 + $0xc0] sm:$0xff]
    %v3842 = vld [vmem:[#allocation17 + $0xc8] sm:$0xff]
    %v3843 = vld [vmem:[#allocation17 + $0xd0] sm:$0xff]
    %v3844 = vld [vmem:[#allocation17 + $0xd8] sm:$0xff]
    %v3845 = vld [vmem:[#allocation17 + $0xe0] sm:$0xff]
    %v3846 = vld [vmem:[#allocation17 + $0xe8] sm:$0xff]
    %v3847 = vld [vmem:[#allocation17 + $0xf0] sm:$0xff]
    %v3848 = vld [vmem:[#allocation17 + $0xf8] sm:$0xff]
    %v3849 = vld [vmem:[%s12] sm:$0xff]
    %v3850 = vld [vmem:[%s12 + $0x8] sm:$0xff]
    %3851 = vmatpush.msra.mxu0 %v3847
    %3852 = vmatpush.msra.mxu0 %v3845
    %3853 = vmatpush.msra.mxu0 %v3843
    %3854 = vmatpush.msra.mxu0 %v3841
    %3855 = vmatpush.msra.mxu0 %v3839
    %3856 = vmatpush.msra.mxu0 %v3837
    %3857 = vmatpush.msra.mxu0 %v3835
    %3858 = vmatpush.msra.mxu0 %v3833
    %3859 = vmatpush.msra.mxu0 %v3831
    %3860 = vmatpush.msra.mxu0 %v3829
    %3861 = vmatpush.msra.mxu0 %v3827
    %3862 = vmatpush.msra.mxu0 %v3825
    %3863 = vmatpush.msra.mxu0 %v3823
    %3864 = vmatpush.msra.mxu0 %v3821
    %3865 = vmatpush.msra.mxu0 %v3819
    %3866 = vmatpush.msra.mxu0 %v3817
    %3867 = vmatmul.f32.gmra.mxu0 %v3816
    %v3868 = vpop.f32.mrf.mxu0
    %v3869 = vadd.f32 %v3849, %v3868
    %3870 = vdwg.mxu0
    %3871 = vmatpush.msra.mxu0 %v3848
    %3872 = vmatpush.msra.mxu0 %v3846
    %3873 = vmatpush.msra.mxu0 %v3844
    %3874 = vmatpush.msra.mxu0 %v3842
    %3875 = vmatpush.msra.mxu0 %v3840
    %3876 = vmatpush.msra.mxu0 %v3838
    %3877 = vmatpush.msra.mxu0 %v3836
    %3878 = vmatpush.msra.mxu0 %v3834
    %3879 = vmatpush.msra.mxu0 %v3832
    %3880 = vmatpush.msra.mxu0 %v3830
    %3881 = vmatpush.msra.mxu0 %v3828
    %3882 = vmatpush.msra.mxu0 %v3826
    %3883 = vmatpush.msra.mxu0 %v3824
    %3884 = vmatpush.msra.mxu0 %v3822
    %3885 = vmatpush.msra.mxu0 %v3820
    %3886 = vmatpush.msra.mxu0 %v3818
    %3887 = vmatmul.f32.gmra.mxu0 %v3816
    %v3888 = vpop.f32.mrf.mxu0
    %v3889 = vadd.f32 %v3850, %v3888
    %3890 = vdwg.mxu0
    %3891 = vst [vmem:[#allocation19] sm:$0xff] %v3869
    %3892 = vst [vmem:[#allocation19 + $0x8] sm:$0xff] %v3889
    // Predicated region
    $region94: #{tpu_custom_call.1} parent=1 // pred_check
      _
    $region95: #{tpu_custom_call.1} parent=1 // pred_check_branch
      %3894 = sbr.rel (0) target = $region97
    $region96: #{tpu_custom_call.1} parent=1 // pred_region
      %3896 = vsyncadd [#allocation4], 0
      %s3898 = sshll.u32 [#allocation19], 4
      %s3899 = int_to_ptr.vmem [resolvable:$true] %s3898
      %s3900 = sshll.u32 %s13, 4
      %s3901 = int_to_ptr.hbm [resolvable:$true] %s3900
      %3903 = dma.vmem_to_hbm [thread:$0]  %s3899, 256, %s3901, [#allocation4]
    $region97: #{tpu_custom_call.1} parent=1 // pred_fallthru
      _
    // Predicated region
    $region98: #{tpu_custom_call.1} parent=1 // pred_check
      _
    $region99: #{tpu_custom_call.1} parent=1 // pred_check_branch
      %3905 = sbr.rel (0) target = $region101
    $region100: #{tpu_custom_call.1} parent=1 // pred_region
      %3907 = dma.done [#allocation4], 256
    $region101: #{tpu_custom_call.1} parent=1 // pred_fallthru
      _
    %3908 = vsyncpa [#allocation3], 1
    %3909 = vsyncpa [#allocation6], 1
    %3910 = vsyncpa [#allocation9], 1
    %3911 = vsyncpa [#allocation12], 1
    %3912 = vsyncpa [#allocation15], 1
    %3913 = vsyncpa [#allocation18], 1
    %3914 = vsyncpa [#allocation4], 1

</llo_original>
